<compile_context>
chip_gen: v7x
topology: tpu7x:2x2x1
jax: 0.10.0
libtpu: 0.0.40
codegen_flags: <defaults>
</compile_context>

<pallas_src>
import numpy as np
import jax
import jax.numpy as jnp
from jax.experimental import pallas as pl
from jax.experimental.pallas import tpu as pltpu


# ----------------------------- Pallas kernel ------------------------------- #

def _cnn_mnist_kernel(p1_ref, w1_ref, b1_ref, w2_ref, b2_ref, p2m_ref,
                      wf1_ref, bf1_ref, wo_ref, bo_ref,
                      out1_ref, out2_ref, logits_ref):
    f32 = jnp.float32
    bf16 = jnp.bfloat16

    # ---- conv1 (3x3, pad 1) + ReLU + 2x2 AvgPool -------------------------- #
    # Patch rows arrive grouped by the 2x2-window offset (a, b), so the pool is
    # a plain sum of the four 196-row blocks (no pool matrix, no strides).
    pool1 = jnp.zeros((196, 8), f32)
    for k in range(4):
        p = p1_ref[0, k * 196:(k + 1) * 196, :]                    # (196, 9) bf16
        y = jnp.dot(p, w1_ref[...], preferred_element_type=f32)
        pool1 = pool1 + jnp.maximum(y + b1_ref[...], 0.0)
    pool1 = 0.25 * pool1                    # (196, 8); rows = 14x14 row-major
    out1_ref[0] = pool1

    # ---- conv2 (3x3, pad 1) + ReLU ---------------------------------------- #
    # 9 taps = 9 shifted contiguous slices of the zero-margined, flattened
    # (14*14, 8) activation; the two width-edge taps are fixed with iota masks.
    act = pool1.astype(bf16)
    zmargin = jnp.zeros((16, 8), bf16)
    flat = jnp.concatenate([zmargin, act, zmargin], axis=0)        # (228, 8)
    q_idx = jax.lax.broadcasted_iota(jnp.int32, (196, 1), 0) % 14
    not_left = q_idx != 0
    not_right = q_idx != 13
    slabs = []
    for dh in range(3):
        for dw in range(3):
            start = 14 * dh + dw + 1
            s = flat[start:start + 196, :]                         # (196, 8)
            if dw == 0:
                s = jnp.where(not_left, s, jnp.zeros_like(s))
            elif dw == 2:
                s = jnp.where(not_right, s, jnp.zeros_like(s))
            slabs.append(s)
    patches2 = jnp.concatenate(slabs, axis=1)                      # (196, 72) bf16
    y2 = jnp.dot(patches2, w2_ref[...], preferred_element_type=f32)
    y2 = jnp.maximum(y2 + b2_ref[...], 0.0)                        # (196, 16)

    # ---- 2x2 AvgPool on conv2 output (tiny per-image matrix, 0.25 baked in) #
    pool2 = jnp.dot(p2m_ref[...], y2, preferred_element_type=f32)  # (49, 16)
    out2_ref[0] = pool2

    # ---- flatten -> fc1 + ReLU -> out (weights pre-permuted wrapper-side) -- #
    vec = jnp.concatenate([pool2[r:r + 1, :] for r in range(49)], axis=1)  # (1, 784)
    h = jnp.dot(vec.astype(bf16), wf1_ref[...], preferred_element_type=f32)
    h = jnp.maximum(h + bf1_ref[...], 0.0)                         # (1, 128)
    logits = jnp.dot(h.astype(bf16), wo_ref[...], preferred_element_type=f32)
    logits_ref[0] = logits + bo_ref[...]                           # (1, 128) padded


# ------------------------------- JAX wrapper -------------------------------- #

def cnn_mnist_forward(x_nchw, params):
    N = x_nchw.shape[0]
    f32, bf16 = jnp.float32, jnp.bfloat16

    # conv1 im2col (tiny: 1 input channel), rows ordered (a, b, i, j) where the
    # conv output pixel is (2i + a, 2j + b) -> in-kernel pooling = 4 slices.
    x2 = x_nchw[:, 0].astype(f32)                                  # (N, 28, 28)
    xp = jnp.pad(x2, ((0, 0), (1, 1), (1, 1)))                     # (N, 30, 30)
    taps = [xp[:, dh:dh + 28, dw:dw + 28] for dh in range(3) for dw in range(3)]
    p1 = jnp.stack(taps, axis=-1)                                  # (N, 28, 28, 9)
    p1 = p1.reshape(N, 14, 2, 14, 2, 9).transpose(0, 2, 4, 1, 3, 5)
    p1 = p1.reshape(N, 784, 9).astype(bf16)

    # Weights as (K, Cout) matmul operands in bf16; biases stay f32.
    w1 = params["w_conv1"].reshape(8, 9).T.astype(bf16)                        # (9, 8)
    b1 = params["b_conv1"].reshape(1, 8).astype(f32)
    w2 = jnp.transpose(params["w_conv2"], (2, 3, 1, 0)).reshape(72, 16).astype(bf16)
    b2 = params["b_conv2"].reshape(1, 16).astype(f32)
    # fc1 weight re-ordered for the kernel's (h, w, c) flatten order.
    wf1 = (params["w_fc1"].reshape(128, 16, 7, 7).transpose(0, 2, 3, 1)
           .reshape(128, 784).T.astype(bf16))                                   # (784, 128)
    bf1 = params["b_fc1"].reshape(1, 128).astype(f32)
    # Final Linear padded to 128 output lanes (lane-dense store).
    wo = jnp.pad(params["w_out"].T, ((0, 0), (0, 118))).astype(bf16)            # (128, 128)
    bo = jnp.pad(params["b_out"], (0, 118)).reshape(1, 128).astype(f32)

    # Per-image (batch-independent) 14x14 -> 7x7 average-pool matrix.
    p2m = np.zeros((49, 196), np.float32)
    for i in range(7):
        for j in range(7):
            for a in range(2):
                for b in range(2):
                    p2m[i * 7 + j, (2 * i + a) * 14 + (2 * j + b)] = 0.25
    p2m = jnp.asarray(p2m)

    out1, out2, logits = pl.pallas_call(
        _cnn_mnist_kernel,
        out_shape=(
            jax.ShapeDtypeStruct((N, 196, 8), f32),     # pooled conv1 (h*w, c)
            jax.ShapeDtypeStruct((N, 49, 16), f32),     # pooled conv2 (h*w, c)
            jax.ShapeDtypeStruct((N, 1, 128), f32),     # logits, padded lanes
        ),
        grid=(N,),
        in_specs=[
            pl.BlockSpec((1, 784, 9), lambda b: (b, 0, 0)),   # conv1 patches
            pl.BlockSpec((9, 8), lambda b: (0, 0)),           # w1
            pl.BlockSpec((1, 8), lambda b: (0, 0)),           # b1
            pl.BlockSpec((72, 16), lambda b: (0, 0)),         # w2
            pl.BlockSpec((1, 16), lambda b: (0, 0)),          # b2
            pl.BlockSpec((49, 196), lambda b: (0, 0)),        # pool2 matrix
            pl.BlockSpec((784, 128), lambda b: (0, 0)),       # fc1 weight
            pl.BlockSpec((1, 128), lambda b: (0, 0)),         # fc1 bias
            pl.BlockSpec((128, 128), lambda b: (0, 0)),       # out weight (padded)
            pl.BlockSpec((1, 128), lambda b: (0, 0)),         # out bias (padded)
        ],
        out_specs=(
            pl.BlockSpec((1, 196, 8), lambda b: (b, 0, 0)),
            pl.BlockSpec((1, 49, 16), lambda b: (b, 0, 0)),
            pl.BlockSpec((1, 1, 128), lambda b: (b, 0, 0)),
        ),
        compiler_params=pltpu.CompilerParams(
            dimension_semantics=("parallel",),
            vmem_limit_bytes=32 * 1024 * 1024),
    )(p1, w1, b1, w2, b2, p2m, wf1, bf1, wo, bo)

    out1_nchw = jnp.transpose(out1.reshape(N, 14, 14, 8), (0, 3, 1, 2))
    out2_nchw = jnp.transpose(out2.reshape(N, 7, 7, 16), (0, 3, 1, 2))
    return logits[:, 0, :10], [out1_nchw, out2_nchw]


# ----------------------- pure-JAX reference (checking) ---------------------- #

def reference_forward(x_nchw, params):
    dn = ("NCHW", "OIHW", "NCHW")

    def conv(x, w, b):
        y = jax.lax.conv_general_dilated(
            x, w, window_strides=(1, 1), padding=((1, 1), (1, 1)),
            dimension_numbers=dn, precision=jax.lax.Precision.HIGHEST)
        return y + b.reshape(1, -1, 1, 1)

    def pool(x):
        N, C, H, W = x.shape
        return x.reshape(N, C, H // 2, 2, W // 2, 2).mean(axis=(3, 5))

    a1 = pool(jnp.maximum(conv(x_nchw, params["w_conv1"], params["b_conv1"]), 0.0))
    a2 = pool(jnp.maximum(conv(a1, params["w_conv2"], params["b_conv2"]), 0.0))
    flat = a2.reshape(x_nchw.shape[0], -1)
    h = jnp.maximum(flat @ params["w_fc1"].T + params["b_fc1"], 0.0)
    logits = h @ params["w_out"].T + params["b_out"]
    return logits, [a1, a2]


# --------------------------------- main ------------------------------------ #

if __name__ == "__main__":
    key = jax.random.PRNGKey(0)
    ks = jax.random.split(key, 9)
    # MNIST-shaped input (fc1 expects 16*7*7, which forces 1x28x28 inputs).
    x = jax.random.normal(ks[0], (2, 1, 28, 28), jnp.float32)
    params = {
        "w_conv1": 0.1 * jax.random.normal(ks[1], (8, 1, 3, 3), jnp.float32),
        "b_conv1": 0.1 * jax.random.normal(ks[2], (8,), jnp.float32),
        "w_conv2": 0.1 * jax.random.normal(ks[3], (16, 8, 3, 3), jnp.float32),
        "b_conv2": 0.1 * jax.random.normal(ks[4], (16,), jnp.float32),
        "w_fc1": 0.05 * jax.random.normal(ks[5], (128, 16 * 7 * 7), jnp.float32),
        "b_fc1": 0.05 * jax.random.normal(ks[6], (128,), jnp.float32),
        "w_out": 0.05 * jax.random.normal(ks[7], (10, 128), jnp.float32),
        "b_out": 0.05 * jax.random.normal(ks[8], (10,), jnp.float32),
    }

    logits, layers_out = cnn_mnist_forward(x, params)
    jax.block_until_ready(logits)
    jax.block_until_ready(layers_out)

    assert logits.shape == (2, 10)
    assert layers_out[0].shape == (2, 8, 14, 14)
    assert layers_out[1].shape == (2, 16, 7, 7)

    # Tolerances account for bf16 matmul operands (f32 accumulation).
    ref_logits, ref_layers = reference_forward(x, params)
    np.testing.assert_allclose(np.asarray(layers_out[0]), np.asarray(ref_layers[0]),
                               rtol=2e-2, atol=1e-2)
    np.testing.assert_allclose(np.asarray(layers_out[1]), np.asarray(ref_layers[1]),
                               rtol=2e-2, atol=1e-2)
    np.testing.assert_allclose(np.asarray(logits), np.asarray(ref_logits),
                               rtol=2e-2, atol=1e-2)

    print("KERNEL_OK")
</pallas_src>

<mosaic_0001>
module attributes {stable_mosaic.version = 11 : i64} {
  func.func @_cnn_mnist_kernel(%arg0: i32, %arg1: memref<1x784x9xbf16, #tpu.memory_space<vmem>>, %arg2: memref<9x8xbf16, #tpu.memory_space<vmem>>, %arg3: memref<1x8xf32, #tpu.memory_space<vmem>>, %arg4: memref<72x16xbf16, #tpu.memory_space<vmem>>, %arg5: memref<1x16xf32, #tpu.memory_space<vmem>>, %arg6: memref<49x196xf32, #tpu.memory_space<vmem>>, %arg7: memref<784x128xbf16, #tpu.memory_space<vmem>>, %arg8: memref<1x128xf32, #tpu.memory_space<vmem>>, %arg9: memref<128x128xbf16, #tpu.memory_space<vmem>>, %arg10: memref<1x128xf32, #tpu.memory_space<vmem>>, %arg11: memref<1x196x8xf32, #tpu.memory_space<vmem>>, %arg12: memref<1x49x16xf32, #tpu.memory_space<vmem>>, %arg13: memref<1x1x128xf32, #tpu.memory_space<vmem>>) attributes {dimension_semantics = [#tpu.dimension_semantics<parallel>], iteration_bounds = array<i64: 2>, scalar_prefetch = 0 : i64, scratch_operands = 0 : i64, tpu.core_type = #tpu.core_type<tc>, window_params = [{transform_indices = @transform_0, window_bounds = array<i64: 1, 784, 9>}, {pipeline_mode = #tpu.pipeline_mode<synchronous>, transform_indices = @transform_1, window_bounds = array<i64: 9, 8>}, {pipeline_mode = #tpu.pipeline_mode<synchronous>, transform_indices = @transform_2, window_bounds = array<i64: 1, 8>}, {pipeline_mode = #tpu.pipeline_mode<synchronous>, transform_indices = @transform_3, window_bounds = array<i64: 72, 16>}, {pipeline_mode = #tpu.pipeline_mode<synchronous>, transform_indices = @transform_4, window_bounds = array<i64: 1, 16>}, {pipeline_mode = #tpu.pipeline_mode<synchronous>, transform_indices = @transform_5, window_bounds = array<i64: 49, 196>}, {pipeline_mode = #tpu.pipeline_mode<synchronous>, transform_indices = @transform_6, window_bounds = array<i64: 784, 128>}, {pipeline_mode = #tpu.pipeline_mode<synchronous>, transform_indices = @transform_7, window_bounds = array<i64: 1, 128>}, {pipeline_mode = #tpu.pipeline_mode<synchronous>, transform_indices = @transform_8, window_bounds = array<i64: 128, 128>}, {pipeline_mode = #tpu.pipeline_mode<synchronous>, transform_indices = @transform_9, window_bounds = array<i64: 1, 128>}, {transform_indices = @transform_10, window_bounds = array<i64: 1, 196, 8>}, {transform_indices = @transform_11, window_bounds = array<i64: 1, 49, 16>}, {transform_indices = @transform_12, window_bounds = array<i64: 1, 1, 128>}]} {
    %cst = arith.constant 0.000000e+00 : f32
    %0 = vector.broadcast %cst : f32 to vector<196x8xf32>
    %c0 = arith.constant 0 : index
    %c0_0 = arith.constant 0 : index
    %c0_1 = arith.constant 0 : index
    %1 = vector.load %arg1[%c0, %c0_0, %c0_1] : memref<1x784x9xbf16, #tpu.memory_space<vmem>>, vector<1x196x9xbf16>
    %2 = vector.shape_cast %1 : vector<1x196x9xbf16> to vector<196x9xbf16>
    %c0_2 = arith.constant 0 : index
    %c0_3 = arith.constant 0 : index
    %3 = vector.load %arg2[%c0_2, %c0_3] : memref<9x8xbf16, #tpu.memory_space<vmem>>, vector<9x8xbf16>
    %cst_4 = arith.constant dense<0.000000e+00> : vector<196x8xf32>
    %4 = tpu.matmul %2, %3, %cst_4 {dimension_numbers = #tpu.dot_dimension_numbers<[1], [0], [0], [1], [0, 0, 1, 1], [], []>} : vector<196x9xbf16>, vector<9x8xbf16>, vector<196x8xf32> -> vector<196x8xf32>
    %c0_5 = arith.constant 0 : index
    %c0_6 = arith.constant 0 : index
    %5 = vector.load %arg3[%c0_5, %c0_6] : memref<1x8xf32, #tpu.memory_space<vmem>>, vector<1x8xf32>
    %6 = vector.broadcast %5 : vector<1x8xf32> to vector<196x8xf32>
    %7 = arith.addf %4, %6 : vector<196x8xf32>
    %cst_7 = arith.constant 0.000000e+00 : f32
    %8 = vector.broadcast %cst_7 : f32 to vector<196x8xf32>
    %9 = arith.maximumf %7, %8 : vector<196x8xf32>
    %10 = arith.addf %0, %9 : vector<196x8xf32>
    %c0_8 = arith.constant 0 : index
    %c196 = arith.constant 196 : index
    %c0_9 = arith.constant 0 : index
    %11 = vector.load %arg1[%c0_8, %c196, %c0_9] : memref<1x784x9xbf16, #tpu.memory_space<vmem>>, vector<1x196x9xbf16>
    %12 = vector.shape_cast %11 : vector<1x196x9xbf16> to vector<196x9xbf16>
    %c0_10 = arith.constant 0 : index
    %c0_11 = arith.constant 0 : index
    %13 = vector.load %arg2[%c0_10, %c0_11] : memref<9x8xbf16, #tpu.memory_space<vmem>>, vector<9x8xbf16>
    %cst_12 = arith.constant dense<0.000000e+00> : vector<196x8xf32>
    %14 = tpu.matmul %12, %13, %cst_12 {dimension_numbers = #tpu.dot_dimension_numbers<[1], [0], [0], [1], [0, 0, 1, 1], [], []>} : vector<196x9xbf16>, vector<9x8xbf16>, vector<196x8xf32> -> vector<196x8xf32>
    %c0_13 = arith.constant 0 : index
    %c0_14 = arith.constant 0 : index
    %15 = vector.load %arg3[%c0_13, %c0_14] : memref<1x8xf32, #tpu.memory_space<vmem>>, vector<1x8xf32>
    %16 = vector.broadcast %15 : vector<1x8xf32> to vector<196x8xf32>
    %17 = arith.addf %14, %16 : vector<196x8xf32>
    %cst_15 = arith.constant 0.000000e+00 : f32
    %18 = vector.broadcast %cst_15 : f32 to vector<196x8xf32>
    %19 = arith.maximumf %17, %18 : vector<196x8xf32>
    %20 = arith.addf %10, %19 : vector<196x8xf32>
    %c0_16 = arith.constant 0 : index
    %c392 = arith.constant 392 : index
    %c0_17 = arith.constant 0 : index
    %21 = vector.load %arg1[%c0_16, %c392, %c0_17] : memref<1x784x9xbf16, #tpu.memory_space<vmem>>, vector<1x196x9xbf16>
    %22 = vector.shape_cast %21 : vector<1x196x9xbf16> to vector<196x9xbf16>
    %c0_18 = arith.constant 0 : index
    %c0_19 = arith.constant 0 : index
    %23 = vector.load %arg2[%c0_18, %c0_19] : memref<9x8xbf16, #tpu.memory_space<vmem>>, vector<9x8xbf16>
    %cst_20 = arith.constant dense<0.000000e+00> : vector<196x8xf32>
    %24 = tpu.matmul %22, %23, %cst_20 {dimension_numbers = #tpu.dot_dimension_numbers<[1], [0], [0], [1], [0, 0, 1, 1], [], []>} : vector<196x9xbf16>, vector<9x8xbf16>, vector<196x8xf32> -> vector<196x8xf32>
    %c0_21 = arith.constant 0 : index
    %c0_22 = arith.constant 0 : index
    %25 = vector.load %arg3[%c0_21, %c0_22] : memref<1x8xf32, #tpu.memory_space<vmem>>, vector<1x8xf32>
    %26 = vector.broadcast %25 : vector<1x8xf32> to vector<196x8xf32>
    %27 = arith.addf %24, %26 : vector<196x8xf32>
    %cst_23 = arith.constant 0.000000e+00 : f32
    %28 = vector.broadcast %cst_23 : f32 to vector<196x8xf32>
    %29 = arith.maximumf %27, %28 : vector<196x8xf32>
    %30 = arith.addf %20, %29 : vector<196x8xf32>
    %c0_24 = arith.constant 0 : index
    %c588 = arith.constant 588 : index
    %c0_25 = arith.constant 0 : index
    %31 = vector.load %arg1[%c0_24, %c588, %c0_25] : memref<1x784x9xbf16, #tpu.memory_space<vmem>>, vector<1x196x9xbf16>
    %32 = vector.shape_cast %31 : vector<1x196x9xbf16> to vector<196x9xbf16>
    %c0_26 = arith.constant 0 : index
    %c0_27 = arith.constant 0 : index
    %33 = vector.load %arg2[%c0_26, %c0_27] : memref<9x8xbf16, #tpu.memory_space<vmem>>, vector<9x8xbf16>
    %cst_28 = arith.constant dense<0.000000e+00> : vector<196x8xf32>
    %34 = tpu.matmul %32, %33, %cst_28 {dimension_numbers = #tpu.dot_dimension_numbers<[1], [0], [0], [1], [0, 0, 1, 1], [], []>} : vector<196x9xbf16>, vector<9x8xbf16>, vector<196x8xf32> -> vector<196x8xf32>
    %c0_29 = arith.constant 0 : index
    %c0_30 = arith.constant 0 : index
    %35 = vector.load %arg3[%c0_29, %c0_30] : memref<1x8xf32, #tpu.memory_space<vmem>>, vector<1x8xf32>
    %36 = vector.broadcast %35 : vector<1x8xf32> to vector<196x8xf32>
    %37 = arith.addf %34, %36 : vector<196x8xf32>
    %cst_31 = arith.constant 0.000000e+00 : f32
    %38 = vector.broadcast %cst_31 : f32 to vector<196x8xf32>
    %39 = arith.maximumf %37, %38 : vector<196x8xf32>
    %40 = arith.addf %30, %39 : vector<196x8xf32>
    %cst_32 = arith.constant 2.500000e-01 : f32
    %41 = vector.broadcast %cst_32 : f32 to vector<196x8xf32>
    %42 = arith.mulf %41, %40 : vector<196x8xf32>
    %c0_33 = arith.constant 0 : index
    %c0_34 = arith.constant 0 : index
    %c0_35 = arith.constant 0 : index
    %43 = vector.load %arg11[%c0_33, %c0_34, %c0_35] : memref<1x196x8xf32, #tpu.memory_space<vmem>>, vector<1x196x8xf32>
    %44 = vector.shape_cast %43 : vector<1x196x8xf32> to vector<196x8xf32>
    %45 = vector.shape_cast %42 : vector<196x8xf32> to vector<1x196x8xf32>
    tpu.vector_store %arg11[%c0_33, %c0_34, %c0_35], %45 {strides = array<i32>} : memref<1x196x8xf32, #tpu.memory_space<vmem>>, vector<1x196x8xf32>,
    %46 = arith.truncf %42 : vector<196x8xf32> to vector<196x8xbf16>
    %cst_36 = arith.constant 0.000000e+00 : bf16
    %47 = vector.broadcast %cst_36 : bf16 to vector<16x8xbf16>
    %48 = tpu.concatenate %47, %46, %47 in 0 : vector<16x8xbf16>, vector<196x8xbf16>, vector<16x8xbf16> -> vector<228x8xbf16>
    %49 = tpu.iota {dimensions = array<i32: 0>} : vector<196x1xi32>
    %c14_i32 = arith.constant 14 : i32
    %c0_i32 = arith.constant 0 : i32
    %50 = arith.cmpi eq, %c14_i32, %c0_i32 : i32
    %c1_i32 = arith.constant 1 : i32
    %51 = arith.select %50, %c1_i32, %c14_i32 : i32
    %52 = vector.broadcast %51 : i32 to vector<196x1xi32>
    %53 = arith.remsi %49, %52 : vector<196x1xi32>
    %c0_i32_37 = arith.constant 0 : i32
    %54 = vector.broadcast %c0_i32_37 : i32 to vector<196x1xi32>
    %55 = arith.cmpi ne, %53, %54 : vector<196x1xi32>
    %c0_i32_38 = arith.constant 0 : i32
    %56 = vector.broadcast %c0_i32_38 : i32 to vector<196x1xi32>
    %57 = arith.cmpi slt, %53, %56 : vector<196x1xi32>
    %c0_i32_39 = arith.constant 0 : i32
    %58 = arith.cmpi slt, %51, %c0_i32_39 : i32
    %59 = vector.broadcast %58 : i1 to vector<196x1xi1>
    %60 = vector.broadcast %59 : vector<196x1xi1> to vector<196x1xi1>
    %61 = arith.xori %57, %60 : vector<196x1xi1>
    %62 = arith.andi %61, %55 : vector<196x1xi1>
    %63 = vector.broadcast %51 : i32 to vector<196x1xi32>
    %64 = arith.addi %53, %63 : vector<196x1xi32>
    %65 = arith.select %62, %64, %53 : vector<196x1xi1>, vector<196x1xi32>
    %c0_i32_40 = arith.constant 0 : i32
    %66 = vector.broadcast %c0_i32_40 : i32 to vector<196x1xi32>
    %67 = arith.cmpi ne, %65, %66 : vector<196x1xi32>
    %c13_i32 = arith.constant 13 : i32
    %68 = vector.broadcast %c13_i32 : i32 to vector<196x1xi32>
    %69 = arith.cmpi ne, %65, %68 : vector<196x1xi32>
    %70 = vector.extract_strided_slice %48 {offsets = [1, 0], sizes = [196, 8], strides = [1, 1]} : vector<228x8xbf16> to vector<196x8xbf16>
    %cst_41 = arith.constant 0.000000e+00 : bf16
    %71 = vector.broadcast %cst_41 : bf16 to vector<196x8xbf16>
    %72 = vector.shape_cast %67 : vector<196x1xi1> to vector<196x1xi1>
    %73 = vector.broadcast %72 : vector<196x1xi1> to vector<196x8xi1>
    %74 = arith.select %73, %70, %71 : vector<196x8xi1>, vector<196x8xbf16>
    %75 = vector.extract_strided_slice %48 {offsets = [2, 0], sizes = [196, 8], strides = [1, 1]} : vector<228x8xbf16> to vector<196x8xbf16>
    %76 = vector.extract_strided_slice %48 {offsets = [3, 0], sizes = [196, 8], strides = [1, 1]} : vector<228x8xbf16> to vector<196x8xbf16>
    %cst_42 = arith.constant 0.000000e+00 : bf16
    %77 = vector.broadcast %cst_42 : bf16 to vector<196x8xbf16>
    %78 = vector.shape_cast %69 : vector<196x1xi1> to vector<196x1xi1>
    %79 = vector.broadcast %78 : vector<196x1xi1> to vector<196x8xi1>
    %80 = arith.select %79, %76, %77 : vector<196x8xi1>, vector<196x8xbf16>
    %81 = vector.extract_strided_slice %48 {offsets = [15, 0], sizes = [196, 8], strides = [1, 1]} : vector<228x8xbf16> to vector<196x8xbf16>
    %cst_43 = arith.constant 0.000000e+00 : bf16
    %82 = vector.broadcast %cst_43 : bf16 to vector<196x8xbf16>
    %83 = vector.shape_cast %67 : vector<196x1xi1> to vector<196x1xi1>
    %84 = vector.broadcast %83 : vector<196x1xi1> to vector<196x8xi1>
    %85 = arith.select %84, %81, %82 : vector<196x8xi1>, vector<196x8xbf16>
    %86 = vector.extract_strided_slice %48 {offsets = [16, 0], sizes = [196, 8], strides = [1, 1]} : vector<228x8xbf16> to vector<196x8xbf16>
    %87 = vector.extract_strided_slice %48 {offsets = [17, 0], sizes = [196, 8], strides = [1, 1]} : vector<228x8xbf16> to vector<196x8xbf16>
    %cst_44 = arith.constant 0.000000e+00 : bf16
    %88 = vector.broadcast %cst_44 : bf16 to vector<196x8xbf16>
    %89 = vector.shape_cast %69 : vector<196x1xi1> to vector<196x1xi1>
    %90 = vector.broadcast %89 : vector<196x1xi1> to vector<196x8xi1>
    %91 = arith.select %90, %87, %88 : vector<196x8xi1>, vector<196x8xbf16>
    %92 = vector.extract_strided_slice %48 {offsets = [29, 0], sizes = [196, 8], strides = [1, 1]} : vector<228x8xbf16> to vector<196x8xbf16>
    %cst_45 = arith.constant 0.000000e+00 : bf16
    %93 = vector.broadcast %cst_45 : bf16 to vector<196x8xbf16>
    %94 = vector.shape_cast %67 : vector<196x1xi1> to vector<196x1xi1>
    %95 = vector.broadcast %94 : vector<196x1xi1> to vector<196x8xi1>
    %96 = arith.select %95, %92, %93 : vector<196x8xi1>, vector<196x8xbf16>
    %97 = vector.extract_strided_slice %48 {offsets = [30, 0], sizes = [196, 8], strides = [1, 1]} : vector<228x8xbf16> to vector<196x8xbf16>
    %98 = vector.extract_strided_slice %48 {offsets = [31, 0], sizes = [196, 8], strides = [1, 1]} : vector<228x8xbf16> to vector<196x8xbf16>
    %cst_46 = arith.constant 0.000000e+00 : bf16
    %99 = vector.broadcast %cst_46 : bf16 to vector<196x8xbf16>
    %100 = vector.shape_cast %69 : vector<196x1xi1> to vector<196x1xi1>
    %101 = vector.broadcast %100 : vector<196x1xi1> to vector<196x8xi1>
    %102 = arith.select %101, %98, %99 : vector<196x8xi1>, vector<196x8xbf16>
    %103 = tpu.concatenate %74, %75, %80, %85, %86, %91, %96, %97, %102 in 1 : vector<196x8xbf16>, vector<196x8xbf16>, vector<196x8xbf16>, vector<196x8xbf16>, vector<196x8xbf16>, vector<196x8xbf16>, vector<196x8xbf16>, vector<196x8xbf16>, vector<196x8xbf16> -> vector<196x72xbf16>
    %c0_47 = arith.constant 0 : index
    %c0_48 = arith.constant 0 : index
    %104 = vector.load %arg4[%c0_47, %c0_48] : memref<72x16xbf16, #tpu.memory_space<vmem>>, vector<72x16xbf16>
    %cst_49 = arith.constant dense<0.000000e+00> : vector<196x16xf32>
    %105 = tpu.matmul %103, %104, %cst_49 {dimension_numbers = #tpu.dot_dimension_numbers<[1], [0], [0], [1], [0, 0, 1, 1], [], []>} : vector<196x72xbf16>, vector<72x16xbf16>, vector<196x16xf32> -> vector<196x16xf32>
    %c0_50 = arith.constant 0 : index
    %c0_51 = arith.constant 0 : index
    %106 = vector.load %arg5[%c0_50, %c0_51] : memref<1x16xf32, #tpu.memory_space<vmem>>, vector<1x16xf32>
    %107 = vector.broadcast %106 : vector<1x16xf32> to vector<196x16xf32>
    %108 = arith.addf %105, %107 : vector<196x16xf32>
    %cst_52 = arith.constant 0.000000e+00 : f32
    %109 = vector.broadcast %cst_52 : f32 to vector<196x16xf32>
    %110 = arith.maximumf %108, %109 : vector<196x16xf32>
    %c0_53 = arith.constant 0 : index
    %c0_54 = arith.constant 0 : index
    %111 = vector.load %arg6[%c0_53, %c0_54] : memref<49x196xf32, #tpu.memory_space<vmem>>, vector<49x196xf32>
    %cst_55 = arith.constant dense<0.000000e+00> : vector<49x16xf32>
    %112 = tpu.matmul %111, %110, %cst_55 {dimension_numbers = #tpu.dot_dimension_numbers<[1], [0], [0], [1], [0, 0, 1, 1], [], []>} : vector<49x196xf32>, vector<196x16xf32>, vector<49x16xf32> -> vector<49x16xf32>
    %c0_56 = arith.constant 0 : index
    %c0_57 = arith.constant 0 : index
    %c0_58 = arith.constant 0 : index
    %113 = vector.load %arg12[%c0_56, %c0_57, %c0_58] : memref<1x49x16xf32, #tpu.memory_space<vmem>>, vector<1x49x16xf32>
    %114 = vector.shape_cast %113 : vector<1x49x16xf32> to vector<49x16xf32>
    %115 = vector.shape_cast %112 : vector<49x16xf32> to vector<1x49x16xf32>
    tpu.vector_store %arg12[%c0_56, %c0_57, %c0_58], %115 {strides = array<i32>} : memref<1x49x16xf32, #tpu.memory_space<vmem>>, vector<1x49x16xf32>,
    %116 = vector.extract_strided_slice %112 {offsets = [0, 0], sizes = [1, 16], strides = [1, 1]} : vector<49x16xf32> to vector<1x16xf32>
    %117 = vector.extract_strided_slice %112 {offsets = [1, 0], sizes = [1, 16], strides = [1, 1]} : vector<49x16xf32> to vector<1x16xf32>
    %118 = vector.extract_strided_slice %112 {offsets = [2, 0], sizes = [1, 16], strides = [1, 1]} : vector<49x16xf32> to vector<1x16xf32>
    %119 = vector.extract_strided_slice %112 {offsets = [3, 0], sizes = [1, 16], strides = [1, 1]} : vector<49x16xf32> to vector<1x16xf32>
    %120 = vector.extract_strided_slice %112 {offsets = [4, 0], sizes = [1, 16], strides = [1, 1]} : vector<49x16xf32> to vector<1x16xf32>
    %121 = vector.extract_strided_slice %112 {offsets = [5, 0], sizes = [1, 16], strides = [1, 1]} : vector<49x16xf32> to vector<1x16xf32>
    %122 = vector.extract_strided_slice %112 {offsets = [6, 0], sizes = [1, 16], strides = [1, 1]} : vector<49x16xf32> to vector<1x16xf32>
    %123 = vector.extract_strided_slice %112 {offsets = [7, 0], sizes = [1, 16], strides = [1, 1]} : vector<49x16xf32> to vector<1x16xf32>
    %124 = vector.extract_strided_slice %112 {offsets = [8, 0], sizes = [1, 16], strides = [1, 1]} : vector<49x16xf32> to vector<1x16xf32>
    %125 = vector.extract_strided_slice %112 {offsets = [9, 0], sizes = [1, 16], strides = [1, 1]} : vector<49x16xf32> to vector<1x16xf32>
    %126 = vector.extract_strided_slice %112 {offsets = [10, 0], sizes = [1, 16], strides = [1, 1]} : vector<49x16xf32> to vector<1x16xf32>
    %127 = vector.extract_strided_slice %112 {offsets = [11, 0], sizes = [1, 16], strides = [1, 1]} : vector<49x16xf32> to vector<1x16xf32>
    %128 = vector.extract_strided_slice %112 {offsets = [12, 0], sizes = [1, 16], strides = [1, 1]} : vector<49x16xf32> to vector<1x16xf32>
    %129 = vector.extract_strided_slice %112 {offsets = [13, 0], sizes = [1, 16], strides = [1, 1]} : vector<49x16xf32> to vector<1x16xf32>
    %130 = vector.extract_strided_slice %112 {offsets = [14, 0], sizes = [1, 16], strides = [1, 1]} : vector<49x16xf32> to vector<1x16xf32>
    %131 = vector.extract_strided_slice %112 {offsets = [15, 0], sizes = [1, 16], strides = [1, 1]} : vector<49x16xf32> to vector<1x16xf32>
    %132 = vector.extract_strided_slice %112 {offsets = [16, 0], sizes = [1, 16], strides = [1, 1]} : vector<49x16xf32> to vector<1x16xf32>
    %133 = vector.extract_strided_slice %112 {offsets = [17, 0], sizes = [1, 16], strides = [1, 1]} : vector<49x16xf32> to vector<1x16xf32>
    %134 = vector.extract_strided_slice %112 {offsets = [18, 0], sizes = [1, 16], strides = [1, 1]} : vector<49x16xf32> to vector<1x16xf32>
    %135 = vector.extract_strided_slice %112 {offsets = [19, 0], sizes = [1, 16], strides = [1, 1]} : vector<49x16xf32> to vector<1x16xf32>
    %136 = vector.extract_strided_slice %112 {offsets = [20, 0], sizes = [1, 16], strides = [1, 1]} : vector<49x16xf32> to vector<1x16xf32>
    %137 = vector.extract_strided_slice %112 {offsets = [21, 0], sizes = [1, 16], strides = [1, 1]} : vector<49x16xf32> to vector<1x16xf32>
    %138 = vector.extract_strided_slice %112 {offsets = [22, 0], sizes = [1, 16], strides = [1, 1]} : vector<49x16xf32> to vector<1x16xf32>
    %139 = vector.extract_strided_slice %112 {offsets = [23, 0], sizes = [1, 16], strides = [1, 1]} : vector<49x16xf32> to vector<1x16xf32>
    %140 = vector.extract_strided_slice %112 {offsets = [24, 0], sizes = [1, 16], strides = [1, 1]} : vector<49x16xf32> to vector<1x16xf32>
    %141 = vector.extract_strided_slice %112 {offsets = [25, 0], sizes = [1, 16], strides = [1, 1]} : vector<49x16xf32> to vector<1x16xf32>
    %142 = vector.extract_strided_slice %112 {offsets = [26, 0], sizes = [1, 16], strides = [1, 1]} : vector<49x16xf32> to vector<1x16xf32>
    %143 = vector.extract_strided_slice %112 {offsets = [27, 0], sizes = [1, 16], strides = [1, 1]} : vector<49x16xf32> to vector<1x16xf32>
    %144 = vector.extract_strided_slice %112 {offsets = [28, 0], sizes = [1, 16], strides = [1, 1]} : vector<49x16xf32> to vector<1x16xf32>
    %145 = vector.extract_strided_slice %112 {offsets = [29, 0], sizes = [1, 16], strides = [1, 1]} : vector<49x16xf32> to vector<1x16xf32>
    %146 = vector.extract_strided_slice %112 {offsets = [30, 0], sizes = [1, 16], strides = [1, 1]} : vector<49x16xf32> to vector<1x16xf32>
    %147 = vector.extract_strided_slice %112 {offsets = [31, 0], sizes = [1, 16], strides = [1, 1]} : vector<49x16xf32> to vector<1x16xf32>
    %148 = vector.extract_strided_slice %112 {offsets = [32, 0], sizes = [1, 16], strides = [1, 1]} : vector<49x16xf32> to vector<1x16xf32>
    %149 = vector.extract_strided_slice %112 {offsets = [33, 0], sizes = [1, 16], strides = [1, 1]} : vector<49x16xf32> to vector<1x16xf32>
    %150 = vector.extract_strided_slice %112 {offsets = [34, 0], sizes = [1, 16], strides = [1, 1]} : vector<49x16xf32> to vector<1x16xf32>
    %151 = vector.extract_strided_slice %112 {offsets = [35, 0], sizes = [1, 16], strides = [1, 1]} : vector<49x16xf32> to vector<1x16xf32>
    %152 = vector.extract_strided_slice %112 {offsets = [36, 0], sizes = [1, 16], strides = [1, 1]} : vector<49x16xf32> to vector<1x16xf32>
    %153 = vector.extract_strided_slice %112 {offsets = [37, 0], sizes = [1, 16], strides = [1, 1]} : vector<49x16xf32> to vector<1x16xf32>
    %154 = vector.extract_strided_slice %112 {offsets = [38, 0], sizes = [1, 16], strides = [1, 1]} : vector<49x16xf32> to vector<1x16xf32>
    %155 = vector.extract_strided_slice %112 {offsets = [39, 0], sizes = [1, 16], strides = [1, 1]} : vector<49x16xf32> to vector<1x16xf32>
    %156 = vector.extract_strided_slice %112 {offsets = [40, 0], sizes = [1, 16], strides = [1, 1]} : vector<49x16xf32> to vector<1x16xf32>
    %157 = vector.extract_strided_slice %112 {offsets = [41, 0], sizes = [1, 16], strides = [1, 1]} : vector<49x16xf32> to vector<1x16xf32>
    %158 = vector.extract_strided_slice %112 {offsets = [42, 0], sizes = [1, 16], strides = [1, 1]} : vector<49x16xf32> to vector<1x16xf32>
    %159 = vector.extract_strided_slice %112 {offsets = [43, 0], sizes = [1, 16], strides = [1, 1]} : vector<49x16xf32> to vector<1x16xf32>
    %160 = vector.extract_strided_slice %112 {offsets = [44, 0], sizes = [1, 16], strides = [1, 1]} : vector<49x16xf32> to vector<1x16xf32>
    %161 = vector.extract_strided_slice %112 {offsets = [45, 0], sizes = [1, 16], strides = [1, 1]} : vector<49x16xf32> to vector<1x16xf32>
    %162 = vector.extract_strided_slice %112 {offsets = [46, 0], sizes = [1, 16], strides = [1, 1]} : vector<49x16xf32> to vector<1x16xf32>
    %163 = vector.extract_strided_slice %112 {offsets = [47, 0], sizes = [1, 16], strides = [1, 1]} : vector<49x16xf32> to vector<1x16xf32>
    %164 = vector.extract_strided_slice %112 {offsets = [48, 0], sizes = [1, 16], strides = [1, 1]} : vector<49x16xf32> to vector<1x16xf32>
    %165 = tpu.concatenate %116, %117, %118, %119, %120, %121, %122, %123, %124, %125, %126, %127, %128, %129, %130, %131 in 1 : vector<1x16xf32>, vector<1x16xf32>, vector<1x16xf32>, vector<1x16xf32>, vector<1x16xf32>, vector<1x16xf32>, vector<1x16xf32>, vector<1x16xf32>, vector<1x16xf32>, vector<1x16xf32>, vector<1x16xf32>, vector<1x16xf32>, vector<1x16xf32>, vector<1x16xf32>, vector<1x16xf32>, vector<1x16xf32> -> vector<1x256xf32>
    %166 = tpu.concatenate %132, %133, %134, %135, %136, %137, %138, %139, %140, %141, %142, %143, %144, %145, %146, %147 in 1 : vector<1x16xf32>, vector<1x16xf32>, vector<1x16xf32>, vector<1x16xf32>, vector<1x16xf32>, vector<1x16xf32>, vector<1x16xf32>, vector<1x16xf32>, vector<1x16xf32>, vector<1x16xf32>, vector<1x16xf32>, vector<1x16xf32>, vector<1x16xf32>, vector<1x16xf32>, vector<1x16xf32>, vector<1x16xf32> -> vector<1x256xf32>
    %167 = tpu.concatenate %148, %149, %150, %151, %152, %153, %154, %155, %156, %157, %158, %159, %160, %161, %162, %163 in 1 : vector<1x16xf32>, vector<1x16xf32>, vector<1x16xf32>, vector<1x16xf32>, vector<1x16xf32>, vector<1x16xf32>, vector<1x16xf32>, vector<1x16xf32>, vector<1x16xf32>, vector<1x16xf32>, vector<1x16xf32>, vector<1x16xf32>, vector<1x16xf32>, vector<1x16xf32>, vector<1x16xf32>, vector<1x16xf32> -> vector<1x256xf32>
    %168 = tpu.concatenate %165, %166, %167, %164 in 1 : vector<1x256xf32>, vector<1x256xf32>, vector<1x256xf32>, vector<1x16xf32> -> vector<1x784xf32>
    %169 = arith.truncf %168 : vector<1x784xf32> to vector<1x784xbf16>
    %c0_59 = arith.constant 0 : index
    %c0_60 = arith.constant 0 : index
    %170 = vector.load %arg7[%c0_59, %c0_60] : memref<784x128xbf16, #tpu.memory_space<vmem>>, vector<784x128xbf16>
    %cst_61 = arith.constant dense<0.000000e+00> : vector<1x128xf32>
    %171 = tpu.matmul %169, %170, %cst_61 {dimension_numbers = #tpu.dot_dimension_numbers<[1], [0], [0], [1], [0, 0, 1, 1], [], []>} : vector<1x784xbf16>, vector<784x128xbf16>, vector<1x128xf32> -> vector<1x128xf32>
    %c0_62 = arith.constant 0 : index
    %c0_63 = arith.constant 0 : index
    %172 = vector.load %arg8[%c0_62, %c0_63] : memref<1x128xf32, #tpu.memory_space<vmem>>, vector<1x128xf32>
    %173 = arith.addf %171, %172 : vector<1x128xf32>
    %cst_64 = arith.constant 0.000000e+00 : f32
    %174 = vector.broadcast %cst_64 : f32 to vector<1x128xf32>
    %175 = arith.maximumf %173, %174 : vector<1x128xf32>
    %176 = arith.truncf %175 : vector<1x128xf32> to vector<1x128xbf16>
    %c0_65 = arith.constant 0 : index
    %c0_66 = arith.constant 0 : index
    %177 = vector.load %arg9[%c0_65, %c0_66] : memref<128x128xbf16, #tpu.memory_space<vmem>>, vector<128x128xbf16>
    %cst_67 = arith.constant dense<0.000000e+00> : vector<1x128xf32>
    %178 = tpu.matmul %176, %177, %cst_67 {dimension_numbers = #tpu.dot_dimension_numbers<[1], [0], [0], [1], [0, 0, 1, 1], [], []>} : vector<1x128xbf16>, vector<128x128xbf16>, vector<1x128xf32> -> vector<1x128xf32>
    %c0_68 = arith.constant 0 : index
    %c0_69 = arith.constant 0 : index
    %179 = vector.load %arg10[%c0_68, %c0_69] : memref<1x128xf32, #tpu.memory_space<vmem>>, vector<1x128xf32>
    %180 = arith.addf %178, %179 : vector<1x128xf32>
    %c0_70 = arith.constant 0 : index
    %c0_71 = arith.constant 0 : index
    %c0_72 = arith.constant 0 : index
    %181 = vector.load %arg13[%c0_70, %c0_71, %c0_72] : memref<1x1x128xf32, #tpu.memory_space<vmem>>, vector<1x1x128xf32>
    %182 = vector.shape_cast %181 : vector<1x1x128xf32> to vector<1x128xf32>
    %183 = vector.shape_cast %180 : vector<1x128xf32> to vector<1x1x128xf32>
    tpu.vector_store %arg13[%c0_70, %c0_71, %c0_72], %183 {strides = array<i32>} : memref<1x1x128xf32, #tpu.memory_space<vmem>>, vector<1x1x128xf32>,
    return
  }
  func.func @transform_0(%arg0: i32) -> (i32, i32, i32) {
    %c0_i32 = arith.constant 0 : i32
    %c0_i32_0 = arith.constant 0 : i32
    %c0_i32_1 = arith.constant 0 : i32
    return %arg0, %c0_i32, %c0_i32_0 : i32, i32, i32
  }
  func.func @transform_1(%arg0: i32) -> (i32, i32) {
    %c0_i32 = arith.constant 0 : i32
    %c0_i32_0 = arith.constant 0 : i32
    %c0_i32_1 = arith.constant 0 : i32
    return %c0_i32, %c0_i32_0 : i32, i32
  }
  func.func @transform_2(%arg0: i32) -> (i32, i32) {
    %c0_i32 = arith.constant 0 : i32
    %c0_i32_0 = arith.constant 0 : i32
    %c0_i32_1 = arith.constant 0 : i32
    return %c0_i32, %c0_i32_0 : i32, i32
  }
  func.func @transform_3(%arg0: i32) -> (i32, i32) {
    %c0_i32 = arith.constant 0 : i32
    %c0_i32_0 = arith.constant 0 : i32
    %c0_i32_1 = arith.constant 0 : i32
    return %c0_i32, %c0_i32_0 : i32, i32
  }
  func.func @transform_4(%arg0: i32) -> (i32, i32) {
    %c0_i32 = arith.constant 0 : i32
    %c0_i32_0 = arith.constant 0 : i32
    %c0_i32_1 = arith.constant 0 : i32
    return %c0_i32, %c0_i32_0 : i32, i32
  }
  func.func @transform_5(%arg0: i32) -> (i32, i32) {
    %c0_i32 = arith.constant 0 : i32
    %c0_i32_0 = arith.constant 0 : i32
    %c0_i32_1 = arith.constant 0 : i32
    return %c0_i32, %c0_i32_0 : i32, i32
  }
  func.func @transform_6(%arg0: i32) -> (i32, i32) {
    %c0_i32 = arith.constant 0 : i32
    %c0_i32_0 = arith.constant 0 : i32
    %c0_i32_1 = arith.constant 0 : i32
    return %c0_i32, %c0_i32_0 : i32, i32
  }
  func.func @transform_7(%arg0: i32) -> (i32, i32) {
    %c0_i32 = arith.constant 0 : i32
    %c0_i32_0 = arith.constant 0 : i32
    %c0_i32_1 = arith.constant 0 : i32
    return %c0_i32, %c0_i32_0 : i32, i32
  }
  func.func @transform_8(%arg0: i32) -> (i32, i32) {
    %c0_i32 = arith.constant 0 : i32
    %c0_i32_0 = arith.constant 0 : i32
    %c0_i32_1 = arith.constant 0 : i32
    return %c0_i32, %c0_i32_0 : i32, i32
  }
  func.func @transform_9(%arg0: i32) -> (i32, i32) {
    %c0_i32 = arith.constant 0 : i32
    %c0_i32_0 = arith.constant 0 : i32
    %c0_i32_1 = arith.constant 0 : i32
    return %c0_i32, %c0_i32_0 : i32, i32
  }
  func.func @transform_10(%arg0: i32) -> (i32, i32, i32) {
    %c0_i32 = arith.constant 0 : i32
    %c0_i32_0 = arith.constant 0 : i32
    %c0_i32_1 = arith.constant 0 : i32
    return %arg0, %c0_i32, %c0_i32_0 : i32, i32, i32
  }
  func.func @transform_11(%arg0: i32) -> (i32, i32, i32) {
    %c0_i32 = arith.constant 0 : i32
    %c0_i32_0 = arith.constant 0 : i32
    %c0_i32_1 = arith.constant 0 : i32
    return %arg0, %c0_i32, %c0_i32_0 : i32, i32, i32
  }
  func.func @transform_12(%arg0: i32) -> (i32, i32, i32) {
    %c0_i32 = arith.constant 0 : i32
    %c0_i32_0 = arith.constant 0 : i32
    %c0_i32_1 = arith.constant 0 : i32
    return %arg0, %c0_i32, %c0_i32_0 : i32, i32, i32
  }
}

</mosaic_0001>

<llo_original>
// kernel: tpu_custom_call.1
$region0: #{tpu_custom_call.1}
  #allocation0 [shape = 'u32[]', space=smem, size = 0x4, offset = 0x4, fixed_abs, tag = 'smem constant byte address 0x4 - core index']
  #allocation1 [shape = 'u32[144,128]{1,0:T(1,128)}', space=vmem, size = 0x12000, scoped, tag = 'internal scratch']
  %s0 = inlined_call_operand.vmem [shape: bf16[2,784,9], index: 0, kind: input, shape index: {}]
  %s1 = inlined_call_operand.vmem [shape: bf16[9,8], index: 1, kind: input, shape index: {}]
  %s2 = inlined_call_operand.vmem [shape: f32[1,8], index: 2, kind: input, shape index: {}]
  %s3 = inlined_call_operand.vmem [shape: bf16[72,16], index: 3, kind: input, shape index: {}]
  %s4 = inlined_call_operand.vmem [shape: f32[1,16], index: 4, kind: input, shape index: {}]
  %s5 = inlined_call_operand.vmem [shape: f32[49,196], index: 5, kind: input, shape index: {}]
  %s6 = inlined_call_operand.vmem [shape: bf16[784,128], index: 6, kind: input, shape index: {}]
  %s7 = inlined_call_operand.vmem [shape: f32[1,128], index: 7, kind: input, shape index: {}]
  %s8 = inlined_call_operand.vmem [shape: bf16[128,128], index: 8, kind: input, shape index: {}]
  %s9 = inlined_call_operand.vmem [shape: f32[1,128], index: 9, kind: input, shape index: {}]
  %s10 = inlined_call_operand.vmem [shape: f32[2,196,8], index: 10, kind: output, shape index: {0}]
  %s11 = inlined_call_operand.vmem [shape: f32[2,49,16], index: 11, kind: output, shape index: {1}]
  %s12 = inlined_call_operand.hbm [shape: f32[2,1,128], index: 12, kind: output, shape index: {2}]
  %13 = xla_tuple %s10, %s11, %s12
  %s14 = sld [smem:[#allocation0]]
  $region89: #{tpu_custom_call.1} parent=0
    _
  %s16 = ssub.s32 1, %s14
  %s17 = scalar_select 0, %s16, %s14
  $region1: #{tpu_custom_call.1} parent=0
    #allocation2 [shape = 'u8[1024]{0}', space=vmem, size = 0x400, scoped, tag = 'output window, operand 2']
    #allocation3 [shape = 's32[2]{0}', space=sflag, size = 0x8, scoped, tag = 'scoped memory for tpu_custom_call.1']
    %18 = vsyncpa [#allocation3], 0
    %s19 = scalar_lea.sflag [#allocation3], 1
    %20 = vsyncpa %s19, 0
    loop: start=0, step=1, limit=4
    $region2: #{tpu_custom_call.1} parent=1 // loop_pre_header
      _
    $region3: #{tpu_custom_call.1} parent=1 // loop_header
      %s22 = sphi 0, %s26
      %p23 = scmp.ge.s32.totalorder %s22, 4
      %s32 = sphi 0, %s34
      %s35 = sphi 0, %s32
      %s36 = sphi 0, %s35
      %s52 = sphi 0, %s36
      %s56 = sphi 0, %s56
      %s58 = sphi 0, %s56
      %s59 = sphi 0, %s58
      %s73 = sphi 0, %s59
      %s77 = sphi 0, %s77
      %s79 = sphi 0, %s77
      %s80 = sphi 0, %s79
      %s94 = sphi 0, %s80
      %s98 = sphi 0, %s98
      %s100 = sphi 0, %s98
      %s101 = sphi 0, %s100
      %s115 = sphi 0, %s101
      %s119 = sphi 0, %s119
      %s121 = sphi 0, %s119
      %s122 = sphi 0, %s121
      %s136 = sphi 0, %s122
      %s140 = sphi 0, %s140
      %s142 = sphi 0, %s140
      %s143 = sphi 0, %s142
      %s157 = sphi 0, %s143
      %s161 = sphi 0, %s161
      %s163 = sphi 0, %s161
      %s164 = sphi 0, %s163
      %s178 = sphi 0, %s164
      %s182 = sphi 0, %s182
      %s184 = sphi 0, %s182
      %s185 = sphi 0, %s184
      %s199 = sphi 0, %s185
      %s203 = sphi 0, %s203
      %s205 = sphi 0, %s203
      %s206 = sphi 0, %s205
      %s220 = sphi 0, %s206
      %s224 = sphi 0, %s224
      %s226 = sphi 0, %s224
      %s227 = sphi 0, %s226
      %s241 = sphi 0, %s227
      %s247 = sphi 0, %s249
      %s250 = sphi 0, %s247
      %s251 = sphi 0, %s250
      %s267 = sphi 0, %s251
      %s273 = sphi 0, %s275
      %s276 = sphi 0, %s273
      %s277 = sphi 0, %s276
      %s293 = sphi 0, %s277
      %s299 = sphi 0, %s301
      %s302 = sphi 0, %s299
      %s303 = sphi 0, %s302
      %s319 = sphi 0, %s303
    $region4: #{tpu_custom_call.1} parent=1 // loop_header_branch
      %25 = sbr.rel (%p23) target = $region8
    $region5: #{tpu_custom_call.1} parent=1 // loop_body
      %s27 = ssub.s32 %s22, 1
      %s28 = ssub.s32 %s22, 2
      %s29 = sadd.s32 %s22, 1
      %s30 = ssub.s32 %s22, %s29
      %p31 = scmp.eq.s32.totalorder %s30, 0
      %s33 = sadd.s32 %s32, 1
      %s34 = scalar_select %p31, %s32, %s33
      %p37 = pneg %p31
      %p38 = scmp.eq.s32.totalorder %s22, 1
      %p39 = por %p37, %p38
      %p40 = scmp.ne.s32.totalorder %s32, %s35
      %p41 = scmp.eq.s32.totalorder %s22, 0
      %p42 = por %p40, %p41
      %p43 = scmp.ne.s32.totalorder %s32, %s35
      %p44 = scmp.eq.s32.totalorder %s27, 1
      %p45 = por %p43, %p44
      %p46 = scmp.ne.s32.totalorder %s35, %s36
      %p47 = scmp.eq.s32.totalorder %s27, 0
      %p48 = por %p46, %p47
      %p49 = scmp.ne.s32.totalorder %s35, %s36
      %p50 = scmp.eq.s32.totalorder %s28, 1
      %p51 = por %p49, %p50
      %p53 = scmp.ne.s32.totalorder %s36, %s52
      %p54 = scmp.eq.s32.totalorder %s28, 0
      %p55 = por %p53, %p54
      %s57 = sadd.s32 %s56, 1
      %p60 = scmp.eq.s32.totalorder %s22, 1
      %p61 = scmp.ne.s32.totalorder %s56, %s58
      %p62 = scmp.eq.s32.totalorder %s22, 0
      %p63 = por %p61, %p62
      %p64 = scmp.ne.s32.totalorder %s56, %s58
      %p65 = scmp.eq.s32.totalorder %s27, 1
      %p66 = por %p64, %p65
      %p67 = scmp.ne.s32.totalorder %s58, %s59
      %p68 = scmp.eq.s32.totalorder %s27, 0
      %p69 = por %p67, %p68
      %p70 = scmp.ne.s32.totalorder %s58, %s59
      %p71 = scmp.eq.s32.totalorder %s28, 1
      %p72 = por %p70, %p71
      %p74 = scmp.ne.s32.totalorder %s59, %s73
      %p75 = scmp.eq.s32.totalorder %s28, 0
      %p76 = por %p74, %p75
      %s78 = sadd.s32 %s77, 1
      %p81 = scmp.eq.s32.totalorder %s22, 1
      %p82 = scmp.ne.s32.totalorder %s77, %s79
      %p83 = scmp.eq.s32.totalorder %s22, 0
      %p84 = por %p82, %p83
      %p85 = scmp.ne.s32.totalorder %s77, %s79
      %p86 = scmp.eq.s32.totalorder %s27, 1
      %p87 = por %p85, %p86
      %p88 = scmp.ne.s32.totalorder %s79, %s80
      %p89 = scmp.eq.s32.totalorder %s27, 0
      %p90 = por %p88, %p89
      %p91 = scmp.ne.s32.totalorder %s79, %s80
      %p92 = scmp.eq.s32.totalorder %s28, 1
      %p93 = por %p91, %p92
      %p95 = scmp.ne.s32.totalorder %s80, %s94
      %p96 = scmp.eq.s32.totalorder %s28, 0
      %p97 = por %p95, %p96
      %s99 = sadd.s32 %s98, 1
      %p102 = scmp.eq.s32.totalorder %s22, 1
      %p103 = scmp.ne.s32.totalorder %s98, %s100
      %p104 = scmp.eq.s32.totalorder %s22, 0
      %p105 = por %p103, %p104
      %p106 = scmp.ne.s32.totalorder %s98, %s100
      %p107 = scmp.eq.s32.totalorder %s27, 1
      %p108 = por %p106, %p107
      %p109 = scmp.ne.s32.totalorder %s100, %s101
      %p110 = scmp.eq.s32.totalorder %s27, 0
      %p111 = por %p109, %p110
      %p112 = scmp.ne.s32.totalorder %s100, %s101
      %p113 = scmp.eq.s32.totalorder %s28, 1
      %p114 = por %p112, %p113
      %p116 = scmp.ne.s32.totalorder %s101, %s115
      %p117 = scmp.eq.s32.totalorder %s28, 0
      %p118 = por %p116, %p117
      %s120 = sadd.s32 %s119, 1
      %p123 = scmp.eq.s32.totalorder %s22, 1
      %p124 = scmp.ne.s32.totalorder %s119, %s121
      %p125 = scmp.eq.s32.totalorder %s22, 0
      %p126 = por %p124, %p125
      %p127 = scmp.ne.s32.totalorder %s119, %s121
      %p128 = scmp.eq.s32.totalorder %s27, 1
      %p129 = por %p127, %p128
      %p130 = scmp.ne.s32.totalorder %s121, %s122
      %p131 = scmp.eq.s32.totalorder %s27, 0
      %p132 = por %p130, %p131
      %p133 = scmp.ne.s32.totalorder %s121, %s122
      %p134 = scmp.eq.s32.totalorder %s28, 1
      %p135 = por %p133, %p134
      %p137 = scmp.ne.s32.totalorder %s122, %s136
      %p138 = scmp.eq.s32.totalorder %s28, 0
      %p139 = por %p137, %p138
      %s141 = sadd.s32 %s140, 1
      %p144 = scmp.eq.s32.totalorder %s22, 1
      %p145 = scmp.ne.s32.totalorder %s140, %s142
      %p146 = scmp.eq.s32.totalorder %s22, 0
      %p147 = por %p145, %p146
      %p148 = scmp.ne.s32.totalorder %s140, %s142
      %p149 = scmp.eq.s32.totalorder %s27, 1
      %p150 = por %p148, %p149
      %p151 = scmp.ne.s32.totalorder %s142, %s143
      %p152 = scmp.eq.s32.totalorder %s27, 0
      %p153 = por %p151, %p152
      %p154 = scmp.ne.s32.totalorder %s142, %s143
      %p155 = scmp.eq.s32.totalorder %s28, 1
      %p156 = por %p154, %p155
      %p158 = scmp.ne.s32.totalorder %s143, %s157
      %p159 = scmp.eq.s32.totalorder %s28, 0
      %p160 = por %p158, %p159
      %s162 = sadd.s32 %s161, 1
      %p165 = scmp.eq.s32.totalorder %s22, 1
      %p166 = scmp.ne.s32.totalorder %s161, %s163
      %p167 = scmp.eq.s32.totalorder %s22, 0
      %p168 = por %p166, %p167
      %p169 = scmp.ne.s32.totalorder %s161, %s163
      %p170 = scmp.eq.s32.totalorder %s27, 1
      %p171 = por %p169, %p170
      %p172 = scmp.ne.s32.totalorder %s163, %s164
      %p173 = scmp.eq.s32.totalorder %s27, 0
      %p174 = por %p172, %p173
      %p175 = scmp.ne.s32.totalorder %s163, %s164
      %p176 = scmp.eq.s32.totalorder %s28, 1
      %p177 = por %p175, %p176
      %p179 = scmp.ne.s32.totalorder %s164, %s178
      %p180 = scmp.eq.s32.totalorder %s28, 0
      %p181 = por %p179, %p180
      %s183 = sadd.s32 %s182, 1
      %p186 = scmp.eq.s32.totalorder %s22, 1
      %p187 = scmp.ne.s32.totalorder %s182, %s184
      %p188 = scmp.eq.s32.totalorder %s22, 0
      %p189 = por %p187, %p188
      %p190 = scmp.ne.s32.totalorder %s182, %s184
      %p191 = scmp.eq.s32.totalorder %s27, 1
      %p192 = por %p190, %p191
      %p193 = scmp.ne.s32.totalorder %s184, %s185
      %p194 = scmp.eq.s32.totalorder %s27, 0
      %p195 = por %p193, %p194
      %p196 = scmp.ne.s32.totalorder %s184, %s185
      %p197 = scmp.eq.s32.totalorder %s28, 1
      %p198 = por %p196, %p197
      %p200 = scmp.ne.s32.totalorder %s185, %s199
      %p201 = scmp.eq.s32.totalorder %s28, 0
      %p202 = por %p200, %p201
      %s204 = sadd.s32 %s203, 1
      %p207 = scmp.eq.s32.totalorder %s22, 1
      %p208 = scmp.ne.s32.totalorder %s203, %s205
      %p209 = scmp.eq.s32.totalorder %s22, 0
      %p210 = por %p208, %p209
      %p211 = scmp.ne.s32.totalorder %s203, %s205
      %p212 = scmp.eq.s32.totalorder %s27, 1
      %p213 = por %p211, %p212
      %p214 = scmp.ne.s32.totalorder %s205, %s206
      %p215 = scmp.eq.s32.totalorder %s27, 0
      %p216 = por %p214, %p215
      %p217 = scmp.ne.s32.totalorder %s205, %s206
      %p218 = scmp.eq.s32.totalorder %s28, 1
      %p219 = por %p217, %p218
      %p221 = scmp.ne.s32.totalorder %s206, %s220
      %p222 = scmp.eq.s32.totalorder %s28, 0
      %p223 = por %p221, %p222
      %s225 = sadd.s32 %s224, 1
      %p228 = scmp.eq.s32.totalorder %s22, 1
      %p229 = scmp.ne.s32.totalorder %s224, %s226
      %p230 = scmp.eq.s32.totalorder %s22, 0
      %p231 = por %p229, %p230
      %p232 = scmp.ne.s32.totalorder %s224, %s226
      %p233 = scmp.eq.s32.totalorder %s27, 1
      %p234 = por %p232, %p233
      %p235 = scmp.ne.s32.totalorder %s226, %s227
      %p236 = scmp.eq.s32.totalorder %s27, 0
      %p237 = por %p235, %p236
      %p238 = scmp.ne.s32.totalorder %s226, %s227
      %p239 = scmp.eq.s32.totalorder %s28, 1
      %p240 = por %p238, %p239
      %p242 = scmp.ne.s32.totalorder %s227, %s241
      %p243 = scmp.eq.s32.totalorder %s28, 0
      %p244 = por %p242, %p243
      %s245 = ssub.s32 %s22, %s29
      %p246 = scmp.eq.s32.totalorder %s245, 0
      %s248 = sadd.s32 %s247, 1
      %s249 = scalar_select %p246, %s247, %s248
      %p252 = pneg %p246
      %p253 = scmp.eq.s32.totalorder %s22, 1
      %p254 = por %p252, %p253
      %p255 = scmp.ne.s32.totalorder %s247, %s250
      %p256 = scmp.eq.s32.totalorder %s22, 0
      %p257 = por %p255, %p256
      %p258 = scmp.ne.s32.totalorder %s247, %s250
      %p259 = scmp.eq.s32.totalorder %s27, 1
      %p260 = por %p258, %p259
      %p261 = scmp.ne.s32.totalorder %s250, %s251
      %p262 = scmp.eq.s32.totalorder %s27, 0
      %p263 = por %p261, %p262
      %p264 = scmp.ne.s32.totalorder %s250, %s251
      %p265 = scmp.eq.s32.totalorder %s28, 1
      %p266 = por %p264, %p265
      %p268 = scmp.ne.s32.totalorder %s251, %s267
      %p269 = scmp.eq.s32.totalorder %s28, 0
      %p270 = por %p268, %p269
      %s271 = ssub.s32 %s22, %s29
      %p272 = scmp.eq.s32.totalorder %s271, 0
      %s274 = sadd.s32 %s273, 1
      %s275 = scalar_select %p272, %s273, %s274
      %p278 = pneg %p272
      %p279 = scmp.eq.s32.totalorder %s22, 1
      %p280 = por %p278, %p279
      %p281 = scmp.ne.s32.totalorder %s273, %s276
      %p282 = scmp.eq.s32.totalorder %s22, 0
      %p283 = por %p281, %p282
      %p284 = scmp.ne.s32.totalorder %s273, %s276
      %p285 = scmp.eq.s32.totalorder %s27, 1
      %p286 = por %p284, %p285
      %p287 = scmp.ne.s32.totalorder %s276, %s277
      %p288 = scmp.eq.s32.totalorder %s27, 0
      %p289 = por %p287, %p288
      %p290 = scmp.ne.s32.totalorder %s276, %s277
      %p291 = scmp.eq.s32.totalorder %s28, 1
      %p292 = por %p290, %p291
      %p294 = scmp.ne.s32.totalorder %s277, %s293
      %p295 = scmp.eq.s32.totalorder %s28, 0
      %p296 = por %p294, %p295
      %s297 = ssub.s32 %s22, %s29
      %p298 = scmp.eq.s32.totalorder %s297, 0
      %s300 = sadd.s32 %s299, 1
      %s301 = scalar_select %p298, %s299, %s300
      %p304 = pneg %p298
      %p305 = scmp.eq.s32.totalorder %s22, 1
      %p306 = por %p304, %p305
      %p307 = scmp.ne.s32.totalorder %s299, %s302
      %p308 = scmp.eq.s32.totalorder %s22, 0
      %p309 = por %p307, %p308
      %p310 = scmp.ne.s32.totalorder %s299, %s302
      %p311 = scmp.eq.s32.totalorder %s27, 1
      %p312 = por %p310, %p311
      %p313 = scmp.ne.s32.totalorder %s302, %s303
      %p314 = scmp.eq.s32.totalorder %s27, 0
      %p315 = por %p313, %p314
      %p316 = scmp.ne.s32.totalorder %s302, %s303
      %p317 = scmp.eq.s32.totalorder %s28, 1
      %p318 = por %p316, %p317
      %p320 = scmp.ne.s32.totalorder %s303, %s319
      %p321 = scmp.eq.s32.totalorder %s28, 0
      %p322 = por %p320, %p321
      %p323 = scmp.le.s32.totalorder 1, %s22
      %p324 = scmp.lt.s32.totalorder %s22, 3
      %p325 = pnand %p323, %p324
      %p326 = pneg %p325
      // Predicated region
      $region9: #{tpu_custom_call.1} parent=5 // pred_check
        _
      $region10: #{tpu_custom_call.1} parent=5 // pred_check_branch
        %328 = sbr.rel (%p325) target = $region12
      $region11: #{tpu_custom_call.1} parent=5 // pred_region
        %s329 = ssub.s32 %s22, 1
        // Predicated region
        $region13: #{tpu_custom_call.1} parent=11 // pred_check
          %p330 = pneg %p69
        $region14: #{tpu_custom_call.1} parent=11 // pred_check_branch
          %332 = sbr.rel (%p330) target = $region16
        $region15: #{tpu_custom_call.1} parent=11 // pred_region
          _
        $region16: #{tpu_custom_call.1} parent=11 // pred_fallthru
          _
        // Predicated region
        $region17: #{tpu_custom_call.1} parent=11 // pred_check
          %p333 = pneg %p90
        $region18: #{tpu_custom_call.1} parent=11 // pred_check_branch
          %335 = sbr.rel (%p333) target = $region20
        $region19: #{tpu_custom_call.1} parent=11 // pred_region
          _
        $region20: #{tpu_custom_call.1} parent=11 // pred_fallthru
          _
        // Predicated region
        $region21: #{tpu_custom_call.1} parent=11 // pred_check
          %p336 = pneg %p111
        $region22: #{tpu_custom_call.1} parent=11 // pred_check_branch
          %338 = sbr.rel (%p336) target = $region24
        $region23: #{tpu_custom_call.1} parent=11 // pred_region
          _
        $region24: #{tpu_custom_call.1} parent=11 // pred_fallthru
          _
        // Predicated region
        $region25: #{tpu_custom_call.1} parent=11 // pred_check
          %p339 = pneg %p132
        $region26: #{tpu_custom_call.1} parent=11 // pred_check_branch
          %341 = sbr.rel (%p339) target = $region28
        $region27: #{tpu_custom_call.1} parent=11 // pred_region
          _
        $region28: #{tpu_custom_call.1} parent=11 // pred_fallthru
          _
        // Predicated region
        $region29: #{tpu_custom_call.1} parent=11 // pred_check
          %p342 = pneg %p153
        $region30: #{tpu_custom_call.1} parent=11 // pred_check_branch
          %344 = sbr.rel (%p342) target = $region32
        $region31: #{tpu_custom_call.1} parent=11 // pred_region
          _
        $region32: #{tpu_custom_call.1} parent=11 // pred_fallthru
          _
        // Predicated region
        $region33: #{tpu_custom_call.1} parent=11 // pred_check
          %p345 = pneg %p174
        $region34: #{tpu_custom_call.1} parent=11 // pred_check_branch
          %347 = sbr.rel (%p345) target = $region36
        $region35: #{tpu_custom_call.1} parent=11 // pred_region
          _
        $region36: #{tpu_custom_call.1} parent=11 // pred_fallthru
          _
        // Predicated region
        $region37: #{tpu_custom_call.1} parent=11 // pred_check
          %p348 = pneg %p195
        $region38: #{tpu_custom_call.1} parent=11 // pred_check_branch
          %350 = sbr.rel (%p348) target = $region40
        $region39: #{tpu_custom_call.1} parent=11 // pred_region
          _
        $region40: #{tpu_custom_call.1} parent=11 // pred_fallthru
          _
        // Predicated region
        $region41: #{tpu_custom_call.1} parent=11 // pred_check
          %p351 = pneg %p216
        $region42: #{tpu_custom_call.1} parent=11 // pred_check_branch
          %353 = sbr.rel (%p351) target = $region44
        $region43: #{tpu_custom_call.1} parent=11 // pred_region
          _
        $region44: #{tpu_custom_call.1} parent=11 // pred_fallthru
          _
        // Predicated region
        $region45: #{tpu_custom_call.1} parent=11 // pred_check
          %p354 = pneg %p237
        $region46: #{tpu_custom_call.1} parent=11 // pred_check_branch
          %356 = sbr.rel (%p354) target = $region48
        $region47: #{tpu_custom_call.1} parent=11 // pred_region
          _
        $region48: #{tpu_custom_call.1} parent=11 // pred_fallthru
          _
      $region12: #{tpu_custom_call.1} parent=5 // pred_fallthru
        _
      %p357 = scmp.lt.s32.totalorder %s22, 2
      // Predicated region
      $region49: #{tpu_custom_call.1} parent=5 // pred_check
        %p358 = pneg %p357
      $region50: #{tpu_custom_call.1} parent=5 // pred_check_branch
        %360 = sbr.rel (%p358) target = $region52
      $region51: #{tpu_custom_call.1} parent=5 // pred_region
        // Predicated region
        $region53: #{tpu_custom_call.1} parent=51 // pred_check
          %p361 = pneg %p42
        $region54: #{tpu_custom_call.1} parent=51 // pred_check_branch
          %363 = sbr.rel (%p361) target = $region56
        $region55: #{tpu_custom_call.1} parent=51 // pred_region
          %p364 = scmp.lt.s32.totalorder %s22, 1
          %s365 = scalar_select %p364, %s22, 1
          %s366 = smul.addr %s365, 98
          %s367 = smul.addr %s366, 4
          %s368 = scalar_lea.vmem %s0, %s367
        $region56: #{tpu_custom_call.1} parent=51 // pred_fallthru
          _
      $region52: #{tpu_custom_call.1} parent=5 // pred_fallthru
        _
      %p369 = scmp.le.s32.totalorder 1, %s22
      %p370 = scmp.lt.s32.totalorder %s22, 3
      %p371 = pnand %p369, %p370
      %p372 = pneg %p371
      // Predicated region
      $region57: #{tpu_custom_call.1} parent=5 // pred_check
        _
      $region58: #{tpu_custom_call.1} parent=5 // pred_check_branch
        %374 = sbr.rel (%p371) target = $region60
      $region59: #{tpu_custom_call.1} parent=5 // pred_region
        %s375 = ssub.s32 %s22, 1
        %p376 = scmp.lt.s32.totalorder %s27, 1
        %s377 = scalar_select %p376, %s27, 1
        %s378 = smul.addr %s377, 98
        %s379 = smul.addr %s378, 4
        %s380 = scalar_lea.vmem %s0, %s379
        %p381 = pneg %p48
        %p382 = pneg %p45
        %p383 = pneg %p69
        %p384 = pneg %p66
        %p385 = pneg %p90
        %p386 = pneg %p87
        %p387 = pneg %p111
        %p388 = pneg %p108
        %p389 = pneg %p132
        %p390 = pneg %p129
        %p391 = pneg %p153
        %p392 = pneg %p150
        %p393 = pneg %p174
        %p394 = pneg %p171
        %p395 = pneg %p195
        %p396 = pneg %p192
        %p397 = pneg %p216
        %p398 = pneg %p213
        %p399 = pneg %p237
        %p400 = pneg %p234
        %p401 = pneg %p263
        %p402 = pneg %p260
        %p403 = scmp.lt.s32.totalorder %s27, 1
        %s404 = scalar_select %p403, %s27, 1
        %s405 = smul.addr %s404, 25
        %s406 = smul.addr %s405, 8
        %s407 = scalar_lea.vmem %s10, %s406
        %p408 = pneg %p289
        %p409 = pneg %p286
        %p410 = scmp.lt.s32.totalorder %s27, 1
        %s411 = scalar_select %p410, %s27, 1
        %s412 = smul.addr %s411, 7
        %s413 = smul.addr %s412, 8
        %s414 = scalar_lea.vmem %s11, %s413
        %p415 = pneg %p315
        %p416 = pneg %p312
        %s417 = sand.u32 %s302, 1
        %s418 = scalar_lea.sflag [#allocation3], %s417
        %s419 = sand.u32 %s302, 1
        %s420 = scalar_lea.vmem [#allocation2], %s419
        %p421 = scmp.lt.s32.totalorder %s27, 1
        %s422 = scalar_select %p421, %s27, 1
        %s423 = smul.addr %s422, 98
        %s424 = smul.addr %s423, 4
        %s425 = scalar_lea.vmem %s0, %s424
        %p426 = scmp.lt.s32.totalorder %s27, 1
        %s427 = scalar_select %p426, %s27, 1
        %s428 = smul.addr %s427, 25
        %s429 = smul.addr %s428, 8
        %s430 = scalar_lea.vmem %s10, %s429
        %p431 = scmp.lt.s32.totalorder %s27, 1
        %s432 = scalar_select %p431, %s27, 1
        %s433 = smul.addr %s432, 7
        %s434 = smul.addr %s433, 8
        %s435 = scalar_lea.vmem %s11, %s434
        %v439 = vld [vmem:[%s425] sm:$0xf]
        %v440 = vld [vmem:[%s425 + $0x4] sm:$0xf]
        %v441 = vld [vmem:[%s425 + $0x8] sm:$0xf]
        %v442 = vld [vmem:[%s425 + $0xc] sm:$0xf]
        %v443 = vld [vmem:[%s425 + $0x10] sm:$0xf]
        %v444 = vld [vmem:[%s425 + $0x14] sm:$0xf]
        %v445 = vld [vmem:[%s425 + $0x18] sm:$0xf]
        %v446 = vld [vmem:[%s425 + $0x1c] sm:$0xf]
        %v447 = vld [vmem:[%s425 + $0x20] sm:$0xf]
        %v448 = vld [vmem:[%s425 + $0x24] sm:$0xf]
        %v449 = vld [vmem:[%s425 + $0x28] sm:$0xf]
        %v450 = vld [vmem:[%s425 + $0x2c] sm:$0xf]
        %v451 = vld [vmem:[%s425 + $0x30] sm:$0xf]
        %v452 = vld [vmem:[%s425 + $0x34] sm:$0xf]
        %v453 = vld [vmem:[%s425 + $0x38] sm:$0xf]
        %v454 = vld [vmem:[%s425 + $0x3c] sm:$0xf]
        %v455 = vld [vmem:[%s425 + $0x40] sm:$0xf]
        %v456 = vld [vmem:[%s425 + $0x44] sm:$0xf]
        %v457 = vld [vmem:[%s425 + $0x48] sm:$0xf]
        %v458 = vld [vmem:[%s425 + $0x4c] sm:$0xf]
        %v459 = vld [vmem:[%s425 + $0x50] sm:$0xf]
        %v460 = vld [vmem:[%s425 + $0x54] sm:$0xf]
        %v461 = vld [vmem:[%s425 + $0x58] sm:$0xf]
        %v462 = vld [vmem:[%s425 + $0x5c] sm:$0xf]
        %v463 = vld [vmem:[%s425 + $0x60] sm:$0x3]
        %v464 = vld [vmem:[%s1] sm:$0xf]
        %v465 = vld [vmem:[%s1 + $0x4] sm:$0x1]
        %v466 = vld [vmem:[%s2] sm:$0x1]
        %v468 = vlaneseq
        %v469 = vshrl.u32 %v468, 7
        %v470 = vsub.s32 0, %v469
        %v471 = vrot.slane %v466, %v470
        %v498 = vunpack.c.l.b16 %v439
        %v499 = vunpack.c.l.b16 %v440
        %v500 = vunpack.c.l.b16 %v441
        %v501 = vunpack.c.l.b16 %v442
        %v502 = vunpack.c.l.b16 %v443
        %v503 = vunpack.c.l.b16 %v444
        %v504 = vunpack.c.l.b16 %v445
        %v505 = vunpack.c.l.b16 %v446
        %v506 = vunpack.c.l.b16 %v447
        %v507 = vunpack.c.l.b16 %v448
        %v508 = vunpack.c.l.b16 %v449
        %v509 = vunpack.c.l.b16 %v450
        %v510 = vunpack.c.l.b16 %v451
        %v511 = vunpack.c.l.b16 %v452
        %v512 = vunpack.c.l.b16 %v453
        %v513 = vunpack.c.l.b16 %v454
        %v514 = vunpack.c.l.b16 %v455
        %v515 = vunpack.c.l.b16 %v456
        %v516 = vunpack.c.l.b16 %v457
        %v517 = vunpack.c.l.b16 %v458
        %v518 = vunpack.c.l.b16 %v459
        %v519 = vunpack.c.l.b16 %v460
        %v520 = vunpack.c.l.b16 %v461
        %v521 = vunpack.c.l.b16 %v462
        %v522 = vunpack.c.l.b16 %v463
        %v523 = vpack.c.b16 %v499, %v498
        %v524 = vpack.c.b16 %v501, %v500
        %v525 = vpack.c.b16 %v503, %v502
        %v526 = vpack.c.b16 %v505, %v504
        %v527 = vpack.c.b16 %v507, %v506
        %v528 = vpack.c.b16 %v509, %v508
        %v529 = vpack.c.b16 %v511, %v510
        %v530 = vpack.c.b16 %v513, %v512
        %v531 = vpack.c.b16 %v515, %v514
        %v532 = vpack.c.b16 %v517, %v516
        %v533 = vpack.c.b16 %v519, %v518
        %v534 = vpack.c.b16 %v521, %v520
        %v535 = vpack.c.b16 %v522, %v522
        %v538 = vunpack.c.l.b16 %v464
        %v539 = vunpack.c.l.b16 %v465
        %v540 = vpack.c.b16 %v539, %v538
        %vm541 = vcmask 72704
        %v543 = vsel %vm541, %v523, 0
        %v546 = vsel %vm541, %v524, 0
        %v549 = vsel %vm541, %v525, 0
        %v552 = vsel %vm541, %v526, 0
        %v555 = vsel %vm541, %v527, 0
        %v558 = vsel %vm541, %v528, 0
        %v561 = vsel %vm541, %v529, 0
        %v564 = vsel %vm541, %v530, 0
        %v567 = vsel %vm541, %v531, 0
        %v570 = vsel %vm541, %v532, 0
        %v573 = vsel %vm541, %v533, 0
        %v576 = vsel %vm541, %v534, 0
        %v579 = vsel %vm541, %v535, 0
        %vm581 = vcmask 1043456
        %vm582 = vcmask 1044480
        %v583 = vsel %vm581, 4294967295, 65535
        %v584 = vsel %vm582, %v583, 0
        %v586 = vand.u32 %v540, %v584
        %588 = vmatprep.subr.bf16.mxu0 0
        %589 = vmatpush1.bf16.msra.mxu0 %v586
        %590 = vmatprep.subr.bf16.mxu0 0
        %591 = vmatpush1.bf16.msra.mxu0 0
        %592 = vmatprep.subr.bf16.mxu0 0
        %593 = vmatpush1.bf16.msra.mxu0 0
        %594 = vmatprep.subr.bf16.mxu0 0
        %595 = vmatpush1.bf16.msra.mxu0 0
        %596 = vmatprep.subr.bf16.mxu0 0
        %597 = vmatpush1.bf16.msra.mxu0 0
        %598 = vmatprep.subr.bf16.mxu0 0
        %599 = vmatpush1.bf16.msra.mxu0 0
        %600 = vmatprep.subr.bf16.mxu0 0
        %601 = vmatpush1.bf16.msra.mxu0 0
        %602 = vmatprep.subr.bf16.mxu0 0
        %603 = vmatpush1.bf16.msra.mxu0 0
        %604 = vmatprep.subr.bf16.mxu0 0
        %605 = vmatpush1.bf16.msra.mxu0 0
        %606 = vmatprep.subr.bf16.mxu0 0
        %607 = vmatpush1.bf16.msra.mxu0 0
        %608 = vmatprep.subr.bf16.mxu0 0
        %609 = vmatpush1.bf16.msra.mxu0 0
        %610 = vmatprep.subr.bf16.mxu0 0
        %611 = vmatpush1.bf16.msra.mxu0 0
        %612 = vmatprep.subr.bf16.mxu0 0
        %613 = vmatpush1.bf16.msra.mxu0 0
        %614 = vmatprep.subr.bf16.mxu0 0
        %615 = vmatpush1.bf16.msra.mxu0 0
        %616 = vmatprep.subr.bf16.mxu0 0
        %617 = vmatpush1.bf16.msra.mxu0 0
        %618 = vmatprep.subr.bf16.mxu0 0
        %619 = vmatpush1.bf16.msra.mxu0 0
        %620 = vmatprep.mubr.bf16.mxu0 0
        %621 = vmatmul.mubr.bf16.gmra.mrb[0].mxu0 %v543
        %v622 = vpop.f32.mrb[0].mxu0
        %v623 = vadd.f32 %v471, %v622
        %v624 = vpop.f32.mrb[0].mxu0
        %v625 = vpop.f32.mrb[0].mxu0
        %v626 = vadd.f32 %v471, %v625
        %v627 = vpop.f32.mrb[0].mxu0
        %628 = vmatprep.mubr.bf16.mxu0 0
        %629 = vmatmul.mubr.bf16.gmra.mrb[0].mxu0 %v546
        %v630 = vpop.f32.mrb[0].mxu0
        %v631 = vadd.f32 %v471, %v630
        %v632 = vpop.f32.mrb[0].mxu0
        %v633 = vpop.f32.mrb[0].mxu0
        %v634 = vadd.f32 %v471, %v633
        %v635 = vpop.f32.mrb[0].mxu0
        %636 = vmatprep.mubr.bf16.mxu0 0
        %637 = vmatmul.mubr.bf16.gmra.mrb[0].mxu0 %v549
        %v638 = vpop.f32.mrb[0].mxu0
        %v639 = vadd.f32 %v471, %v638
        %v640 = vpop.f32.mrb[0].mxu0
        %v641 = vpop.f32.mrb[0].mxu0
        %v642 = vadd.f32 %v471, %v641
        %v643 = vpop.f32.mrb[0].mxu0
        %644 = vmatprep.mubr.bf16.mxu0 0
        %645 = vmatmul.mubr.bf16.gmra.mrb[0].mxu0 %v552
        %v646 = vpop.f32.mrb[0].mxu0
        %v647 = vadd.f32 %v471, %v646
        %v648 = vpop.f32.mrb[0].mxu0
        %v649 = vpop.f32.mrb[0].mxu0
        %v650 = vadd.f32 %v471, %v649
        %v651 = vpop.f32.mrb[0].mxu0
        %652 = vmatprep.mubr.bf16.mxu0 0
        %653 = vmatmul.mubr.bf16.gmra.mrb[0].mxu0 %v555
        %v654 = vpop.f32.mrb[0].mxu0
        %v655 = vadd.f32 %v471, %v654
        %v656 = vpop.f32.mrb[0].mxu0
        %v657 = vpop.f32.mrb[0].mxu0
        %v658 = vadd.f32 %v471, %v657
        %v659 = vpop.f32.mrb[0].mxu0
        %660 = vmatprep.mubr.bf16.mxu0 0
        %661 = vmatmul.mubr.bf16.gmra.mrb[0].mxu0 %v558
        %v662 = vpop.f32.mrb[0].mxu0
        %v663 = vadd.f32 %v471, %v662
        %v664 = vpop.f32.mrb[0].mxu0
        %v665 = vpop.f32.mrb[0].mxu0
        %v666 = vadd.f32 %v471, %v665
        %v667 = vpop.f32.mrb[0].mxu0
        %668 = vmatprep.mubr.bf16.mxu0 0
        %669 = vmatmul.mubr.bf16.gmra.mrb[0].mxu0 %v561
        %v670 = vpop.f32.mrb[0].mxu0
        %v671 = vadd.f32 %v471, %v670
        %v672 = vpop.f32.mrb[0].mxu0
        %v673 = vpop.f32.mrb[0].mxu0
        %v674 = vadd.f32 %v471, %v673
        %v675 = vpop.f32.mrb[0].mxu0
        %676 = vmatprep.mubr.bf16.mxu0 0
        %677 = vmatmul.mubr.bf16.gmra.mrb[0].mxu0 %v564
        %v678 = vpop.f32.mrb[0].mxu0
        %v679 = vadd.f32 %v471, %v678
        %v680 = vpop.f32.mrb[0].mxu0
        %v681 = vpop.f32.mrb[0].mxu0
        %v682 = vadd.f32 %v471, %v681
        %v683 = vpop.f32.mrb[0].mxu0
        %684 = vmatprep.mubr.bf16.mxu0 0
        %685 = vmatmul.mubr.bf16.gmra.mrb[0].mxu0 %v567
        %v686 = vpop.f32.mrb[0].mxu0
        %v687 = vadd.f32 %v471, %v686
        %v688 = vpop.f32.mrb[0].mxu0
        %v689 = vpop.f32.mrb[0].mxu0
        %v690 = vadd.f32 %v471, %v689
        %v691 = vpop.f32.mrb[0].mxu0
        %692 = vmatprep.mubr.bf16.mxu0 0
        %693 = vmatmul.mubr.bf16.gmra.mrb[0].mxu0 %v570
        %v694 = vpop.f32.mrb[0].mxu0
        %v695 = vadd.f32 %v471, %v694
        %v696 = vpop.f32.mrb[0].mxu0
        %v697 = vpop.f32.mrb[0].mxu0
        %v698 = vadd.f32 %v471, %v697
        %v699 = vpop.f32.mrb[0].mxu0
        %700 = vmatprep.mubr.bf16.mxu0 0
        %701 = vmatmul.mubr.bf16.gmra.mrb[0].mxu0 %v573
        %v702 = vpop.f32.mrb[0].mxu0
        %v703 = vadd.f32 %v471, %v702
        %v704 = vpop.f32.mrb[0].mxu0
        %v705 = vpop.f32.mrb[0].mxu0
        %v706 = vadd.f32 %v471, %v705
        %v707 = vpop.f32.mrb[0].mxu0
        %708 = vmatprep.mubr.bf16.mxu0 0
        %709 = vmatmul.mubr.bf16.gmra.mrb[0].mxu0 %v576
        %v710 = vpop.f32.mrb[0].mxu0
        %v711 = vadd.f32 %v471, %v710
        %v712 = vpop.f32.mrb[0].mxu0
        %v713 = vpop.f32.mrb[0].mxu0
        %v714 = vadd.f32 %v471, %v713
        %v715 = vpop.f32.mrb[0].mxu0
        %716 = vmatprep.mubr.bf16.mxu0 0
        %717 = vmatmul.mubr.bf16.gmra.mrb[0].mxu0 %v579
        %v718 = vpop.f32.mrb[0].mxu0
        %v719 = vadd.f32 %v471, %v718
        %v720 = vpop.f32.mrb[0].mxu0
        %v721 = vpop.f32.mrb[0].mxu0
        %v722 = vpop.f32.mrb[0].mxu0
        %723 = vdwg.mxu0
        %v724 = vmax.f32 %v623, 0.0
        %v725 = vmax.f32 %v626, 0.0
        %v726 = vmax.f32 %v631, 0.0
        %v727 = vmax.f32 %v634, 0.0
        %v728 = vmax.f32 %v639, 0.0
        %v729 = vmax.f32 %v642, 0.0
        %v730 = vmax.f32 %v647, 0.0
        %v731 = vmax.f32 %v650, 0.0
        %v732 = vmax.f32 %v655, 0.0
        %v733 = vmax.f32 %v658, 0.0
        %v734 = vmax.f32 %v663, 0.0
        %v735 = vmax.f32 %v666, 0.0
        %v736 = vmax.f32 %v671, 0.0
        %v737 = vmax.f32 %v674, 0.0
        %v738 = vmax.f32 %v679, 0.0
        %v739 = vmax.f32 %v682, 0.0
        %v740 = vmax.f32 %v687, 0.0
        %v741 = vmax.f32 %v690, 0.0
        %v742 = vmax.f32 %v695, 0.0
        %v743 = vmax.f32 %v698, 0.0
        %v744 = vmax.f32 %v703, 0.0
        %v745 = vmax.f32 %v706, 0.0
        %v746 = vmax.f32 %v711, 0.0
        %v747 = vmax.f32 %v714, 0.0
        %v748 = vmax.f32 %v719, 0.0
        %v749 = vadd.f32 %v724, 0.0
        %v750 = vadd.f32 %v725, 0.0
        %v751 = vadd.f32 %v726, 0.0
        %v752 = vadd.f32 %v727, 0.0
        %v753 = vadd.f32 %v728, 0.0
        %v754 = vadd.f32 %v729, 0.0
        %v755 = vadd.f32 %v730, 0.0
        %v756 = vadd.f32 %v731, 0.0
        %v757 = vadd.f32 %v732, 0.0
        %v758 = vadd.f32 %v733, 0.0
        %v759 = vadd.f32 %v734, 0.0
        %v760 = vadd.f32 %v735, 0.0
        %v761 = vadd.f32 %v736, 0.0
        %v762 = vadd.f32 %v737, 0.0
        %v763 = vadd.f32 %v738, 0.0
        %v764 = vadd.f32 %v739, 0.0
        %v765 = vadd.f32 %v740, 0.0
        %v766 = vadd.f32 %v741, 0.0
        %v767 = vadd.f32 %v742, 0.0
        %v768 = vadd.f32 %v743, 0.0
        %v769 = vadd.f32 %v744, 0.0
        %v770 = vadd.f32 %v745, 0.0
        %v771 = vadd.f32 %v746, 0.0
        %v772 = vadd.f32 %v747, 0.0
        %v773 = vadd.f32 %v748, 0.0
        %v774 = vld [vmem:[%s425 + $0x60] sm:$0xc]
        %v775 = vld [vmem:[%s425 + $0x64] sm:$0xf]
        %v776 = vld [vmem:[%s425 + $0x68] sm:$0xf]
        %v777 = vld [vmem:[%s425 + $0x6c] sm:$0xf]
        %v778 = vld [vmem:[%s425 + $0x70] sm:$0xf]
        %v779 = vld [vmem:[%s425 + $0x74] sm:$0xf]
        %v780 = vld [vmem:[%s425 + $0x78] sm:$0xf]
        %v781 = vld [vmem:[%s425 + $0x7c] sm:$0xf]
        %v782 = vld [vmem:[%s425 + $0x80] sm:$0xf]
        %v783 = vld [vmem:[%s425 + $0x84] sm:$0xf]
        %v784 = vld [vmem:[%s425 + $0x88] sm:$0xf]
        %v785 = vld [vmem:[%s425 + $0x8c] sm:$0xf]
        %v786 = vld [vmem:[%s425 + $0x90] sm:$0xf]
        %v787 = vld [vmem:[%s425 + $0x94] sm:$0xf]
        %v788 = vld [vmem:[%s425 + $0x98] sm:$0xf]
        %v789 = vld [vmem:[%s425 + $0x9c] sm:$0xf]
        %v790 = vld [vmem:[%s425 + $0xa0] sm:$0xf]
        %v791 = vld [vmem:[%s425 + $0xa4] sm:$0xf]
        %v792 = vld [vmem:[%s425 + $0xa8] sm:$0xf]
        %v793 = vld [vmem:[%s425 + $0xac] sm:$0xf]
        %v794 = vld [vmem:[%s425 + $0xb0] sm:$0xf]
        %v795 = vld [vmem:[%s425 + $0xb4] sm:$0xf]
        %v796 = vld [vmem:[%s425 + $0xb8] sm:$0xf]
        %v797 = vld [vmem:[%s425 + $0xbc] sm:$0xf]
        %v798 = vld [vmem:[%s425 + $0xc0] sm:$0xf]
        %v824 = vunpack.c.l.b16 %v774
        %v825 = vunpack.c.l.b16 %v775
        %v826 = vunpack.c.l.b16 %v776
        %v827 = vunpack.c.l.b16 %v777
        %v828 = vunpack.c.l.b16 %v778
        %v829 = vunpack.c.l.b16 %v779
        %v830 = vunpack.c.l.b16 %v780
        %v831 = vunpack.c.l.b16 %v781
        %v832 = vunpack.c.l.b16 %v782
        %v833 = vunpack.c.l.b16 %v783
        %v834 = vunpack.c.l.b16 %v784
        %v835 = vunpack.c.l.b16 %v785
        %v836 = vunpack.c.l.b16 %v786
        %v837 = vunpack.c.l.b16 %v787
        %v838 = vunpack.c.l.b16 %v788
        %v839 = vunpack.c.l.b16 %v789
        %v840 = vunpack.c.l.b16 %v790
        %v841 = vunpack.c.l.b16 %v791
        %v842 = vunpack.c.l.b16 %v792
        %v843 = vunpack.c.l.b16 %v793
        %v844 = vunpack.c.l.b16 %v794
        %v845 = vunpack.c.l.b16 %v795
        %v846 = vunpack.c.l.b16 %v796
        %v847 = vunpack.c.l.b16 %v797
        %v848 = vunpack.c.l.b16 %v798
        %v849 = vpack.c.b16 %v825, %v824
        %v850 = vpack.c.b16 %v827, %v826
        %v851 = vpack.c.b16 %v829, %v828
        %v852 = vpack.c.b16 %v831, %v830
        %v853 = vpack.c.b16 %v833, %v832
        %v854 = vpack.c.b16 %v835, %v834
        %v855 = vpack.c.b16 %v837, %v836
        %v856 = vpack.c.b16 %v839, %v838
        %v857 = vpack.c.b16 %v841, %v840
        %v858 = vpack.c.b16 %v843, %v842
        %v859 = vpack.c.b16 %v845, %v844
        %v860 = vpack.c.b16 %v847, %v846
        %v861 = vpack.c.b16 %v848, %v848
        %vm862 = vcmask 1045504
        %v863 = vrot.slane %v849, 2
        %v864 = vrot.slane %v850, 2
        %v865 = vsel %vm862, %v863, %v864
        %v866 = vrot.slane %v851, 2
        %v867 = vsel %vm862, %v864, %v866
        %v868 = vrot.slane %v852, 2
        %v869 = vsel %vm862, %v866, %v868
        %v870 = vrot.slane %v853, 2
        %v871 = vsel %vm862, %v868, %v870
        %v872 = vrot.slane %v854, 2
        %v873 = vsel %vm862, %v870, %v872
        %v874 = vrot.slane %v855, 2
        %v875 = vsel %vm862, %v872, %v874
        %v876 = vrot.slane %v856, 2
        %v877 = vsel %vm862, %v874, %v876
        %v878 = vrot.slane %v857, 2
        %v879 = vsel %vm862, %v876, %v878
        %v880 = vrot.slane %v858, 2
        %v881 = vsel %vm862, %v878, %v880
        %v882 = vrot.slane %v859, 2
        %v883 = vsel %vm862, %v880, %v882
        %v884 = vrot.slane %v860, 2
        %v885 = vsel %vm862, %v882, %v884
        %v886 = vrot.slane %v861, 2
        %v887 = vsel %vm862, %v884, %v886
        %v889 = vsel %vm541, %v865, 0
        %v892 = vsel %vm541, %v867, 0
        %v895 = vsel %vm541, %v869, 0
        %v898 = vsel %vm541, %v871, 0
        %v901 = vsel %vm541, %v873, 0
        %v904 = vsel %vm541, %v875, 0
        %v907 = vsel %vm541, %v877, 0
        %v910 = vsel %vm541, %v879, 0
        %v913 = vsel %vm541, %v881, 0
        %v916 = vsel %vm541, %v883, 0
        %v919 = vsel %vm541, %v885, 0
        %v922 = vsel %vm541, %v887, 0
        %v925 = vsel %vm541, %v886, 0
        %927 = vmatprep.subr.bf16.mxu0 0
        %928 = vmatpush1.bf16.msra.mxu0 %v586
        %929 = vmatprep.subr.bf16.mxu0 0
        %930 = vmatpush1.bf16.msra.mxu0 0
        %931 = vmatprep.subr.bf16.mxu0 0
        %932 = vmatpush1.bf16.msra.mxu0 0
        %933 = vmatprep.subr.bf16.mxu0 0
        %934 = vmatpush1.bf16.msra.mxu0 0
        %935 = vmatprep.subr.bf16.mxu0 0
        %936 = vmatpush1.bf16.msra.mxu0 0
        %937 = vmatprep.subr.bf16.mxu0 0
        %938 = vmatpush1.bf16.msra.mxu0 0
        %939 = vmatprep.subr.bf16.mxu0 0
        %940 = vmatpush1.bf16.msra.mxu0 0
        %941 = vmatprep.subr.bf16.mxu0 0
        %942 = vmatpush1.bf16.msra.mxu0 0
        %943 = vmatprep.subr.bf16.mxu0 0
        %944 = vmatpush1.bf16.msra.mxu0 0
        %945 = vmatprep.subr.bf16.mxu0 0
        %946 = vmatpush1.bf16.msra.mxu0 0
        %947 = vmatprep.subr.bf16.mxu0 0
        %948 = vmatpush1.bf16.msra.mxu0 0
        %949 = vmatprep.subr.bf16.mxu0 0
        %950 = vmatpush1.bf16.msra.mxu0 0
        %951 = vmatprep.subr.bf16.mxu0 0
        %952 = vmatpush1.bf16.msra.mxu0 0
        %953 = vmatprep.subr.bf16.mxu0 0
        %954 = vmatpush1.bf16.msra.mxu0 0
        %955 = vmatprep.subr.bf16.mxu0 0
        %956 = vmatpush1.bf16.msra.mxu0 0
        %957 = vmatprep.subr.bf16.mxu0 0
        %958 = vmatpush1.bf16.msra.mxu0 0
        %959 = vmatprep.mubr.bf16.mxu0 0
        %960 = vmatmul.mubr.bf16.gmra.mrb[0].mxu0 %v889
        %v961 = vpop.f32.mrb[0].mxu0
        %v962 = vadd.f32 %v471, %v961
        %v963 = vpop.f32.mrb[0].mxu0
        %v964 = vpop.f32.mrb[0].mxu0
        %v965 = vadd.f32 %v471, %v964
        %v966 = vpop.f32.mrb[0].mxu0
        %967 = vmatprep.mubr.bf16.mxu0 0
        %968 = vmatmul.mubr.bf16.gmra.mrb[0].mxu0 %v892
        %v969 = vpop.f32.mrb[0].mxu0
        %v970 = vadd.f32 %v471, %v969
        %v971 = vpop.f32.mrb[0].mxu0
        %v972 = vpop.f32.mrb[0].mxu0
        %v973 = vadd.f32 %v471, %v972
        %v974 = vpop.f32.mrb[0].mxu0
        %975 = vmatprep.mubr.bf16.mxu0 0
        %976 = vmatmul.mubr.bf16.gmra.mrb[0].mxu0 %v895
        %v977 = vpop.f32.mrb[0].mxu0
        %v978 = vadd.f32 %v471, %v977
        %v979 = vpop.f32.mrb[0].mxu0
        %v980 = vpop.f32.mrb[0].mxu0
        %v981 = vadd.f32 %v471, %v980
        %v982 = vpop.f32.mrb[0].mxu0
        %983 = vmatprep.mubr.bf16.mxu0 0
        %984 = vmatmul.mubr.bf16.gmra.mrb[0].mxu0 %v898
        %v985 = vpop.f32.mrb[0].mxu0
        %v986 = vadd.f32 %v471, %v985
        %v987 = vpop.f32.mrb[0].mxu0
        %v988 = vpop.f32.mrb[0].mxu0
        %v989 = vadd.f32 %v471, %v988
        %v990 = vpop.f32.mrb[0].mxu0
        %991 = vmatprep.mubr.bf16.mxu0 0
        %992 = vmatmul.mubr.bf16.gmra.mrb[0].mxu0 %v901
        %v993 = vpop.f32.mrb[0].mxu0
        %v994 = vadd.f32 %v471, %v993
        %v995 = vpop.f32.mrb[0].mxu0
        %v996 = vpop.f32.mrb[0].mxu0
        %v997 = vadd.f32 %v471, %v996
        %v998 = vpop.f32.mrb[0].mxu0
        %999 = vmatprep.mubr.bf16.mxu0 0
        %1000 = vmatmul.mubr.bf16.gmra.mrb[0].mxu0 %v904
        %v1001 = vpop.f32.mrb[0].mxu0
        %v1002 = vadd.f32 %v471, %v1001
        %v1003 = vpop.f32.mrb[0].mxu0
        %v1004 = vpop.f32.mrb[0].mxu0
        %v1005 = vadd.f32 %v471, %v1004
        %v1006 = vpop.f32.mrb[0].mxu0
        %1007 = vmatprep.mubr.bf16.mxu0 0
        %1008 = vmatmul.mubr.bf16.gmra.mrb[0].mxu0 %v907
        %v1009 = vpop.f32.mrb[0].mxu0
        %v1010 = vadd.f32 %v471, %v1009
        %v1011 = vpop.f32.mrb[0].mxu0
        %v1012 = vpop.f32.mrb[0].mxu0
        %v1013 = vadd.f32 %v471, %v1012
        %v1014 = vpop.f32.mrb[0].mxu0
        %1015 = vmatprep.mubr.bf16.mxu0 0
        %1016 = vmatmul.mubr.bf16.gmra.mrb[0].mxu0 %v910
        %v1017 = vpop.f32.mrb[0].mxu0
        %v1018 = vadd.f32 %v471, %v1017
        %v1019 = vpop.f32.mrb[0].mxu0
        %v1020 = vpop.f32.mrb[0].mxu0
        %v1021 = vadd.f32 %v471, %v1020
        %v1022 = vpop.f32.mrb[0].mxu0
        %1023 = vmatprep.mubr.bf16.mxu0 0
        %1024 = vmatmul.mubr.bf16.gmra.mrb[0].mxu0 %v913
        %v1025 = vpop.f32.mrb[0].mxu0
        %v1026 = vadd.f32 %v471, %v1025
        %v1027 = vpop.f32.mrb[0].mxu0
        %v1028 = vpop.f32.mrb[0].mxu0
        %v1029 = vadd.f32 %v471, %v1028
        %v1030 = vpop.f32.mrb[0].mxu0
        %1031 = vmatprep.mubr.bf16.mxu0 0
        %1032 = vmatmul.mubr.bf16.gmra.mrb[0].mxu0 %v916
        %v1033 = vpop.f32.mrb[0].mxu0
        %v1034 = vadd.f32 %v471, %v1033
        %v1035 = vpop.f32.mrb[0].mxu0
        %v1036 = vpop.f32.mrb[0].mxu0
        %v1037 = vadd.f32 %v471, %v1036
        %v1038 = vpop.f32.mrb[0].mxu0
        %1039 = vmatprep.mubr.bf16.mxu0 0
        %1040 = vmatmul.mubr.bf16.gmra.mrb[0].mxu0 %v919
        %v1041 = vpop.f32.mrb[0].mxu0
        %v1042 = vadd.f32 %v471, %v1041
        %v1043 = vpop.f32.mrb[0].mxu0
        %v1044 = vpop.f32.mrb[0].mxu0
        %v1045 = vadd.f32 %v471, %v1044
        %v1046 = vpop.f32.mrb[0].mxu0
        %1047 = vmatprep.mubr.bf16.mxu0 0
        %1048 = vmatmul.mubr.bf16.gmra.mrb[0].mxu0 %v922
        %v1049 = vpop.f32.mrb[0].mxu0
        %v1050 = vadd.f32 %v471, %v1049
        %v1051 = vpop.f32.mrb[0].mxu0
        %v1052 = vpop.f32.mrb[0].mxu0
        %v1053 = vadd.f32 %v471, %v1052
        %v1054 = vpop.f32.mrb[0].mxu0
        %1055 = vmatprep.mubr.bf16.mxu0 0
        %1056 = vmatmul.mubr.bf16.gmra.mrb[0].mxu0 %v925
        %v1057 = vpop.f32.mrb[0].mxu0
        %v1058 = vadd.f32 %v471, %v1057
        %v1059 = vpop.f32.mrb[0].mxu0
        %v1060 = vpop.f32.mrb[0].mxu0
        %v1061 = vpop.f32.mrb[0].mxu0
        %1062 = vdwg.mxu0
        %v1063 = vmax.f32 %v962, 0.0
        %v1064 = vmax.f32 %v965, 0.0
        %v1065 = vmax.f32 %v970, 0.0
        %v1066 = vmax.f32 %v973, 0.0
        %v1067 = vmax.f32 %v978, 0.0
        %v1068 = vmax.f32 %v981, 0.0
        %v1069 = vmax.f32 %v986, 0.0
        %v1070 = vmax.f32 %v989, 0.0
        %v1071 = vmax.f32 %v994, 0.0
        %v1072 = vmax.f32 %v997, 0.0
        %v1073 = vmax.f32 %v1002, 0.0
        %v1074 = vmax.f32 %v1005, 0.0
        %v1075 = vmax.f32 %v1010, 0.0
        %v1076 = vmax.f32 %v1013, 0.0
        %v1077 = vmax.f32 %v1018, 0.0
        %v1078 = vmax.f32 %v1021, 0.0
        %v1079 = vmax.f32 %v1026, 0.0
        %v1080 = vmax.f32 %v1029, 0.0
        %v1081 = vmax.f32 %v1034, 0.0
        %v1082 = vmax.f32 %v1037, 0.0
        %v1083 = vmax.f32 %v1042, 0.0
        %v1084 = vmax.f32 %v1045, 0.0
        %v1085 = vmax.f32 %v1050, 0.0
        %v1086 = vmax.f32 %v1053, 0.0
        %v1087 = vmax.f32 %v1058, 0.0
        %v1088 = vadd.f32 %v749, %v1063
        %v1089 = vadd.f32 %v750, %v1064
        %v1090 = vadd.f32 %v751, %v1065
        %v1091 = vadd.f32 %v752, %v1066
        %v1092 = vadd.f32 %v753, %v1067
        %v1093 = vadd.f32 %v754, %v1068
        %v1094 = vadd.f32 %v755, %v1069
        %v1095 = vadd.f32 %v756, %v1070
        %v1096 = vadd.f32 %v757, %v1071
        %v1097 = vadd.f32 %v758, %v1072
        %v1098 = vadd.f32 %v759, %v1073
        %v1099 = vadd.f32 %v760, %v1074
        %v1100 = vadd.f32 %v761, %v1075
        %v1101 = vadd.f32 %v762, %v1076
        %v1102 = vadd.f32 %v763, %v1077
        %v1103 = vadd.f32 %v764, %v1078
        %v1104 = vadd.f32 %v765, %v1079
        %v1105 = vadd.f32 %v766, %v1080
        %v1106 = vadd.f32 %v767, %v1081
        %v1107 = vadd.f32 %v768, %v1082
        %v1108 = vadd.f32 %v769, %v1083
        %v1109 = vadd.f32 %v770, %v1084
        %v1110 = vadd.f32 %v771, %v1085
        %v1111 = vadd.f32 %v772, %v1086
        %v1112 = vadd.f32 %v773, %v1087
        %v1113 = vld [vmem:[%s425 + $0xc4] sm:$0xf]
        %v1114 = vld [vmem:[%s425 + $0xc8] sm:$0xf]
        %v1115 = vld [vmem:[%s425 + $0xcc] sm:$0xf]
        %v1116 = vld [vmem:[%s425 + $0xd0] sm:$0xf]
        %v1117 = vld [vmem:[%s425 + $0xd4] sm:$0xf]
        %v1118 = vld [vmem:[%s425 + $0xd8] sm:$0xf]
        %v1119 = vld [vmem:[%s425 + $0xdc] sm:$0xf]
        %v1120 = vld [vmem:[%s425 + $0xe0] sm:$0xf]
        %v1121 = vld [vmem:[%s425 + $0xe4] sm:$0xf]
        %v1122 = vld [vmem:[%s425 + $0xe8] sm:$0xf]
        %v1123 = vld [vmem:[%s425 + $0xec] sm:$0xf]
        %v1124 = vld [vmem:[%s425 + $0xf0] sm:$0xf]
        %v1125 = vld [vmem:[%s425 + $0xf4] sm:$0xf]
        %v1126 = vld [vmem:[%s425 + $0xf8] sm:$0xf]
        %v1127 = vld [vmem:[%s425 + $0xfc] sm:$0xf]
        %v1128 = vld [vmem:[%s425 + $0x100] sm:$0xf]
        %v1129 = vld [vmem:[%s425 + $0x104] sm:$0xf]
        %v1130 = vld [vmem:[%s425 + $0x108] sm:$0xf]
        %v1131 = vld [vmem:[%s425 + $0x10c] sm:$0xf]
        %v1132 = vld [vmem:[%s425 + $0x110] sm:$0xf]
        %v1133 = vld [vmem:[%s425 + $0x114] sm:$0xf]
        %v1134 = vld [vmem:[%s425 + $0x118] sm:$0xf]
        %v1135 = vld [vmem:[%s425 + $0x11c] sm:$0xf]
        %v1136 = vld [vmem:[%s425 + $0x120] sm:$0xf]
        %v1137 = vld [vmem:[%s425 + $0x124] sm:$0x3]
        %v1163 = vunpack.c.l.b16 %v1113
        %v1164 = vunpack.c.l.b16 %v1114
        %v1165 = vunpack.c.l.b16 %v1115
        %v1166 = vunpack.c.l.b16 %v1116
        %v1167 = vunpack.c.l.b16 %v1117
        %v1168 = vunpack.c.l.b16 %v1118
        %v1169 = vunpack.c.l.b16 %v1119
        %v1170 = vunpack.c.l.b16 %v1120
        %v1171 = vunpack.c.l.b16 %v1121
        %v1172 = vunpack.c.l.b16 %v1122
        %v1173 = vunpack.c.l.b16 %v1123
        %v1174 = vunpack.c.l.b16 %v1124
        %v1175 = vunpack.c.l.b16 %v1125
        %v1176 = vunpack.c.l.b16 %v1126
        %v1177 = vunpack.c.l.b16 %v1127
        %v1178 = vunpack.c.l.b16 %v1128
        %v1179 = vunpack.c.l.b16 %v1129
        %v1180 = vunpack.c.l.b16 %v1130
        %v1181 = vunpack.c.l.b16 %v1131
        %v1182 = vunpack.c.l.b16 %v1132
        %v1183 = vunpack.c.l.b16 %v1133
        %v1184 = vunpack.c.l.b16 %v1134
        %v1185 = vunpack.c.l.b16 %v1135
        %v1186 = vunpack.c.l.b16 %v1136
        %v1187 = vunpack.c.l.b16 %v1137
        %v1188 = vpack.c.b16 %v1164, %v1163
        %v1189 = vpack.c.b16 %v1166, %v1165
        %v1190 = vpack.c.b16 %v1168, %v1167
        %v1191 = vpack.c.b16 %v1170, %v1169
        %v1192 = vpack.c.b16 %v1172, %v1171
        %v1193 = vpack.c.b16 %v1174, %v1173
        %v1194 = vpack.c.b16 %v1176, %v1175
        %v1195 = vpack.c.b16 %v1178, %v1177
        %v1196 = vpack.c.b16 %v1180, %v1179
        %v1197 = vpack.c.b16 %v1182, %v1181
        %v1198 = vpack.c.b16 %v1184, %v1183
        %v1199 = vpack.c.b16 %v1186, %v1185
        %v1200 = vpack.c.b16 %v1187, %v1187
        %v1202 = vsel %vm541, %v1188, 0
        %v1205 = vsel %vm541, %v1189, 0
        %v1208 = vsel %vm541, %v1190, 0
        %v1211 = vsel %vm541, %v1191, 0
        %v1214 = vsel %vm541, %v1192, 0
        %v1217 = vsel %vm541, %v1193, 0
        %v1220 = vsel %vm541, %v1194, 0
        %v1223 = vsel %vm541, %v1195, 0
        %v1226 = vsel %vm541, %v1196, 0
        %v1229 = vsel %vm541, %v1197, 0
        %v1232 = vsel %vm541, %v1198, 0
        %v1235 = vsel %vm541, %v1199, 0
        %v1238 = vsel %vm541, %v1200, 0
        %1240 = vmatprep.subr.bf16.mxu0 0
        %1241 = vmatpush1.bf16.msra.mxu0 %v586
        %1242 = vmatprep.subr.bf16.mxu0 0
        %1243 = vmatpush1.bf16.msra.mxu0 0
        %1244 = vmatprep.subr.bf16.mxu0 0
        %1245 = vmatpush1.bf16.msra.mxu0 0
        %1246 = vmatprep.subr.bf16.mxu0 0
        %1247 = vmatpush1.bf16.msra.mxu0 0
        %1248 = vmatprep.subr.bf16.mxu0 0
        %1249 = vmatpush1.bf16.msra.mxu0 0
        %1250 = vmatprep.subr.bf16.mxu0 0
        %1251 = vmatpush1.bf16.msra.mxu0 0
        %1252 = vmatprep.subr.bf16.mxu0 0
        %1253 = vmatpush1.bf16.msra.mxu0 0
        %1254 = vmatprep.subr.bf16.mxu0 0
        %1255 = vmatpush1.bf16.msra.mxu0 0
        %1256 = vmatprep.subr.bf16.mxu0 0
        %1257 = vmatpush1.bf16.msra.mxu0 0
        %1258 = vmatprep.subr.bf16.mxu0 0
        %1259 = vmatpush1.bf16.msra.mxu0 0
        %1260 = vmatprep.subr.bf16.mxu0 0
        %1261 = vmatpush1.bf16.msra.mxu0 0
        %1262 = vmatprep.subr.bf16.mxu0 0
        %1263 = vmatpush1.bf16.msra.mxu0 0
        %1264 = vmatprep.subr.bf16.mxu0 0
        %1265 = vmatpush1.bf16.msra.mxu0 0
        %1266 = vmatprep.subr.bf16.mxu0 0
        %1267 = vmatpush1.bf16.msra.mxu0 0
        %1268 = vmatprep.subr.bf16.mxu0 0
        %1269 = vmatpush1.bf16.msra.mxu0 0
        %1270 = vmatprep.subr.bf16.mxu0 0
        %1271 = vmatpush1.bf16.msra.mxu0 0
        %1272 = vmatprep.mubr.bf16.mxu0 0
        %1273 = vmatmul.mubr.bf16.gmra.mrb[0].mxu0 %v1202
        %v1274 = vpop.f32.mrb[0].mxu0
        %v1275 = vadd.f32 %v471, %v1274
        %v1276 = vpop.f32.mrb[0].mxu0
        %v1277 = vpop.f32.mrb[0].mxu0
        %v1278 = vadd.f32 %v471, %v1277
        %v1279 = vpop.f32.mrb[0].mxu0
        %1280 = vmatprep.mubr.bf16.mxu0 0
        %1281 = vmatmul.mubr.bf16.gmra.mrb[0].mxu0 %v1205
        %v1282 = vpop.f32.mrb[0].mxu0
        %v1283 = vadd.f32 %v471, %v1282
        %v1284 = vpop.f32.mrb[0].mxu0
        %v1285 = vpop.f32.mrb[0].mxu0
        %v1286 = vadd.f32 %v471, %v1285
        %v1287 = vpop.f32.mrb[0].mxu0
        %1288 = vmatprep.mubr.bf16.mxu0 0
        %1289 = vmatmul.mubr.bf16.gmra.mrb[0].mxu0 %v1208
        %v1290 = vpop.f32.mrb[0].mxu0
        %v1291 = vadd.f32 %v471, %v1290
        %v1292 = vpop.f32.mrb[0].mxu0
        %v1293 = vpop.f32.mrb[0].mxu0
        %v1294 = vadd.f32 %v471, %v1293
        %v1295 = vpop.f32.mrb[0].mxu0
        %1296 = vmatprep.mubr.bf16.mxu0 0
        %1297 = vmatmul.mubr.bf16.gmra.mrb[0].mxu0 %v1211
        %v1298 = vpop.f32.mrb[0].mxu0
        %v1299 = vadd.f32 %v471, %v1298
        %v1300 = vpop.f32.mrb[0].mxu0
        %v1301 = vpop.f32.mrb[0].mxu0
        %v1302 = vadd.f32 %v471, %v1301
        %v1303 = vpop.f32.mrb[0].mxu0
        %1304 = vmatprep.mubr.bf16.mxu0 0
        %1305 = vmatmul.mubr.bf16.gmra.mrb[0].mxu0 %v1214
        %v1306 = vpop.f32.mrb[0].mxu0
        %v1307 = vadd.f32 %v471, %v1306
        %v1308 = vpop.f32.mrb[0].mxu0
        %v1309 = vpop.f32.mrb[0].mxu0
        %v1310 = vadd.f32 %v471, %v1309
        %v1311 = vpop.f32.mrb[0].mxu0
        %1312 = vmatprep.mubr.bf16.mxu0 0
        %1313 = vmatmul.mubr.bf16.gmra.mrb[0].mxu0 %v1217
        %v1314 = vpop.f32.mrb[0].mxu0
        %v1315 = vadd.f32 %v471, %v1314
        %v1316 = vpop.f32.mrb[0].mxu0
        %v1317 = vpop.f32.mrb[0].mxu0
        %v1318 = vadd.f32 %v471, %v1317
        %v1319 = vpop.f32.mrb[0].mxu0
        %1320 = vmatprep.mubr.bf16.mxu0 0
        %1321 = vmatmul.mubr.bf16.gmra.mrb[0].mxu0 %v1220
        %v1322 = vpop.f32.mrb[0].mxu0
        %v1323 = vadd.f32 %v471, %v1322
        %v1324 = vpop.f32.mrb[0].mxu0
        %v1325 = vpop.f32.mrb[0].mxu0
        %v1326 = vadd.f32 %v471, %v1325
        %v1327 = vpop.f32.mrb[0].mxu0
        %1328 = vmatprep.mubr.bf16.mxu0 0
        %1329 = vmatmul.mubr.bf16.gmra.mrb[0].mxu0 %v1223
        %v1330 = vpop.f32.mrb[0].mxu0
        %v1331 = vadd.f32 %v471, %v1330
        %v1332 = vpop.f32.mrb[0].mxu0
        %v1333 = vpop.f32.mrb[0].mxu0
        %v1334 = vadd.f32 %v471, %v1333
        %v1335 = vpop.f32.mrb[0].mxu0
        %1336 = vmatprep.mubr.bf16.mxu0 0
        %1337 = vmatmul.mubr.bf16.gmra.mrb[0].mxu0 %v1226
        %v1338 = vpop.f32.mrb[0].mxu0
        %v1339 = vadd.f32 %v471, %v1338
        %v1340 = vpop.f32.mrb[0].mxu0
        %v1341 = vpop.f32.mrb[0].mxu0
        %v1342 = vadd.f32 %v471, %v1341
        %v1343 = vpop.f32.mrb[0].mxu0
        %1344 = vmatprep.mubr.bf16.mxu0 0
        %1345 = vmatmul.mubr.bf16.gmra.mrb[0].mxu0 %v1229
        %v1346 = vpop.f32.mrb[0].mxu0
        %v1347 = vadd.f32 %v471, %v1346
        %v1348 = vpop.f32.mrb[0].mxu0
        %v1349 = vpop.f32.mrb[0].mxu0
        %v1350 = vadd.f32 %v471, %v1349
        %v1351 = vpop.f32.mrb[0].mxu0
        %1352 = vmatprep.mubr.bf16.mxu0 0
        %1353 = vmatmul.mubr.bf16.gmra.mrb[0].mxu0 %v1232
        %v1354 = vpop.f32.mrb[0].mxu0
        %v1355 = vadd.f32 %v471, %v1354
        %v1356 = vpop.f32.mrb[0].mxu0
        %v1357 = vpop.f32.mrb[0].mxu0
        %v1358 = vadd.f32 %v471, %v1357
        %v1359 = vpop.f32.mrb[0].mxu0
        %1360 = vmatprep.mubr.bf16.mxu0 0
        %1361 = vmatmul.mubr.bf16.gmra.mrb[0].mxu0 %v1235
        %v1362 = vpop.f32.mrb[0].mxu0
        %v1363 = vadd.f32 %v471, %v1362
        %v1364 = vpop.f32.mrb[0].mxu0
        %v1365 = vpop.f32.mrb[0].mxu0
        %v1366 = vadd.f32 %v471, %v1365
        %v1367 = vpop.f32.mrb[0].mxu0
        %1368 = vmatprep.mubr.bf16.mxu0 0
        %1369 = vmatmul.mubr.bf16.gmra.mrb[0].mxu0 %v1238
        %v1370 = vpop.f32.mrb[0].mxu0
        %v1371 = vadd.f32 %v471, %v1370
        %v1372 = vpop.f32.mrb[0].mxu0
        %v1373 = vpop.f32.mrb[0].mxu0
        %v1374 = vpop.f32.mrb[0].mxu0
        %1375 = vdwg.mxu0
        %v1376 = vmax.f32 %v1275, 0.0
        %v1377 = vmax.f32 %v1278, 0.0
        %v1378 = vmax.f32 %v1283, 0.0
        %v1379 = vmax.f32 %v1286, 0.0
        %v1380 = vmax.f32 %v1291, 0.0
        %v1381 = vmax.f32 %v1294, 0.0
        %v1382 = vmax.f32 %v1299, 0.0
        %v1383 = vmax.f32 %v1302, 0.0
        %v1384 = vmax.f32 %v1307, 0.0
        %v1385 = vmax.f32 %v1310, 0.0
        %v1386 = vmax.f32 %v1315, 0.0
        %v1387 = vmax.f32 %v1318, 0.0
        %v1388 = vmax.f32 %v1323, 0.0
        %v1389 = vmax.f32 %v1326, 0.0
        %v1390 = vmax.f32 %v1331, 0.0
        %v1391 = vmax.f32 %v1334, 0.0
        %v1392 = vmax.f32 %v1339, 0.0
        %v1393 = vmax.f32 %v1342, 0.0
        %v1394 = vmax.f32 %v1347, 0.0
        %v1395 = vmax.f32 %v1350, 0.0
        %v1396 = vmax.f32 %v1355, 0.0
        %v1397 = vmax.f32 %v1358, 0.0
        %v1398 = vmax.f32 %v1363, 0.0
        %v1399 = vmax.f32 %v1366, 0.0
        %v1400 = vmax.f32 %v1371, 0.0
        %v1401 = vadd.f32 %v1088, %v1376
        %v1402 = vadd.f32 %v1089, %v1377
        %v1403 = vadd.f32 %v1090, %v1378
        %v1404 = vadd.f32 %v1091, %v1379
        %v1405 = vadd.f32 %v1092, %v1380
        %v1406 = vadd.f32 %v1093, %v1381
        %v1407 = vadd.f32 %v1094, %v1382
        %v1408 = vadd.f32 %v1095, %v1383
        %v1409 = vadd.f32 %v1096, %v1384
        %v1410 = vadd.f32 %v1097, %v1385
        %v1411 = vadd.f32 %v1098, %v1386
        %v1412 = vadd.f32 %v1099, %v1387
        %v1413 = vadd.f32 %v1100, %v1388
        %v1414 = vadd.f32 %v1101, %v1389
        %v1415 = vadd.f32 %v1102, %v1390
        %v1416 = vadd.f32 %v1103, %v1391
        %v1417 = vadd.f32 %v1104, %v1392
        %v1418 = vadd.f32 %v1105, %v1393
        %v1419 = vadd.f32 %v1106, %v1394
        %v1420 = vadd.f32 %v1107, %v1395
        %v1421 = vadd.f32 %v1108, %v1396
        %v1422 = vadd.f32 %v1109, %v1397
        %v1423 = vadd.f32 %v1110, %v1398
        %v1424 = vadd.f32 %v1111, %v1399
        %v1425 = vadd.f32 %v1112, %v1400
        %v1426 = vld [vmem:[%s425 + $0x124] sm:$0xc]
        %v1427 = vld [vmem:[%s425 + $0x128] sm:$0xf]
        %v1428 = vld [vmem:[%s425 + $0x12c] sm:$0xf]
        %v1429 = vld [vmem:[%s425 + $0x130] sm:$0xf]
        %v1430 = vld [vmem:[%s425 + $0x134] sm:$0xf]
        %v1431 = vld [vmem:[%s425 + $0x138] sm:$0xf]
        %v1432 = vld [vmem:[%s425 + $0x13c] sm:$0xf]
        %v1433 = vld [vmem:[%s425 + $0x140] sm:$0xf]
        %v1434 = vld [vmem:[%s425 + $0x144] sm:$0xf]
        %v1435 = vld [vmem:[%s425 + $0x148] sm:$0xf]
        %v1436 = vld [vmem:[%s425 + $0x14c] sm:$0xf]
        %v1437 = vld [vmem:[%s425 + $0x150] sm:$0xf]
        %v1438 = vld [vmem:[%s425 + $0x154] sm:$0xf]
        %v1439 = vld [vmem:[%s425 + $0x158] sm:$0xf]
        %v1440 = vld [vmem:[%s425 + $0x15c] sm:$0xf]
        %v1441 = vld [vmem:[%s425 + $0x160] sm:$0xf]
        %v1442 = vld [vmem:[%s425 + $0x164] sm:$0xf]
        %v1443 = vld [vmem:[%s425 + $0x168] sm:$0xf]
        %v1444 = vld [vmem:[%s425 + $0x16c] sm:$0xf]
        %v1445 = vld [vmem:[%s425 + $0x170] sm:$0xf]
        %v1446 = vld [vmem:[%s425 + $0x174] sm:$0xf]
        %v1447 = vld [vmem:[%s425 + $0x178] sm:$0xf]
        %v1448 = vld [vmem:[%s425 + $0x17c] sm:$0xf]
        %v1449 = vld [vmem:[%s425 + $0x180] sm:$0xf]
        %v1450 = vld [vmem:[%s425 + $0x184] sm:$0xf]
        %v1476 = vunpack.c.l.b16 %v1426
        %v1477 = vunpack.c.l.b16 %v1427
        %v1478 = vunpack.c.l.b16 %v1428
        %v1479 = vunpack.c.l.b16 %v1429
        %v1480 = vunpack.c.l.b16 %v1430
        %v1481 = vunpack.c.l.b16 %v1431
        %v1482 = vunpack.c.l.b16 %v1432
        %v1483 = vunpack.c.l.b16 %v1433
        %v1484 = vunpack.c.l.b16 %v1434
        %v1485 = vunpack.c.l.b16 %v1435
        %v1486 = vunpack.c.l.b16 %v1436
        %v1487 = vunpack.c.l.b16 %v1437
        %v1488 = vunpack.c.l.b16 %v1438
        %v1489 = vunpack.c.l.b16 %v1439
        %v1490 = vunpack.c.l.b16 %v1440
        %v1491 = vunpack.c.l.b16 %v1441
        %v1492 = vunpack.c.l.b16 %v1442
        %v1493 = vunpack.c.l.b16 %v1443
        %v1494 = vunpack.c.l.b16 %v1444
        %v1495 = vunpack.c.l.b16 %v1445
        %v1496 = vunpack.c.l.b16 %v1446
        %v1497 = vunpack.c.l.b16 %v1447
        %v1498 = vunpack.c.l.b16 %v1448
        %v1499 = vunpack.c.l.b16 %v1449
        %v1500 = vunpack.c.l.b16 %v1450
        %v1501 = vpack.c.b16 %v1477, %v1476
        %v1502 = vpack.c.b16 %v1479, %v1478
        %v1503 = vpack.c.b16 %v1481, %v1480
        %v1504 = vpack.c.b16 %v1483, %v1482
        %v1505 = vpack.c.b16 %v1485, %v1484
        %v1506 = vpack.c.b16 %v1487, %v1486
        %v1507 = vpack.c.b16 %v1489, %v1488
        %v1508 = vpack.c.b16 %v1491, %v1490
        %v1509 = vpack.c.b16 %v1493, %v1492
        %v1510 = vpack.c.b16 %v1495, %v1494
        %v1511 = vpack.c.b16 %v1497, %v1496
        %v1512 = vpack.c.b16 %v1499, %v1498
        %v1513 = vpack.c.b16 %v1500, %v1500
        %v1514 = vrot.slane %v1501, 2
        %v1515 = vrot.slane %v1502, 2
        %v1516 = vsel %vm862, %v1514, %v1515
        %v1517 = vrot.slane %v1503, 2
        %v1518 = vsel %vm862, %v1515, %v1517
        %v1519 = vrot.slane %v1504, 2
        %v1520 = vsel %vm862, %v1517, %v1519
        %v1521 = vrot.slane %v1505, 2
        %v1522 = vsel %vm862, %v1519, %v1521
        %v1523 = vrot.slane %v1506, 2
        %v1524 = vsel %vm862, %v1521, %v1523
        %v1525 = vrot.slane %v1507, 2
        %v1526 = vsel %vm862, %v1523, %v1525
        %v1527 = vrot.slane %v1508, 2
        %v1528 = vsel %vm862, %v1525, %v1527
        %v1529 = vrot.slane %v1509, 2
        %v1530 = vsel %vm862, %v1527, %v1529
        %v1531 = vrot.slane %v1510, 2
        %v1532 = vsel %vm862, %v1529, %v1531
        %v1533 = vrot.slane %v1511, 2
        %v1534 = vsel %vm862, %v1531, %v1533
        %v1535 = vrot.slane %v1512, 2
        %v1536 = vsel %vm862, %v1533, %v1535
        %v1537 = vrot.slane %v1513, 2
        %v1538 = vsel %vm862, %v1535, %v1537
        %v1540 = vsel %vm541, %v1516, 0
        %v1543 = vsel %vm541, %v1518, 0
        %v1546 = vsel %vm541, %v1520, 0
        %v1549 = vsel %vm541, %v1522, 0
        %v1552 = vsel %vm541, %v1524, 0
        %v1555 = vsel %vm541, %v1526, 0
        %v1558 = vsel %vm541, %v1528, 0
        %v1561 = vsel %vm541, %v1530, 0
        %v1564 = vsel %vm541, %v1532, 0
        %v1567 = vsel %vm541, %v1534, 0
        %v1570 = vsel %vm541, %v1536, 0
        %v1573 = vsel %vm541, %v1538, 0
        %v1576 = vsel %vm541, %v1537, 0
        %1578 = vmatprep.subr.bf16.mxu0 0
        %1579 = vmatpush1.bf16.msra.mxu0 %v586
        %1580 = vmatprep.subr.bf16.mxu0 0
        %1581 = vmatpush1.bf16.msra.mxu0 0
        %1582 = vmatprep.subr.bf16.mxu0 0
        %1583 = vmatpush1.bf16.msra.mxu0 0
        %1584 = vmatprep.subr.bf16.mxu0 0
        %1585 = vmatpush1.bf16.msra.mxu0 0
        %1586 = vmatprep.subr.bf16.mxu0 0
        %1587 = vmatpush1.bf16.msra.mxu0 0
        %1588 = vmatprep.subr.bf16.mxu0 0
        %1589 = vmatpush1.bf16.msra.mxu0 0
        %1590 = vmatprep.subr.bf16.mxu0 0
        %1591 = vmatpush1.bf16.msra.mxu0 0
        %1592 = vmatprep.subr.bf16.mxu0 0
        %1593 = vmatpush1.bf16.msra.mxu0 0
        %1594 = vmatprep.subr.bf16.mxu0 0
        %1595 = vmatpush1.bf16.msra.mxu0 0
        %1596 = vmatprep.subr.bf16.mxu0 0
        %1597 = vmatpush1.bf16.msra.mxu0 0
        %1598 = vmatprep.subr.bf16.mxu0 0
        %1599 = vmatpush1.bf16.msra.mxu0 0
        %1600 = vmatprep.subr.bf16.mxu0 0
        %1601 = vmatpush1.bf16.msra.mxu0 0
        %1602 = vmatprep.subr.bf16.mxu0 0
        %1603 = vmatpush1.bf16.msra.mxu0 0
        %1604 = vmatprep.subr.bf16.mxu0 0
        %1605 = vmatpush1.bf16.msra.mxu0 0
        %1606 = vmatprep.subr.bf16.mxu0 0
        %1607 = vmatpush1.bf16.msra.mxu0 0
        %1608 = vmatprep.subr.bf16.mxu0 0
        %1609 = vmatpush1.bf16.msra.mxu0 0
        %1610 = vmatprep.mubr.bf16.mxu0 0
        %1611 = vmatmul.mubr.bf16.gmra.mrb[0].mxu0 %v1540
        %v1612 = vpop.f32.mrb[0].mxu0
        %v1613 = vadd.f32 %v471, %v1612
        %v1614 = vpop.f32.mrb[0].mxu0
        %v1615 = vpop.f32.mrb[0].mxu0
        %v1616 = vadd.f32 %v471, %v1615
        %v1617 = vpop.f32.mrb[0].mxu0
        %1618 = vmatprep.mubr.bf16.mxu0 0
        %1619 = vmatmul.mubr.bf16.gmra.mrb[0].mxu0 %v1543
        %v1620 = vpop.f32.mrb[0].mxu0
        %v1621 = vadd.f32 %v471, %v1620
        %v1622 = vpop.f32.mrb[0].mxu0
        %v1623 = vpop.f32.mrb[0].mxu0
        %v1624 = vadd.f32 %v471, %v1623
        %v1625 = vpop.f32.mrb[0].mxu0
        %1626 = vmatprep.mubr.bf16.mxu0 0
        %1627 = vmatmul.mubr.bf16.gmra.mrb[0].mxu0 %v1546
        %v1628 = vpop.f32.mrb[0].mxu0
        %v1629 = vadd.f32 %v471, %v1628
        %v1630 = vpop.f32.mrb[0].mxu0
        %v1631 = vpop.f32.mrb[0].mxu0
        %v1632 = vadd.f32 %v471, %v1631
        %v1633 = vpop.f32.mrb[0].mxu0
        %1634 = vmatprep.mubr.bf16.mxu0 0
        %1635 = vmatmul.mubr.bf16.gmra.mrb[0].mxu0 %v1549
        %v1636 = vpop.f32.mrb[0].mxu0
        %v1637 = vadd.f32 %v471, %v1636
        %v1638 = vpop.f32.mrb[0].mxu0
        %v1639 = vpop.f32.mrb[0].mxu0
        %v1640 = vadd.f32 %v471, %v1639
        %v1641 = vpop.f32.mrb[0].mxu0
        %1642 = vmatprep.mubr.bf16.mxu0 0
        %1643 = vmatmul.mubr.bf16.gmra.mrb[0].mxu0 %v1552
        %v1644 = vpop.f32.mrb[0].mxu0
        %v1645 = vadd.f32 %v471, %v1644
        %v1646 = vpop.f32.mrb[0].mxu0
        %v1647 = vpop.f32.mrb[0].mxu0
        %v1648 = vadd.f32 %v471, %v1647
        %v1649 = vpop.f32.mrb[0].mxu0
        %1650 = vmatprep.mubr.bf16.mxu0 0
        %1651 = vmatmul.mubr.bf16.gmra.mrb[0].mxu0 %v1555
        %v1652 = vpop.f32.mrb[0].mxu0
        %v1653 = vadd.f32 %v471, %v1652
        %v1654 = vpop.f32.mrb[0].mxu0
        %v1655 = vpop.f32.mrb[0].mxu0
        %v1656 = vadd.f32 %v471, %v1655
        %v1657 = vpop.f32.mrb[0].mxu0
        %1658 = vmatprep.mubr.bf16.mxu0 0
        %1659 = vmatmul.mubr.bf16.gmra.mrb[0].mxu0 %v1558
        %v1660 = vpop.f32.mrb[0].mxu0
        %v1661 = vadd.f32 %v471, %v1660
        %v1662 = vpop.f32.mrb[0].mxu0
        %v1663 = vpop.f32.mrb[0].mxu0
        %v1664 = vadd.f32 %v471, %v1663
        %v1665 = vpop.f32.mrb[0].mxu0
        %1666 = vmatprep.mubr.bf16.mxu0 0
        %1667 = vmatmul.mubr.bf16.gmra.mrb[0].mxu0 %v1561
        %v1668 = vpop.f32.mrb[0].mxu0
        %v1669 = vadd.f32 %v471, %v1668
        %v1670 = vpop.f32.mrb[0].mxu0
        %v1671 = vpop.f32.mrb[0].mxu0
        %v1672 = vadd.f32 %v471, %v1671
        %v1673 = vpop.f32.mrb[0].mxu0
        %1674 = vmatprep.mubr.bf16.mxu0 0
        %1675 = vmatmul.mubr.bf16.gmra.mrb[0].mxu0 %v1564
        %v1676 = vpop.f32.mrb[0].mxu0
        %v1677 = vadd.f32 %v471, %v1676
        %v1678 = vpop.f32.mrb[0].mxu0
        %v1679 = vpop.f32.mrb[0].mxu0
        %v1680 = vadd.f32 %v471, %v1679
        %v1681 = vpop.f32.mrb[0].mxu0
        %1682 = vmatprep.mubr.bf16.mxu0 0
        %1683 = vmatmul.mubr.bf16.gmra.mrb[0].mxu0 %v1567
        %v1684 = vpop.f32.mrb[0].mxu0
        %v1685 = vadd.f32 %v471, %v1684
        %v1686 = vpop.f32.mrb[0].mxu0
        %v1687 = vpop.f32.mrb[0].mxu0
        %v1688 = vadd.f32 %v471, %v1687
        %v1689 = vpop.f32.mrb[0].mxu0
        %1690 = vmatprep.mubr.bf16.mxu0 0
        %1691 = vmatmul.mubr.bf16.gmra.mrb[0].mxu0 %v1570
        %v1692 = vpop.f32.mrb[0].mxu0
        %v1693 = vadd.f32 %v471, %v1692
        %v1694 = vpop.f32.mrb[0].mxu0
        %v1695 = vpop.f32.mrb[0].mxu0
        %v1696 = vadd.f32 %v471, %v1695
        %v1697 = vpop.f32.mrb[0].mxu0
        %1698 = vmatprep.mubr.bf16.mxu0 0
        %1699 = vmatmul.mubr.bf16.gmra.mrb[0].mxu0 %v1573
        %v1700 = vpop.f32.mrb[0].mxu0
        %v1701 = vadd.f32 %v471, %v1700
        %v1702 = vpop.f32.mrb[0].mxu0
        %v1703 = vpop.f32.mrb[0].mxu0
        %v1704 = vadd.f32 %v471, %v1703
        %v1705 = vpop.f32.mrb[0].mxu0
        %1706 = vmatprep.mubr.bf16.mxu0 0
        %1707 = vmatmul.mubr.bf16.gmra.mrb[0].mxu0 %v1576
        %v1708 = vpop.f32.mrb[0].mxu0
        %v1709 = vadd.f32 %v471, %v1708
        %v1710 = vpop.f32.mrb[0].mxu0
        %v1711 = vpop.f32.mrb[0].mxu0
        %v1712 = vpop.f32.mrb[0].mxu0
        %1713 = vdwg.mxu0
        %v1714 = vmax.f32 %v1613, 0.0
        %v1715 = vmax.f32 %v1616, 0.0
        %v1716 = vmax.f32 %v1621, 0.0
        %v1717 = vmax.f32 %v1624, 0.0
        %v1718 = vmax.f32 %v1629, 0.0
        %v1719 = vmax.f32 %v1632, 0.0
        %v1720 = vmax.f32 %v1637, 0.0
        %v1721 = vmax.f32 %v1640, 0.0
        %v1722 = vmax.f32 %v1645, 0.0
        %v1723 = vmax.f32 %v1648, 0.0
        %v1724 = vmax.f32 %v1653, 0.0
        %v1725 = vmax.f32 %v1656, 0.0
        %v1726 = vmax.f32 %v1661, 0.0
        %v1727 = vmax.f32 %v1664, 0.0
        %v1728 = vmax.f32 %v1669, 0.0
        %v1729 = vmax.f32 %v1672, 0.0
        %v1730 = vmax.f32 %v1677, 0.0
        %v1731 = vmax.f32 %v1680, 0.0
        %v1732 = vmax.f32 %v1685, 0.0
        %v1733 = vmax.f32 %v1688, 0.0
        %v1734 = vmax.f32 %v1693, 0.0
        %v1735 = vmax.f32 %v1696, 0.0
        %v1736 = vmax.f32 %v1701, 0.0
        %v1737 = vmax.f32 %v1704, 0.0
        %v1738 = vmax.f32 %v1709, 0.0
        %v1739 = vadd.f32 %v1401, %v1714
        %v1740 = vadd.f32 %v1402, %v1715
        %v1741 = vadd.f32 %v1403, %v1716
        %v1742 = vadd.f32 %v1404, %v1717
        %v1743 = vadd.f32 %v1405, %v1718
        %v1744 = vadd.f32 %v1406, %v1719
        %v1745 = vadd.f32 %v1407, %v1720
        %v1746 = vadd.f32 %v1408, %v1721
        %v1747 = vadd.f32 %v1409, %v1722
        %v1748 = vadd.f32 %v1410, %v1723
        %v1749 = vadd.f32 %v1411, %v1724
        %v1750 = vadd.f32 %v1412, %v1725
        %v1751 = vadd.f32 %v1413, %v1726
        %v1752 = vadd.f32 %v1414, %v1727
        %v1753 = vadd.f32 %v1415, %v1728
        %v1754 = vadd.f32 %v1416, %v1729
        %v1755 = vadd.f32 %v1417, %v1730
        %v1756 = vadd.f32 %v1418, %v1731
        %v1757 = vadd.f32 %v1419, %v1732
        %v1758 = vadd.f32 %v1420, %v1733
        %v1759 = vadd.f32 %v1421, %v1734
        %v1760 = vadd.f32 %v1422, %v1735
        %v1761 = vadd.f32 %v1423, %v1736
        %v1762 = vadd.f32 %v1424, %v1737
        %v1763 = vadd.f32 %v1425, %v1738
        %v1764 = vmul.f32 %v1739, 0.25
        %v1765 = vmul.f32 %v1740, 0.25
        %v1766 = vmul.f32 %v1741, 0.25
        %v1767 = vmul.f32 %v1742, 0.25
        %v1768 = vmul.f32 %v1743, 0.25
        %v1769 = vmul.f32 %v1744, 0.25
        %v1770 = vmul.f32 %v1745, 0.25
        %v1771 = vmul.f32 %v1746, 0.25
        %v1772 = vmul.f32 %v1747, 0.25
        %v1773 = vmul.f32 %v1748, 0.25
        %v1774 = vmul.f32 %v1749, 0.25
        %v1775 = vmul.f32 %v1750, 0.25
        %v1776 = vmul.f32 %v1751, 0.25
        %v1777 = vmul.f32 %v1752, 0.25
        %v1778 = vmul.f32 %v1753, 0.25
        %v1779 = vmul.f32 %v1754, 0.25
        %v1780 = vmul.f32 %v1755, 0.25
        %v1781 = vmul.f32 %v1756, 0.25
        %v1782 = vmul.f32 %v1757, 0.25
        %v1783 = vmul.f32 %v1758, 0.25
        %v1784 = vmul.f32 %v1759, 0.25
        %v1785 = vmul.f32 %v1760, 0.25
        %v1786 = vmul.f32 %v1761, 0.25
        %v1787 = vmul.f32 %v1762, 0.25
        %v1788 = vmul.f32 %v1763, 0.25
        %vm1789 = vcmask 64512
        %1790 = vst.msk [vmem:[%s430] sm:$0xff] %vm1789, %v1764
        %1791 = vst.msk [vmem:[%s430 + $0x8] sm:$0xff] %vm1789, %v1765
        %1792 = vst.msk [vmem:[%s430 + $0x10] sm:$0xff] %vm1789, %v1766
        %1793 = vst.msk [vmem:[%s430 + $0x18] sm:$0xff] %vm1789, %v1767
        %1794 = vst.msk [vmem:[%s430 + $0x20] sm:$0xff] %vm1789, %v1768
        %1795 = vst.msk [vmem:[%s430 + $0x28] sm:$0xff] %vm1789, %v1769
        %1796 = vst.msk [vmem:[%s430 + $0x30] sm:$0xff] %vm1789, %v1770
        %1797 = vst.msk [vmem:[%s430 + $0x38] sm:$0xff] %vm1789, %v1771
        %1798 = vst.msk [vmem:[%s430 + $0x40] sm:$0xff] %vm1789, %v1772
        %1799 = vst.msk [vmem:[%s430 + $0x48] sm:$0xff] %vm1789, %v1773
        %1800 = vst.msk [vmem:[%s430 + $0x50] sm:$0xff] %vm1789, %v1774
        %1801 = vst.msk [vmem:[%s430 + $0x58] sm:$0xff] %vm1789, %v1775
        %1802 = vst.msk [vmem:[%s430 + $0x60] sm:$0xff] %vm1789, %v1776
        %1803 = vst.msk [vmem:[%s430 + $0x68] sm:$0xff] %vm1789, %v1777
        %1804 = vst.msk [vmem:[%s430 + $0x70] sm:$0xff] %vm1789, %v1778
        %1805 = vst.msk [vmem:[%s430 + $0x78] sm:$0xff] %vm1789, %v1779
        %1806 = vst.msk [vmem:[%s430 + $0x80] sm:$0xff] %vm1789, %v1780
        %1807 = vst.msk [vmem:[%s430 + $0x88] sm:$0xff] %vm1789, %v1781
        %1808 = vst.msk [vmem:[%s430 + $0x90] sm:$0xff] %vm1789, %v1782
        %1809 = vst.msk [vmem:[%s430 + $0x98] sm:$0xff] %vm1789, %v1783
        %1810 = vst.msk [vmem:[%s430 + $0xa0] sm:$0xff] %vm1789, %v1784
        %1811 = vst.msk [vmem:[%s430 + $0xa8] sm:$0xff] %vm1789, %v1785
        %1812 = vst.msk [vmem:[%s430 + $0xb0] sm:$0xff] %vm1789, %v1786
        %1813 = vst.msk [vmem:[%s430 + $0xb8] sm:$0xff] %vm1789, %v1787
        %vm1814 = vcmask 60416
        %1815 = vst.msk [vmem:[%s430 + $0xc0] sm:$0xf] %vm1814, %v1788
        %v1816 = vpack.c.bf16 %v1765, %v1764
        %v1817 = vpack.c.bf16 %v1767, %v1766
        %v1818 = vpack.c.bf16 %v1769, %v1768
        %v1819 = vpack.c.bf16 %v1771, %v1770
        %v1820 = vpack.c.bf16 %v1773, %v1772
        %v1821 = vpack.c.bf16 %v1775, %v1774
        %v1822 = vpack.c.bf16 %v1777, %v1776
        %v1823 = vpack.c.bf16 %v1779, %v1778
        %v1824 = vpack.c.bf16 %v1781, %v1780
        %v1825 = vpack.c.bf16 %v1783, %v1782
        %v1826 = vpack.c.bf16 %v1785, %v1784
        %v1827 = vpack.c.bf16 %v1787, %v1786
        %v1828 = vpack.c.bf16 %v1788, %v1788
        %vm1829 = vcmask 1041408
        %v1832 = vsel %vm1829, %v1828, 0
        %v1834 = vlaneseq
        %v1835 = vshrl.u32 %v1834, 7
        %v1836 = vadd.s32 %v1835, 8
        %v1837 = vadd.s32 %v1835, 16
        %v1838 = vadd.s32 %v1835, 24
        %v1839 = vadd.s32 %v1835, 32
        %v1840 = vadd.s32 %v1835, 40
        %v1841 = vadd.s32 %v1835, 48
        %v1842 = vadd.s32 %v1835, 56
        %v1843 = vadd.s32 %v1835, 64
        %v1844 = vadd.s32 %v1835, 72
        %v1845 = vadd.s32 %v1835, 80
        %v1846 = vadd.s32 %v1835, 88
        %v1847 = vadd.s32 %v1835, 96
        %v1848 = vadd.s32 %v1835, 104
        %v1849 = vadd.s32 %v1835, 112
        %v1850 = vadd.s32 %v1835, 120
        %v1851 = vadd.s32 %v1835, 128
        %v1852 = vadd.s32 %v1835, 136
        %v1853 = vadd.s32 %v1835, 144
        %v1854 = vadd.s32 %v1835, 152
        %v1855 = vadd.s32 %v1835, 160
        %v1856 = vadd.s32 %v1835, 168
        %v1857 = vadd.s32 %v1835, 176
        %v1858 = vadd.s32 %v1835, 184
        %v1859 = vadd.s32 %v1835, 192
        %vm1860 = vcmp.lt.s32.totalorder %v1835, 0
        %v1861 = vsub.s32 0, %v1835
        %v1862 = vsel %vm1860, %v1861, %v1835
        %v1863 = vmul.u32.u64.compose %v1862, 2454267026
        %v1864 = vextract.low.u32 %v1863
        %v1865 = vextract.high.u32 %v1863
        %vm1866 = vc.u32 %v1864, 2454267026
        %v1867 = vsel %vm1866, 1, 0
        %v1868 = vadd.s32 %v1865, %v1867
        %v1869 = vshrl.u32 %v1868, 3
        %v1870 = vmul.u32 %v1869, 14
        %v1871 = vsub.s32 %v1862, %v1870
        %v1872 = vsub.s32 0, %v1871
        %v1873 = vsel %vm1860, %v1872, %v1871
        %vm1874 = vcmp.lt.s32.totalorder %v1836, 0
        %v1875 = vsub.s32 0, %v1836
        %v1876 = vsel %vm1874, %v1875, %v1836
        %v1877 = vmul.u32.u64.compose %v1876, 2454267026
        %v1878 = vextract.low.u32 %v1877
        %v1879 = vextract.high.u32 %v1877
        %vm1880 = vc.u32 %v1878, 2454267026
        %v1881 = vsel %vm1880, 1, 0
        %v1882 = vadd.s32 %v1879, %v1881
        %v1883 = vshrl.u32 %v1882, 3
        %v1884 = vmul.u32 %v1883, 14
        %v1885 = vsub.s32 %v1876, %v1884
        %v1886 = vsub.s32 0, %v1885
        %v1887 = vsel %vm1874, %v1886, %v1885
        %vm1888 = vcmp.lt.s32.totalorder %v1837, 0
        %v1889 = vsub.s32 0, %v1837
        %v1890 = vsel %vm1888, %v1889, %v1837
        %v1891 = vmul.u32.u64.compose %v1890, 2454267026
        %v1892 = vextract.low.u32 %v1891
        %v1893 = vextract.high.u32 %v1891
        %vm1894 = vc.u32 %v1892, 2454267026
        %v1895 = vsel %vm1894, 1, 0
        %v1896 = vadd.s32 %v1893, %v1895
        %v1897 = vshrl.u32 %v1896, 3
        %v1898 = vmul.u32 %v1897, 14
        %v1899 = vsub.s32 %v1890, %v1898
        %v1900 = vsub.s32 0, %v1899
        %v1901 = vsel %vm1888, %v1900, %v1899
        %vm1902 = vcmp.lt.s32.totalorder %v1838, 0
        %v1903 = vsub.s32 0, %v1838
        %v1904 = vsel %vm1902, %v1903, %v1838
        %v1905 = vmul.u32.u64.compose %v1904, 2454267026
        %v1906 = vextract.low.u32 %v1905
        %v1907 = vextract.high.u32 %v1905
        %vm1908 = vc.u32 %v1906, 2454267026
        %v1909 = vsel %vm1908, 1, 0
        %v1910 = vadd.s32 %v1907, %v1909
        %v1911 = vshrl.u32 %v1910, 3
        %v1912 = vmul.u32 %v1911, 14
        %v1913 = vsub.s32 %v1904, %v1912
        %v1914 = vsub.s32 0, %v1913
        %v1915 = vsel %vm1902, %v1914, %v1913
        %vm1916 = vcmp.lt.s32.totalorder %v1839, 0
        %v1917 = vsub.s32 0, %v1839
        %v1918 = vsel %vm1916, %v1917, %v1839
        %v1919 = vmul.u32.u64.compose %v1918, 2454267026
        %v1920 = vextract.low.u32 %v1919
        %v1921 = vextract.high.u32 %v1919
        %vm1922 = vc.u32 %v1920, 2454267026
        %v1923 = vsel %vm1922, 1, 0
        %v1924 = vadd.s32 %v1921, %v1923
        %v1925 = vshrl.u32 %v1924, 3
        %v1926 = vmul.u32 %v1925, 14
        %v1927 = vsub.s32 %v1918, %v1926
        %v1928 = vsub.s32 0, %v1927
        %v1929 = vsel %vm1916, %v1928, %v1927
        %vm1930 = vcmp.lt.s32.totalorder %v1840, 0
        %v1931 = vsub.s32 0, %v1840
        %v1932 = vsel %vm1930, %v1931, %v1840
        %v1933 = vmul.u32.u64.compose %v1932, 2454267026
        %v1934 = vextract.low.u32 %v1933
        %v1935 = vextract.high.u32 %v1933
        %vm1936 = vc.u32 %v1934, 2454267026
        %v1937 = vsel %vm1936, 1, 0
        %v1938 = vadd.s32 %v1935, %v1937
        %v1939 = vshrl.u32 %v1938, 3
        %v1940 = vmul.u32 %v1939, 14
        %v1941 = vsub.s32 %v1932, %v1940
        %v1942 = vsub.s32 0, %v1941
        %v1943 = vsel %vm1930, %v1942, %v1941
        %vm1944 = vcmp.lt.s32.totalorder %v1841, 0
        %v1945 = vsub.s32 0, %v1841
        %v1946 = vsel %vm1944, %v1945, %v1841
        %v1947 = vmul.u32.u64.compose %v1946, 2454267026
        %v1948 = vextract.low.u32 %v1947
        %v1949 = vextract.high.u32 %v1947
        %vm1950 = vc.u32 %v1948, 2454267026
        %v1951 = vsel %vm1950, 1, 0
        %v1952 = vadd.s32 %v1949, %v1951
        %v1953 = vshrl.u32 %v1952, 3
        %v1954 = vmul.u32 %v1953, 14
        %v1955 = vsub.s32 %v1946, %v1954
        %v1956 = vsub.s32 0, %v1955
        %v1957 = vsel %vm1944, %v1956, %v1955
        %vm1958 = vcmp.lt.s32.totalorder %v1842, 0
        %v1959 = vsub.s32 0, %v1842
        %v1960 = vsel %vm1958, %v1959, %v1842
        %v1961 = vmul.u32.u64.compose %v1960, 2454267026
        %v1962 = vextract.low.u32 %v1961
        %v1963 = vextract.high.u32 %v1961
        %vm1964 = vc.u32 %v1962, 2454267026
        %v1965 = vsel %vm1964, 1, 0
        %v1966 = vadd.s32 %v1963, %v1965
        %v1967 = vshrl.u32 %v1966, 3
        %v1968 = vmul.u32 %v1967, 14
        %v1969 = vsub.s32 %v1960, %v1968
        %v1970 = vsub.s32 0, %v1969
        %v1971 = vsel %vm1958, %v1970, %v1969
        %vm1972 = vcmp.lt.s32.totalorder %v1843, 0
        %v1973 = vsub.s32 0, %v1843
        %v1974 = vsel %vm1972, %v1973, %v1843
        %v1975 = vmul.u32.u64.compose %v1974, 2454267026
        %v1976 = vextract.low.u32 %v1975
        %v1977 = vextract.high.u32 %v1975
        %vm1978 = vc.u32 %v1976, 2454267026
        %v1979 = vsel %vm1978, 1, 0
        %v1980 = vadd.s32 %v1977, %v1979
        %v1981 = vshrl.u32 %v1980, 3
        %v1982 = vmul.u32 %v1981, 14
        %v1983 = vsub.s32 %v1974, %v1982
        %v1984 = vsub.s32 0, %v1983
        %v1985 = vsel %vm1972, %v1984, %v1983
        %vm1986 = vcmp.lt.s32.totalorder %v1844, 0
        %v1987 = vsub.s32 0, %v1844
        %v1988 = vsel %vm1986, %v1987, %v1844
        %v1989 = vmul.u32.u64.compose %v1988, 2454267026
        %v1990 = vextract.low.u32 %v1989
        %v1991 = vextract.high.u32 %v1989
        %vm1992 = vc.u32 %v1990, 2454267026
        %v1993 = vsel %vm1992, 1, 0
        %v1994 = vadd.s32 %v1991, %v1993
        %v1995 = vshrl.u32 %v1994, 3
        %v1996 = vmul.u32 %v1995, 14
        %v1997 = vsub.s32 %v1988, %v1996
        %v1998 = vsub.s32 0, %v1997
        %v1999 = vsel %vm1986, %v1998, %v1997
        %vm2000 = vcmp.lt.s32.totalorder %v1845, 0
        %v2001 = vsub.s32 0, %v1845
        %v2002 = vsel %vm2000, %v2001, %v1845
        %v2003 = vmul.u32.u64.compose %v2002, 2454267026
        %v2004 = vextract.low.u32 %v2003
        %v2005 = vextract.high.u32 %v2003
        %vm2006 = vc.u32 %v2004, 2454267026
        %v2007 = vsel %vm2006, 1, 0
        %v2008 = vadd.s32 %v2005, %v2007
        %v2009 = vshrl.u32 %v2008, 3
        %v2010 = vmul.u32 %v2009, 14
        %v2011 = vsub.s32 %v2002, %v2010
        %v2012 = vsub.s32 0, %v2011
        %v2013 = vsel %vm2000, %v2012, %v2011
        %vm2014 = vcmp.lt.s32.totalorder %v1846, 0
        %v2015 = vsub.s32 0, %v1846
        %v2016 = vsel %vm2014, %v2015, %v1846
        %v2017 = vmul.u32.u64.compose %v2016, 2454267026
        %v2018 = vextract.low.u32 %v2017
        %v2019 = vextract.high.u32 %v2017
        %vm2020 = vc.u32 %v2018, 2454267026
        %v2021 = vsel %vm2020, 1, 0
        %v2022 = vadd.s32 %v2019, %v2021
        %v2023 = vshrl.u32 %v2022, 3
        %v2024 = vmul.u32 %v2023, 14
        %v2025 = vsub.s32 %v2016, %v2024
        %v2026 = vsub.s32 0, %v2025
        %v2027 = vsel %vm2014, %v2026, %v2025
        %vm2028 = vcmp.lt.s32.totalorder %v1847, 0
        %v2029 = vsub.s32 0, %v1847
        %v2030 = vsel %vm2028, %v2029, %v1847
        %v2031 = vmul.u32.u64.compose %v2030, 2454267026
        %v2032 = vextract.low.u32 %v2031
        %v2033 = vextract.high.u32 %v2031
        %vm2034 = vc.u32 %v2032, 2454267026
        %v2035 = vsel %vm2034, 1, 0
        %v2036 = vadd.s32 %v2033, %v2035
        %v2037 = vshrl.u32 %v2036, 3
        %v2038 = vmul.u32 %v2037, 14
        %v2039 = vsub.s32 %v2030, %v2038
        %v2040 = vsub.s32 0, %v2039
        %v2041 = vsel %vm2028, %v2040, %v2039
        %vm2042 = vcmp.lt.s32.totalorder %v1848, 0
        %v2043 = vsub.s32 0, %v1848
        %v2044 = vsel %vm2042, %v2043, %v1848
        %v2045 = vmul.u32.u64.compose %v2044, 2454267026
        %v2046 = vextract.low.u32 %v2045
        %v2047 = vextract.high.u32 %v2045
        %vm2048 = vc.u32 %v2046, 2454267026
        %v2049 = vsel %vm2048, 1, 0
        %v2050 = vadd.s32 %v2047, %v2049
        %v2051 = vshrl.u32 %v2050, 3
        %v2052 = vmul.u32 %v2051, 14
        %v2053 = vsub.s32 %v2044, %v2052
        %v2054 = vsub.s32 0, %v2053
        %v2055 = vsel %vm2042, %v2054, %v2053
        %vm2056 = vcmp.lt.s32.totalorder %v1849, 0
        %v2057 = vsub.s32 0, %v1849
        %v2058 = vsel %vm2056, %v2057, %v1849
        %v2059 = vmul.u32.u64.compose %v2058, 2454267026
        %v2060 = vextract.low.u32 %v2059
        %v2061 = vextract.high.u32 %v2059
        %vm2062 = vc.u32 %v2060, 2454267026
        %v2063 = vsel %vm2062, 1, 0
        %v2064 = vadd.s32 %v2061, %v2063
        %v2065 = vshrl.u32 %v2064, 3
        %v2066 = vmul.u32 %v2065, 14
        %v2067 = vsub.s32 %v2058, %v2066
        %v2068 = vsub.s32 0, %v2067
        %v2069 = vsel %vm2056, %v2068, %v2067
        %vm2070 = vcmp.lt.s32.totalorder %v1850, 0
        %v2071 = vsub.s32 0, %v1850
        %v2072 = vsel %vm2070, %v2071, %v1850
        %v2073 = vmul.u32.u64.compose %v2072, 2454267026
        %v2074 = vextract.low.u32 %v2073
        %v2075 = vextract.high.u32 %v2073
        %vm2076 = vc.u32 %v2074, 2454267026
        %v2077 = vsel %vm2076, 1, 0
        %v2078 = vadd.s32 %v2075, %v2077
        %v2079 = vshrl.u32 %v2078, 3
        %v2080 = vmul.u32 %v2079, 14
        %v2081 = vsub.s32 %v2072, %v2080
        %v2082 = vsub.s32 0, %v2081
        %v2083 = vsel %vm2070, %v2082, %v2081
        %vm2084 = vcmp.lt.s32.totalorder %v1851, 0
        %v2085 = vsub.s32 0, %v1851
        %v2086 = vsel %vm2084, %v2085, %v1851
        %v2087 = vmul.u32.u64.compose %v2086, 2454267026
        %v2088 = vextract.low.u32 %v2087
        %v2089 = vextract.high.u32 %v2087
        %vm2090 = vc.u32 %v2088, 2454267026
        %v2091 = vsel %vm2090, 1, 0
        %v2092 = vadd.s32 %v2089, %v2091
        %v2093 = vshrl.u32 %v2092, 3
        %v2094 = vmul.u32 %v2093, 14
        %v2095 = vsub.s32 %v2086, %v2094
        %v2096 = vsub.s32 0, %v2095
        %v2097 = vsel %vm2084, %v2096, %v2095
        %vm2098 = vcmp.lt.s32.totalorder %v1852, 0
        %v2099 = vsub.s32 0, %v1852
        %v2100 = vsel %vm2098, %v2099, %v1852
        %v2101 = vmul.u32.u64.compose %v2100, 2454267026
        %v2102 = vextract.low.u32 %v2101
        %v2103 = vextract.high.u32 %v2101
        %vm2104 = vc.u32 %v2102, 2454267026
        %v2105 = vsel %vm2104, 1, 0
        %v2106 = vadd.s32 %v2103, %v2105
        %v2107 = vshrl.u32 %v2106, 3
        %v2108 = vmul.u32 %v2107, 14
        %v2109 = vsub.s32 %v2100, %v2108
        %v2110 = vsub.s32 0, %v2109
        %v2111 = vsel %vm2098, %v2110, %v2109
        %vm2112 = vcmp.lt.s32.totalorder %v1853, 0
        %v2113 = vsub.s32 0, %v1853
        %v2114 = vsel %vm2112, %v2113, %v1853
        %v2115 = vmul.u32.u64.compose %v2114, 2454267026
        %v2116 = vextract.low.u32 %v2115
        %v2117 = vextract.high.u32 %v2115
        %vm2118 = vc.u32 %v2116, 2454267026
        %v2119 = vsel %vm2118, 1, 0
        %v2120 = vadd.s32 %v2117, %v2119
        %v2121 = vshrl.u32 %v2120, 3
        %v2122 = vmul.u32 %v2121, 14
        %v2123 = vsub.s32 %v2114, %v2122
        %v2124 = vsub.s32 0, %v2123
        %v2125 = vsel %vm2112, %v2124, %v2123
        %vm2126 = vcmp.lt.s32.totalorder %v1854, 0
        %v2127 = vsub.s32 0, %v1854
        %v2128 = vsel %vm2126, %v2127, %v1854
        %v2129 = vmul.u32.u64.compose %v2128, 2454267026
        %v2130 = vextract.low.u32 %v2129
        %v2131 = vextract.high.u32 %v2129
        %vm2132 = vc.u32 %v2130, 2454267026
        %v2133 = vsel %vm2132, 1, 0
        %v2134 = vadd.s32 %v2131, %v2133
        %v2135 = vshrl.u32 %v2134, 3
        %v2136 = vmul.u32 %v2135, 14
        %v2137 = vsub.s32 %v2128, %v2136
        %v2138 = vsub.s32 0, %v2137
        %v2139 = vsel %vm2126, %v2138, %v2137
        %vm2140 = vcmp.lt.s32.totalorder %v1855, 0
        %v2141 = vsub.s32 0, %v1855
        %v2142 = vsel %vm2140, %v2141, %v1855
        %v2143 = vmul.u32.u64.compose %v2142, 2454267026
        %v2144 = vextract.low.u32 %v2143
        %v2145 = vextract.high.u32 %v2143
        %vm2146 = vc.u32 %v2144, 2454267026
        %v2147 = vsel %vm2146, 1, 0
        %v2148 = vadd.s32 %v2145, %v2147
        %v2149 = vshrl.u32 %v2148, 3
        %v2150 = vmul.u32 %v2149, 14
        %v2151 = vsub.s32 %v2142, %v2150
        %v2152 = vsub.s32 0, %v2151
        %v2153 = vsel %vm2140, %v2152, %v2151
        %vm2154 = vcmp.lt.s32.totalorder %v1856, 0
        %v2155 = vsub.s32 0, %v1856
        %v2156 = vsel %vm2154, %v2155, %v1856
        %v2157 = vmul.u32.u64.compose %v2156, 2454267026
        %v2158 = vextract.low.u32 %v2157
        %v2159 = vextract.high.u32 %v2157
        %vm2160 = vc.u32 %v2158, 2454267026
        %v2161 = vsel %vm2160, 1, 0
        %v2162 = vadd.s32 %v2159, %v2161
        %v2163 = vshrl.u32 %v2162, 3
        %v2164 = vmul.u32 %v2163, 14
        %v2165 = vsub.s32 %v2156, %v2164
        %v2166 = vsub.s32 0, %v2165
        %v2167 = vsel %vm2154, %v2166, %v2165
        %vm2168 = vcmp.lt.s32.totalorder %v1857, 0
        %v2169 = vsub.s32 0, %v1857
        %v2170 = vsel %vm2168, %v2169, %v1857
        %v2171 = vmul.u32.u64.compose %v2170, 2454267026
        %v2172 = vextract.low.u32 %v2171
        %v2173 = vextract.high.u32 %v2171
        %vm2174 = vc.u32 %v2172, 2454267026
        %v2175 = vsel %vm2174, 1, 0
        %v2176 = vadd.s32 %v2173, %v2175
        %v2177 = vshrl.u32 %v2176, 3
        %v2178 = vmul.u32 %v2177, 14
        %v2179 = vsub.s32 %v2170, %v2178
        %v2180 = vsub.s32 0, %v2179
        %v2181 = vsel %vm2168, %v2180, %v2179
        %vm2182 = vcmp.lt.s32.totalorder %v1858, 0
        %v2183 = vsub.s32 0, %v1858
        %v2184 = vsel %vm2182, %v2183, %v1858
        %v2185 = vmul.u32.u64.compose %v2184, 2454267026
        %v2186 = vextract.low.u32 %v2185
        %v2187 = vextract.high.u32 %v2185
        %vm2188 = vc.u32 %v2186, 2454267026
        %v2189 = vsel %vm2188, 1, 0
        %v2190 = vadd.s32 %v2187, %v2189
        %v2191 = vshrl.u32 %v2190, 3
        %v2192 = vmul.u32 %v2191, 14
        %v2193 = vsub.s32 %v2184, %v2192
        %v2194 = vsub.s32 0, %v2193
        %v2195 = vsel %vm2182, %v2194, %v2193
        %vm2196 = vcmp.lt.s32.totalorder %v1859, 0
        %v2197 = vsub.s32 0, %v1859
        %v2198 = vsel %vm2196, %v2197, %v1859
        %v2199 = vmul.u32.u64.compose %v2198, 2454267026
        %v2200 = vextract.low.u32 %v2199
        %v2201 = vextract.high.u32 %v2199
        %vm2202 = vc.u32 %v2200, 2454267026
        %v2203 = vsel %vm2202, 1, 0
        %v2204 = vadd.s32 %v2201, %v2203
        %v2205 = vshrl.u32 %v2204, 3
        %v2206 = vmul.u32 %v2205, 14
        %v2207 = vsub.s32 %v2198, %v2206
        %v2208 = vsub.s32 0, %v2207
        %v2209 = vsel %vm2196, %v2208, %v2207
        %vm2210 = vcmp.ne.s32.totalorder %v1873, 0
        %vm2211 = vcmp.ne.s32.totalorder %v1887, 0
        %vm2212 = vcmp.ne.s32.totalorder %v1901, 0
        %vm2213 = vcmp.ne.s32.totalorder %v1915, 0
        %vm2214 = vcmp.ne.s32.totalorder %v1929, 0
        %vm2215 = vcmp.ne.s32.totalorder %v1943, 0
        %vm2216 = vcmp.ne.s32.totalorder %v1957, 0
        %vm2217 = vcmp.ne.s32.totalorder %v1971, 0
        %vm2218 = vcmp.ne.s32.totalorder %v1985, 0
        %vm2219 = vcmp.ne.s32.totalorder %v1999, 0
        %vm2220 = vcmp.ne.s32.totalorder %v2013, 0
        %vm2221 = vcmp.ne.s32.totalorder %v2027, 0
        %vm2222 = vcmp.ne.s32.totalorder %v2041, 0
        %vm2223 = vcmp.ne.s32.totalorder %v2055, 0
        %vm2224 = vcmp.ne.s32.totalorder %v2069, 0
        %vm2225 = vcmp.ne.s32.totalorder %v2083, 0
        %vm2226 = vcmp.ne.s32.totalorder %v2097, 0
        %vm2227 = vcmp.ne.s32.totalorder %v2111, 0
        %vm2228 = vcmp.ne.s32.totalorder %v2125, 0
        %vm2229 = vcmp.ne.s32.totalorder %v2139, 0
        %vm2230 = vcmp.ne.s32.totalorder %v2153, 0
        %vm2231 = vcmp.ne.s32.totalorder %v2167, 0
        %vm2232 = vcmp.ne.s32.totalorder %v2181, 0
        %vm2233 = vcmp.ne.s32.totalorder %v2195, 0
        %vm2234 = vcmp.ne.s32.totalorder %v2209, 0
        %vm2235 = vcmp.lt.s32.totalorder %v1873, 0
        %vm2236 = vcmp.lt.s32.totalorder %v1887, 0
        %vm2237 = vcmp.lt.s32.totalorder %v1901, 0
        %vm2238 = vcmp.lt.s32.totalorder %v1915, 0
        %vm2239 = vcmp.lt.s32.totalorder %v1929, 0
        %vm2240 = vcmp.lt.s32.totalorder %v1943, 0
        %vm2241 = vcmp.lt.s32.totalorder %v1957, 0
        %vm2242 = vcmp.lt.s32.totalorder %v1971, 0
        %vm2243 = vcmp.lt.s32.totalorder %v1985, 0
        %vm2244 = vcmp.lt.s32.totalorder %v1999, 0
        %vm2245 = vcmp.lt.s32.totalorder %v2013, 0
        %vm2246 = vcmp.lt.s32.totalorder %v2027, 0
        %vm2247 = vcmp.lt.s32.totalorder %v2041, 0
        %vm2248 = vcmp.lt.s32.totalorder %v2055, 0
        %vm2249 = vcmp.lt.s32.totalorder %v2069, 0
        %vm2250 = vcmp.lt.s32.totalorder %v2083, 0
        %vm2251 = vcmp.lt.s32.totalorder %v2097, 0
        %vm2252 = vcmp.lt.s32.totalorder %v2111, 0
        %vm2253 = vcmp.lt.s32.totalorder %v2125, 0
        %vm2254 = vcmp.lt.s32.totalorder %v2139, 0
        %vm2255 = vcmp.lt.s32.totalorder %v2153, 0
        %vm2256 = vcmp.lt.s32.totalorder %v2167, 0
        %vm2257 = vcmp.lt.s32.totalorder %v2181, 0
        %vm2258 = vcmp.lt.s32.totalorder %v2195, 0
        %vm2259 = vcmp.lt.s32.totalorder %v2209, 0
        %vm2260 = vmand %vm2235, %vm2210
        %vm2261 = vmand %vm2236, %vm2211
        %vm2262 = vmand %vm2237, %vm2212
        %vm2263 = vmand %vm2238, %vm2213
        %vm2264 = vmand %vm2239, %vm2214
        %vm2265 = vmand %vm2240, %vm2215
        %vm2266 = vmand %vm2241, %vm2216
        %vm2267 = vmand %vm2242, %vm2217
        %vm2268 = vmand %vm2243, %vm2218
        %vm2269 = vmand %vm2244, %vm2219
        %vm2270 = vmand %vm2245, %vm2220
        %vm2271 = vmand %vm2246, %vm2221
        %vm2272 = vmand %vm2247, %vm2222
        %vm2273 = vmand %vm2248, %vm2223
        %vm2274 = vmand %vm2249, %vm2224
        %vm2275 = vmand %vm2250, %vm2225
        %vm2276 = vmand %vm2251, %vm2226
        %vm2277 = vmand %vm2252, %vm2227
        %vm2278 = vmand %vm2253, %vm2228
        %vm2279 = vmand %vm2254, %vm2229
        %vm2280 = vmand %vm2255, %vm2230
        %vm2281 = vmand %vm2256, %vm2231
        %vm2282 = vmand %vm2257, %vm2232
        %vm2283 = vmand %vm2258, %vm2233
        %vm2284 = vmand %vm2259, %vm2234
        %v2285 = vadd.s32 %v1873, 14
        %v2286 = vadd.s32 %v1887, 14
        %v2287 = vadd.s32 %v1901, 14
        %v2288 = vadd.s32 %v1915, 14
        %v2289 = vadd.s32 %v1929, 14
        %v2290 = vadd.s32 %v1943, 14
        %v2291 = vadd.s32 %v1957, 14
        %v2292 = vadd.s32 %v1971, 14
        %v2293 = vadd.s32 %v1985, 14
        %v2294 = vadd.s32 %v1999, 14
        %v2295 = vadd.s32 %v2013, 14
        %v2296 = vadd.s32 %v2027, 14
        %v2297 = vadd.s32 %v2041, 14
        %v2298 = vadd.s32 %v2055, 14
        %v2299 = vadd.s32 %v2069, 14
        %v2300 = vadd.s32 %v2083, 14
        %v2301 = vadd.s32 %v2097, 14
        %v2302 = vadd.s32 %v2111, 14
        %v2303 = vadd.s32 %v2125, 14
        %v2304 = vadd.s32 %v2139, 14
        %v2305 = vadd.s32 %v2153, 14
        %v2306 = vadd.s32 %v2167, 14
        %v2307 = vadd.s32 %v2181, 14
        %v2308 = vadd.s32 %v2195, 14
        %v2309 = vadd.s32 %v2209, 14
        %v2310 = vsel %vm2260, %v2285, %v1873
        %v2311 = vsel %vm2261, %v2286, %v1887
        %v2312 = vsel %vm2262, %v2287, %v1901
        %v2313 = vsel %vm2263, %v2288, %v1915
        %v2314 = vsel %vm2264, %v2289, %v1929
        %v2315 = vsel %vm2265, %v2290, %v1943
        %v2316 = vsel %vm2266, %v2291, %v1957
        %v2317 = vsel %vm2267, %v2292, %v1971
        %v2318 = vsel %vm2268, %v2293, %v1985
        %v2319 = vsel %vm2269, %v2294, %v1999
        %v2320 = vsel %vm2270, %v2295, %v2013
        %v2321 = vsel %vm2271, %v2296, %v2027
        %v2322 = vsel %vm2272, %v2297, %v2041
        %v2323 = vsel %vm2273, %v2298, %v2055
        %v2324 = vsel %vm2274, %v2299, %v2069
        %v2325 = vsel %vm2275, %v2300, %v2083
        %v2326 = vsel %vm2276, %v2301, %v2097
        %v2327 = vsel %vm2277, %v2302, %v2111
        %v2328 = vsel %vm2278, %v2303, %v2125
        %v2329 = vsel %vm2279, %v2304, %v2139
        %v2330 = vsel %vm2280, %v2305, %v2153
        %v2331 = vsel %vm2281, %v2306, %v2167
        %v2332 = vsel %vm2282, %v2307, %v2181
        %v2333 = vsel %vm2283, %v2308, %v2195
        %v2334 = vsel %vm2284, %v2309, %v2209
        %vm2335 = vcmp.ne.s32.totalorder %v2310, 0
        %vm2336 = vcmp.ne.s32.totalorder %v2311, 0
        %vm2337 = vcmp.ne.s32.totalorder %v2312, 0
        %vm2338 = vcmp.ne.s32.totalorder %v2313, 0
        %vm2339 = vcmp.ne.s32.totalorder %v2314, 0
        %vm2340 = vcmp.ne.s32.totalorder %v2315, 0
        %vm2341 = vcmp.ne.s32.totalorder %v2316, 0
        %vm2342 = vcmp.ne.s32.totalorder %v2317, 0
        %vm2343 = vcmp.ne.s32.totalorder %v2318, 0
        %vm2344 = vcmp.ne.s32.totalorder %v2319, 0
        %vm2345 = vcmp.ne.s32.totalorder %v2320, 0
        %vm2346 = vcmp.ne.s32.totalorder %v2321, 0
        %vm2347 = vcmp.ne.s32.totalorder %v2322, 0
        %vm2348 = vcmp.ne.s32.totalorder %v2323, 0
        %vm2349 = vcmp.ne.s32.totalorder %v2324, 0
        %vm2350 = vcmp.ne.s32.totalorder %v2325, 0
        %vm2351 = vcmp.ne.s32.totalorder %v2326, 0
        %vm2352 = vcmp.ne.s32.totalorder %v2327, 0
        %vm2353 = vcmp.ne.s32.totalorder %v2328, 0
        %vm2354 = vcmp.ne.s32.totalorder %v2329, 0
        %vm2355 = vcmp.ne.s32.totalorder %v2330, 0
        %vm2356 = vcmp.ne.s32.totalorder %v2331, 0
        %vm2357 = vcmp.ne.s32.totalorder %v2332, 0
        %vm2358 = vcmp.ne.s32.totalorder %v2333, 0
        %vm2359 = vcmp.ne.s32.totalorder %v2334, 0
        %vm2360 = vcmp.ne.s32.totalorder %v2310, 13
        %vm2361 = vcmp.ne.s32.totalorder %v2311, 13
        %vm2362 = vcmp.ne.s32.totalorder %v2312, 13
        %vm2363 = vcmp.ne.s32.totalorder %v2313, 13
        %vm2364 = vcmp.ne.s32.totalorder %v2314, 13
        %vm2365 = vcmp.ne.s32.totalorder %v2315, 13
        %vm2366 = vcmp.ne.s32.totalorder %v2316, 13
        %vm2367 = vcmp.ne.s32.totalorder %v2317, 13
        %vm2368 = vcmp.ne.s32.totalorder %v2318, 13
        %vm2369 = vcmp.ne.s32.totalorder %v2319, 13
        %vm2370 = vcmp.ne.s32.totalorder %v2320, 13
        %vm2371 = vcmp.ne.s32.totalorder %v2321, 13
        %vm2372 = vcmp.ne.s32.totalorder %v2322, 13
        %vm2373 = vcmp.ne.s32.totalorder %v2323, 13
        %vm2374 = vcmp.ne.s32.totalorder %v2324, 13
        %vm2375 = vcmp.ne.s32.totalorder %v2325, 13
        %vm2376 = vcmp.ne.s32.totalorder %v2326, 13
        %vm2377 = vcmp.ne.s32.totalorder %v2327, 13
        %vm2378 = vcmp.ne.s32.totalorder %v2328, 13
        %vm2379 = vcmp.ne.s32.totalorder %v2329, 13
        %vm2380 = vcmp.ne.s32.totalorder %v2330, 13
        %vm2381 = vcmp.ne.s32.totalorder %v2331, 13
        %vm2382 = vcmp.ne.s32.totalorder %v2332, 13
        %vm2383 = vcmp.ne.s32.totalorder %v2333, 13
        %vm2384 = vcmp.ne.s32.totalorder %v2334, 13
        %v2385 = vsel %vm2335, 1, 0
        %v2386 = vsel %vm2336, 1, 0
        %v2387 = vsel %vm2337, 1, 0
        %v2388 = vsel %vm2338, 1, 0
        %v2389 = vsel %vm2339, 1, 0
        %v2390 = vsel %vm2340, 1, 0
        %v2391 = vsel %vm2341, 1, 0
        %v2392 = vsel %vm2342, 1, 0
        %v2393 = vsel %vm2343, 1, 0
        %v2394 = vsel %vm2344, 1, 0
        %v2395 = vsel %vm2345, 1, 0
        %v2396 = vsel %vm2346, 1, 0
        %v2397 = vsel %vm2347, 1, 0
        %v2398 = vsel %vm2348, 1, 0
        %v2399 = vsel %vm2349, 1, 0
        %v2400 = vsel %vm2350, 1, 0
        %v2401 = vsel %vm2351, 1, 0
        %v2402 = vsel %vm2352, 1, 0
        %v2403 = vsel %vm2353, 1, 0
        %v2404 = vsel %vm2354, 1, 0
        %v2405 = vsel %vm2355, 1, 0
        %v2406 = vsel %vm2356, 1, 0
        %v2407 = vsel %vm2357, 1, 0
        %v2408 = vsel %vm2358, 1, 0
        %v2409 = vsel %vm2359, 1, 0
        %vm2410 = vcmp.eq.s32.totalorder %v2385, 1
        %vm2411 = vcmp.eq.s32.totalorder %v2386, 1
        %vm2412 = vcmp.eq.s32.totalorder %v2387, 1
        %vm2413 = vcmp.eq.s32.totalorder %v2388, 1
        %vm2414 = vcmp.eq.s32.totalorder %v2389, 1
        %vm2415 = vcmp.eq.s32.totalorder %v2390, 1
        %vm2416 = vcmp.eq.s32.totalorder %v2391, 1
        %vm2417 = vcmp.eq.s32.totalorder %v2392, 1
        %vm2418 = vcmp.eq.s32.totalorder %v2393, 1
        %vm2419 = vcmp.eq.s32.totalorder %v2394, 1
        %vm2420 = vcmp.eq.s32.totalorder %v2395, 1
        %vm2421 = vcmp.eq.s32.totalorder %v2396, 1
        %vm2422 = vcmp.eq.s32.totalorder %v2397, 1
        %vm2423 = vcmp.eq.s32.totalorder %v2398, 1
        %vm2424 = vcmp.eq.s32.totalorder %v2399, 1
        %vm2425 = vcmp.eq.s32.totalorder %v2400, 1
        %vm2426 = vcmp.eq.s32.totalorder %v2401, 1
        %vm2427 = vcmp.eq.s32.totalorder %v2402, 1
        %vm2428 = vcmp.eq.s32.totalorder %v2403, 1
        %vm2429 = vcmp.eq.s32.totalorder %v2404, 1
        %vm2430 = vcmp.eq.s32.totalorder %v2405, 1
        %vm2431 = vcmp.eq.s32.totalorder %v2406, 1
        %vm2432 = vcmp.eq.s32.totalorder %v2407, 1
        %vm2433 = vcmp.eq.s32.totalorder %v2408, 1
        %vm2434 = vcmp.eq.s32.totalorder %v2409, 1
        %vm2435 = vmpackc.low %vm2410, %vm2410
        %vm2436 = vmpackc.low %vm2411, %vm2411
        %vm2437 = vmpackc.low %vm2412, %vm2412
        %vm2438 = vmpackc.low %vm2413, %vm2413
        %vm2439 = vmpackc.low %vm2414, %vm2414
        %vm2440 = vmpackc.low %vm2415, %vm2415
        %vm2441 = vmpackc.low %vm2416, %vm2416
        %vm2442 = vmpackc.low %vm2417, %vm2417
        %vm2443 = vmpackc.low %vm2418, %vm2418
        %vm2444 = vmpackc.low %vm2419, %vm2419
        %vm2445 = vmpackc.low %vm2420, %vm2420
        %vm2446 = vmpackc.low %vm2421, %vm2421
        %vm2447 = vmpackc.low %vm2422, %vm2422
        %vm2448 = vmpackc.low %vm2423, %vm2423
        %vm2449 = vmpackc.low %vm2424, %vm2424
        %vm2450 = vmpackc.low %vm2425, %vm2425
        %vm2451 = vmpackc.low %vm2426, %vm2426
        %vm2452 = vmpackc.low %vm2427, %vm2427
        %vm2453 = vmpackc.low %vm2428, %vm2428
        %vm2454 = vmpackc.low %vm2429, %vm2429
        %vm2455 = vmpackc.low %vm2430, %vm2430
        %vm2456 = vmpackc.low %vm2431, %vm2431
        %vm2457 = vmpackc.low %vm2432, %vm2432
        %vm2458 = vmpackc.low %vm2433, %vm2433
        %vm2459 = vmpackc.low %vm2434, %vm2434
        %v2460 = vsel %vm2435, 65537, 0
        %v2461 = vsel %vm2436, 65537, 0
        %v2462 = vsel %vm2437, 65537, 0
        %v2463 = vsel %vm2438, 65537, 0
        %v2464 = vsel %vm2439, 65537, 0
        %v2465 = vsel %vm2440, 65537, 0
        %v2466 = vsel %vm2441, 65537, 0
        %v2467 = vsel %vm2442, 65537, 0
        %v2468 = vsel %vm2443, 65537, 0
        %v2469 = vsel %vm2444, 65537, 0
        %v2470 = vsel %vm2445, 65537, 0
        %v2471 = vsel %vm2446, 65537, 0
        %v2472 = vsel %vm2447, 65537, 0
        %v2473 = vsel %vm2448, 65537, 0
        %v2474 = vsel %vm2449, 65537, 0
        %v2475 = vsel %vm2450, 65537, 0
        %v2476 = vsel %vm2451, 65537, 0
        %v2477 = vsel %vm2452, 65537, 0
        %v2478 = vsel %vm2453, 65537, 0
        %v2479 = vsel %vm2454, 65537, 0
        %v2480 = vsel %vm2455, 65537, 0
        %v2481 = vsel %vm2456, 65537, 0
        %v2482 = vsel %vm2457, 65537, 0
        %v2483 = vsel %vm2458, 65537, 0
        %v2484 = vsel %vm2459, 65537, 0
        %v2485 = vunpack.c.l.b16 %v2460
        %v2486 = vunpack.c.l.b16 %v2461
        %v2487 = vunpack.c.l.b16 %v2462
        %v2488 = vunpack.c.l.b16 %v2463
        %v2489 = vunpack.c.l.b16 %v2464
        %v2490 = vunpack.c.l.b16 %v2465
        %v2491 = vunpack.c.l.b16 %v2466
        %v2492 = vunpack.c.l.b16 %v2467
        %v2493 = vunpack.c.l.b16 %v2468
        %v2494 = vunpack.c.l.b16 %v2469
        %v2495 = vunpack.c.l.b16 %v2470
        %v2496 = vunpack.c.l.b16 %v2471
        %v2497 = vunpack.c.l.b16 %v2472
        %v2498 = vunpack.c.l.b16 %v2473
        %v2499 = vunpack.c.l.b16 %v2474
        %v2500 = vunpack.c.l.b16 %v2475
        %v2501 = vunpack.c.l.b16 %v2476
        %v2502 = vunpack.c.l.b16 %v2477
        %v2503 = vunpack.c.l.b16 %v2478
        %v2504 = vunpack.c.l.b16 %v2479
        %v2505 = vunpack.c.l.b16 %v2480
        %v2506 = vunpack.c.l.b16 %v2481
        %v2507 = vunpack.c.l.b16 %v2482
        %v2508 = vunpack.c.l.b16 %v2483
        %v2509 = vunpack.c.l.b16 %v2484
        %v2510 = vpack.c.b16 %v2486, %v2485
        %v2511 = vpack.c.b16 %v2488, %v2487
        %v2512 = vpack.c.b16 %v2490, %v2489
        %v2513 = vpack.c.b16 %v2492, %v2491
        %v2514 = vpack.c.b16 %v2494, %v2493
        %v2515 = vpack.c.b16 %v2496, %v2495
        %v2516 = vpack.c.b16 %v2498, %v2497
        %v2517 = vpack.c.b16 %v2500, %v2499
        %v2518 = vpack.c.b16 %v2502, %v2501
        %v2519 = vpack.c.b16 %v2504, %v2503
        %v2520 = vpack.c.b16 %v2506, %v2505
        %v2521 = vpack.c.b16 %v2508, %v2507
        %v2522 = vpack.c.b16 %v2509, %v2509
        %vm2523 = vsmask.f32 256
        %v2525 = vshrl.u32 %v2510, 16
        %v2527 = vrot.slane %v2525, 7
        %v2529 = vshrl.u32 %v2511, 16
        %v2531 = vrot.slane %v2529, 7
        %v2532 = vshll.u32 %v2511, 16
        %v2534 = vor.u32 %v2531, %v2532
        %v2535 = vsel %vm2523, %v2527, %v2534
        %v2537 = vshrl.u32 %v2512, 16
        %v2539 = vrot.slane %v2537, 7
        %v2540 = vshll.u32 %v2512, 16
        %v2542 = vor.u32 %v2539, %v2540
        %v2543 = vsel %vm2523, %v2531, %v2542
        %v2545 = vshrl.u32 %v2513, 16
        %v2547 = vrot.slane %v2545, 7
        %v2548 = vshll.u32 %v2513, 16
        %v2550 = vor.u32 %v2547, %v2548
        %v2551 = vsel %vm2523, %v2539, %v2550
        %v2553 = vshrl.u32 %v2514, 16
        %v2555 = vrot.slane %v2553, 7
        %v2556 = vshll.u32 %v2514, 16
        %v2558 = vor.u32 %v2555, %v2556
        %v2559 = vsel %vm2523, %v2547, %v2558
        %v2561 = vshrl.u32 %v2515, 16
        %v2563 = vrot.slane %v2561, 7
        %v2564 = vshll.u32 %v2515, 16
        %v2566 = vor.u32 %v2563, %v2564
        %v2567 = vsel %vm2523, %v2555, %v2566
        %v2569 = vshrl.u32 %v2516, 16
        %v2571 = vrot.slane %v2569, 7
        %v2572 = vshll.u32 %v2516, 16
        %v2574 = vor.u32 %v2571, %v2572
        %v2575 = vsel %vm2523, %v2563, %v2574
        %v2577 = vshrl.u32 %v2517, 16
        %v2579 = vrot.slane %v2577, 7
        %v2580 = vshll.u32 %v2517, 16
        %v2582 = vor.u32 %v2579, %v2580
        %v2583 = vsel %vm2523, %v2571, %v2582
        %v2585 = vshrl.u32 %v2518, 16
        %v2587 = vrot.slane %v2585, 7
        %v2588 = vshll.u32 %v2518, 16
        %v2590 = vor.u32 %v2587, %v2588
        %v2591 = vsel %vm2523, %v2579, %v2590
        %v2593 = vshrl.u32 %v2519, 16
        %v2595 = vrot.slane %v2593, 7
        %v2596 = vshll.u32 %v2519, 16
        %v2598 = vor.u32 %v2595, %v2596
        %v2599 = vsel %vm2523, %v2587, %v2598
        %v2601 = vshrl.u32 %v2520, 16
        %v2603 = vrot.slane %v2601, 7
        %v2604 = vshll.u32 %v2520, 16
        %v2606 = vor.u32 %v2603, %v2604
        %v2607 = vsel %vm2523, %v2595, %v2606
        %v2609 = vshrl.u32 %v2521, 16
        %v2611 = vrot.slane %v2609, 7
        %v2612 = vshll.u32 %v2521, 16
        %v2614 = vor.u32 %v2611, %v2612
        %v2615 = vsel %vm2523, %v2603, %v2614
        %v2617 = vshrl.u32 %v2522, 16
        %v2619 = vrot.slane %v2617, 7
        %v2620 = vshll.u32 %v2522, 16
        %v2622 = vor.u32 %v2619, %v2620
        %v2623 = vsel %vm2523, %v2611, %v2622
        %vm2624 = vcmp.ne.s16.totalorder %v2535, 0
        %vm2625 = vcmp.ne.s16.totalorder %v2543, 0
        %vm2626 = vcmp.ne.s16.totalorder %v2551, 0
        %vm2627 = vcmp.ne.s16.totalorder %v2559, 0
        %vm2628 = vcmp.ne.s16.totalorder %v2567, 0
        %vm2629 = vcmp.ne.s16.totalorder %v2575, 0
        %vm2630 = vcmp.ne.s16.totalorder %v2583, 0
        %vm2631 = vcmp.ne.s16.totalorder %v2591, 0
        %vm2632 = vcmp.ne.s16.totalorder %v2599, 0
        %vm2633 = vcmp.ne.s16.totalorder %v2607, 0
        %vm2634 = vcmp.ne.s16.totalorder %v2615, 0
        %vm2635 = vcmp.ne.s16.totalorder %v2623, 0
        %v2636 = vsel %vm2624, %v1816, 0
        %v2637 = vsel %vm2625, %v1817, 0
        %v2638 = vsel %vm2626, %v1818, 0
        %v2639 = vsel %vm2627, %v1819, 0
        %v2640 = vsel %vm2628, %v1820, 0
        %v2641 = vsel %vm2629, %v1821, 0
        %v2642 = vsel %vm2630, %v1822, 0
        %v2643 = vsel %vm2631, %v1823, 0
        %v2644 = vsel %vm2632, %v1824, 0
        %v2645 = vsel %vm2633, %v1825, 0
        %v2646 = vsel %vm2634, %v1826, 0
        %v2647 = vsel %vm2635, %v1827, 0
        %v2648 = vsel %vm2360, 1, 0
        %v2649 = vsel %vm2361, 1, 0
        %v2650 = vsel %vm2362, 1, 0
        %v2651 = vsel %vm2363, 1, 0
        %v2652 = vsel %vm2364, 1, 0
        %v2653 = vsel %vm2365, 1, 0
        %v2654 = vsel %vm2366, 1, 0
        %v2655 = vsel %vm2367, 1, 0
        %v2656 = vsel %vm2368, 1, 0
        %v2657 = vsel %vm2369, 1, 0
        %v2658 = vsel %vm2370, 1, 0
        %v2659 = vsel %vm2371, 1, 0
        %v2660 = vsel %vm2372, 1, 0
        %v2661 = vsel %vm2373, 1, 0
        %v2662 = vsel %vm2374, 1, 0
        %v2663 = vsel %vm2375, 1, 0
        %v2664 = vsel %vm2376, 1, 0
        %v2665 = vsel %vm2377, 1, 0
        %v2666 = vsel %vm2378, 1, 0
        %v2667 = vsel %vm2379, 1, 0
        %v2668 = vsel %vm2380, 1, 0
        %v2669 = vsel %vm2381, 1, 0
        %v2670 = vsel %vm2382, 1, 0
        %v2671 = vsel %vm2383, 1, 0
        %v2672 = vsel %vm2384, 1, 0
        %vm2673 = vcmp.eq.s32.totalorder %v2648, 1
        %vm2674 = vcmp.eq.s32.totalorder %v2649, 1
        %vm2675 = vcmp.eq.s32.totalorder %v2650, 1
        %vm2676 = vcmp.eq.s32.totalorder %v2651, 1
        %vm2677 = vcmp.eq.s32.totalorder %v2652, 1
        %vm2678 = vcmp.eq.s32.totalorder %v2653, 1
        %vm2679 = vcmp.eq.s32.totalorder %v2654, 1
        %vm2680 = vcmp.eq.s32.totalorder %v2655, 1
        %vm2681 = vcmp.eq.s32.totalorder %v2656, 1
        %vm2682 = vcmp.eq.s32.totalorder %v2657, 1
        %vm2683 = vcmp.eq.s32.totalorder %v2658, 1
        %vm2684 = vcmp.eq.s32.totalorder %v2659, 1
        %vm2685 = vcmp.eq.s32.totalorder %v2660, 1
        %vm2686 = vcmp.eq.s32.totalorder %v2661, 1
        %vm2687 = vcmp.eq.s32.totalorder %v2662, 1
        %vm2688 = vcmp.eq.s32.totalorder %v2663, 1
        %vm2689 = vcmp.eq.s32.totalorder %v2664, 1
        %vm2690 = vcmp.eq.s32.totalorder %v2665, 1
        %vm2691 = vcmp.eq.s32.totalorder %v2666, 1
        %vm2692 = vcmp.eq.s32.totalorder %v2667, 1
        %vm2693 = vcmp.eq.s32.totalorder %v2668, 1
        %vm2694 = vcmp.eq.s32.totalorder %v2669, 1
        %vm2695 = vcmp.eq.s32.totalorder %v2670, 1
        %vm2696 = vcmp.eq.s32.totalorder %v2671, 1
        %vm2697 = vcmp.eq.s32.totalorder %v2672, 1
        %vm2698 = vmpackc.low %vm2673, %vm2673
        %vm2699 = vmpackc.low %vm2674, %vm2674
        %vm2700 = vmpackc.low %vm2675, %vm2675
        %vm2701 = vmpackc.low %vm2676, %vm2676
        %vm2702 = vmpackc.low %vm2677, %vm2677
        %vm2703 = vmpackc.low %vm2678, %vm2678
        %vm2704 = vmpackc.low %vm2679, %vm2679
        %vm2705 = vmpackc.low %vm2680, %vm2680
        %vm2706 = vmpackc.low %vm2681, %vm2681
        %vm2707 = vmpackc.low %vm2682, %vm2682
        %vm2708 = vmpackc.low %vm2683, %vm2683
        %vm2709 = vmpackc.low %vm2684, %vm2684
        %vm2710 = vmpackc.low %vm2685, %vm2685
        %vm2711 = vmpackc.low %vm2686, %vm2686
        %vm2712 = vmpackc.low %vm2687, %vm2687
        %vm2713 = vmpackc.low %vm2688, %vm2688
        %vm2714 = vmpackc.low %vm2689, %vm2689
        %vm2715 = vmpackc.low %vm2690, %vm2690
        %vm2716 = vmpackc.low %vm2691, %vm2691
        %vm2717 = vmpackc.low %vm2692, %vm2692
        %vm2718 = vmpackc.low %vm2693, %vm2693
        %vm2719 = vmpackc.low %vm2694, %vm2694
        %vm2720 = vmpackc.low %vm2695, %vm2695
        %vm2721 = vmpackc.low %vm2696, %vm2696
        %vm2722 = vmpackc.low %vm2697, %vm2697
        %v2723 = vsel %vm2698, 65537, 0
        %v2724 = vsel %vm2699, 65537, 0
        %v2725 = vsel %vm2700, 65537, 0
        %v2726 = vsel %vm2701, 65537, 0
        %v2727 = vsel %vm2702, 65537, 0
        %v2728 = vsel %vm2703, 65537, 0
        %v2729 = vsel %vm2704, 65537, 0
        %v2730 = vsel %vm2705, 65537, 0
        %v2731 = vsel %vm2706, 65537, 0
        %v2732 = vsel %vm2707, 65537, 0
        %v2733 = vsel %vm2708, 65537, 0
        %v2734 = vsel %vm2709, 65537, 0
        %v2735 = vsel %vm2710, 65537, 0
        %v2736 = vsel %vm2711, 65537, 0
        %v2737 = vsel %vm2712, 65537, 0
        %v2738 = vsel %vm2713, 65537, 0
        %v2739 = vsel %vm2714, 65537, 0
        %v2740 = vsel %vm2715, 65537, 0
        %v2741 = vsel %vm2716, 65537, 0
        %v2742 = vsel %vm2717, 65537, 0
        %v2743 = vsel %vm2718, 65537, 0
        %v2744 = vsel %vm2719, 65537, 0
        %v2745 = vsel %vm2720, 65537, 0
        %v2746 = vsel %vm2721, 65537, 0
        %v2747 = vsel %vm2722, 65537, 0
        %v2748 = vunpack.c.l.b16 %v2723
        %v2749 = vunpack.c.l.b16 %v2724
        %v2750 = vunpack.c.l.b16 %v2725
        %v2751 = vunpack.c.l.b16 %v2726
        %v2752 = vunpack.c.l.b16 %v2727
        %v2753 = vunpack.c.l.b16 %v2728
        %v2754 = vunpack.c.l.b16 %v2729
        %v2755 = vunpack.c.l.b16 %v2730
        %v2756 = vunpack.c.l.b16 %v2731
        %v2757 = vunpack.c.l.b16 %v2732
        %v2758 = vunpack.c.l.b16 %v2733
        %v2759 = vunpack.c.l.b16 %v2734
        %v2760 = vunpack.c.l.b16 %v2735
        %v2761 = vunpack.c.l.b16 %v2736
        %v2762 = vunpack.c.l.b16 %v2737
        %v2763 = vunpack.c.l.b16 %v2738
        %v2764 = vunpack.c.l.b16 %v2739
        %v2765 = vunpack.c.l.b16 %v2740
        %v2766 = vunpack.c.l.b16 %v2741
        %v2767 = vunpack.c.l.b16 %v2742
        %v2768 = vunpack.c.l.b16 %v2743
        %v2769 = vunpack.c.l.b16 %v2744
        %v2770 = vunpack.c.l.b16 %v2745
        %v2771 = vunpack.c.l.b16 %v2746
        %v2772 = vunpack.c.l.b16 %v2747
        %v2773 = vpack.c.b16 %v2749, %v2748
        %v2774 = vpack.c.b16 %v2751, %v2750
        %v2775 = vpack.c.b16 %v2753, %v2752
        %v2776 = vpack.c.b16 %v2755, %v2754
        %v2777 = vpack.c.b16 %v2757, %v2756
        %v2778 = vpack.c.b16 %v2759, %v2758
        %v2779 = vpack.c.b16 %v2761, %v2760
        %v2780 = vpack.c.b16 %v2763, %v2762
        %v2781 = vpack.c.b16 %v2765, %v2764
        %v2782 = vpack.c.b16 %v2767, %v2766
        %v2783 = vpack.c.b16 %v2769, %v2768
        %v2784 = vpack.c.b16 %v2771, %v2770
        %v2785 = vpack.c.b16 %v2772, %v2772
        %vm2786 = vsmask.f32 1280
        %v2788 = vshrl.u32 %v2773, 16
        %v2790 = vrot.slane %v2788, 6
        %v2791 = vshll.u32 %v2773, 16
        %v2793 = vrot.slane %v2791, 7
        %v2794 = vor.u32 %v2790, %v2793
        %v2796 = vshrl.u32 %v2774, 16
        %v2798 = vrot.slane %v2796, 6
        %v2799 = vshll.u32 %v2774, 16
        %v2801 = vrot.slane %v2799, 7
        %v2802 = vor.u32 %v2798, %v2801
        %v2803 = vsel %vm2786, %v2794, %v2802
        %v2805 = vshrl.u32 %v2775, 16
        %v2807 = vrot.slane %v2805, 6
        %v2808 = vshll.u32 %v2775, 16
        %v2810 = vrot.slane %v2808, 7
        %v2811 = vor.u32 %v2807, %v2810
        %v2812 = vsel %vm2786, %v2802, %v2811
        %v2814 = vshrl.u32 %v2776, 16
        %v2816 = vrot.slane %v2814, 6
        %v2817 = vshll.u32 %v2776, 16
        %v2819 = vrot.slane %v2817, 7
        %v2820 = vor.u32 %v2816, %v2819
        %v2821 = vsel %vm2786, %v2811, %v2820
        %v2823 = vshrl.u32 %v2777, 16
        %v2825 = vrot.slane %v2823, 6
        %v2826 = vshll.u32 %v2777, 16
        %v2828 = vrot.slane %v2826, 7
        %v2829 = vor.u32 %v2825, %v2828
        %v2830 = vsel %vm2786, %v2820, %v2829
        %v2832 = vshrl.u32 %v2778, 16
        %v2834 = vrot.slane %v2832, 6
        %v2835 = vshll.u32 %v2778, 16
        %v2837 = vrot.slane %v2835, 7
        %v2838 = vor.u32 %v2834, %v2837
        %v2839 = vsel %vm2786, %v2829, %v2838
        %v2841 = vshrl.u32 %v2779, 16
        %v2843 = vrot.slane %v2841, 6
        %v2844 = vshll.u32 %v2779, 16
        %v2846 = vrot.slane %v2844, 7
        %v2847 = vor.u32 %v2843, %v2846
        %v2848 = vsel %vm2786, %v2838, %v2847
        %v2850 = vshrl.u32 %v2780, 16
        %v2852 = vrot.slane %v2850, 6
        %v2853 = vshll.u32 %v2780, 16
        %v2855 = vrot.slane %v2853, 7
        %v2856 = vor.u32 %v2852, %v2855
        %v2857 = vsel %vm2786, %v2847, %v2856
        %v2859 = vshrl.u32 %v2781, 16
        %v2861 = vrot.slane %v2859, 6
        %v2862 = vshll.u32 %v2781, 16
        %v2864 = vrot.slane %v2862, 7
        %v2865 = vor.u32 %v2861, %v2864
        %v2866 = vsel %vm2786, %v2856, %v2865
        %v2868 = vshrl.u32 %v2782, 16
        %v2870 = vrot.slane %v2868, 6
        %v2871 = vshll.u32 %v2782, 16
        %v2873 = vrot.slane %v2871, 7
        %v2874 = vor.u32 %v2870, %v2873
        %v2875 = vsel %vm2786, %v2865, %v2874
        %v2877 = vshrl.u32 %v2783, 16
        %v2879 = vrot.slane %v2877, 6
        %v2880 = vshll.u32 %v2783, 16
        %v2882 = vrot.slane %v2880, 7
        %v2883 = vor.u32 %v2879, %v2882
        %v2884 = vsel %vm2786, %v2874, %v2883
        %v2886 = vshrl.u32 %v2784, 16
        %v2888 = vrot.slane %v2886, 6
        %v2889 = vshll.u32 %v2784, 16
        %v2891 = vrot.slane %v2889, 7
        %v2892 = vor.u32 %v2888, %v2891
        %v2893 = vsel %vm2786, %v2883, %v2892
        %v2895 = vshrl.u32 %v2785, 16
        %v2897 = vrot.slane %v2895, 6
        %v2898 = vshll.u32 %v2785, 16
        %v2900 = vrot.slane %v2898, 7
        %v2901 = vor.u32 %v2897, %v2900
        %v2902 = vsel %vm2786, %v2892, %v2901
        %vm2903 = vcmp.ne.s16.totalorder %v2803, 0
        %vm2904 = vcmp.ne.s16.totalorder %v2812, 0
        %vm2905 = vcmp.ne.s16.totalorder %v2821, 0
        %vm2906 = vcmp.ne.s16.totalorder %v2830, 0
        %vm2907 = vcmp.ne.s16.totalorder %v2839, 0
        %vm2908 = vcmp.ne.s16.totalorder %v2848, 0
        %vm2909 = vcmp.ne.s16.totalorder %v2857, 0
        %vm2910 = vcmp.ne.s16.totalorder %v2866, 0
        %vm2911 = vcmp.ne.s16.totalorder %v2875, 0
        %vm2912 = vcmp.ne.s16.totalorder %v2884, 0
        %vm2913 = vcmp.ne.s16.totalorder %v2893, 0
        %vm2914 = vcmp.ne.s16.totalorder %v2902, 0
        %v2915 = vsel %vm2903, %v1816, 0
        %v2916 = vsel %vm2904, %v1817, 0
        %v2917 = vsel %vm2905, %v1818, 0
        %v2918 = vsel %vm2906, %v1819, 0
        %v2919 = vsel %vm2907, %v1820, 0
        %v2920 = vsel %vm2908, %v1821, 0
        %v2921 = vsel %vm2909, %v1822, 0
        %v2922 = vsel %vm2910, %v1823, 0
        %v2923 = vsel %vm2911, %v1824, 0
        %v2924 = vsel %vm2912, %v1825, 0
        %v2925 = vsel %vm2913, %v1826, 0
        %v2926 = vsel %vm2914, %v1827, 0
        %vm2927 = vsmask.f32 7424
        %v2928 = vshll.u32 %v2510, 16
        %v2930 = vrot.slane %v2928, 1
        %v2931 = vor.u32 %v2525, %v2930
        %v2932 = vrot.slane %v2532, 1
        %v2933 = vsel %vm2927, %v2931, %v2932
        %v2934 = vor.u32 %v2529, %v2932
        %v2935 = vrot.slane %v2540, 1
        %v2936 = vsel %vm2927, %v2934, %v2935
        %v2937 = vor.u32 %v2537, %v2935
        %v2938 = vrot.slane %v2548, 1
        %v2939 = vsel %vm2927, %v2937, %v2938
        %v2940 = vor.u32 %v2545, %v2938
        %v2941 = vrot.slane %v2556, 1
        %v2942 = vsel %vm2927, %v2940, %v2941
        %v2943 = vor.u32 %v2553, %v2941
        %v2944 = vrot.slane %v2564, 1
        %v2945 = vsel %vm2927, %v2943, %v2944
        %v2946 = vor.u32 %v2561, %v2944
        %v2947 = vrot.slane %v2572, 1
        %v2948 = vsel %vm2927, %v2946, %v2947
        %v2949 = vor.u32 %v2569, %v2947
        %v2950 = vrot.slane %v2580, 1
        %v2951 = vsel %vm2927, %v2949, %v2950
        %v2952 = vor.u32 %v2577, %v2950
        %v2953 = vrot.slane %v2588, 1
        %v2954 = vsel %vm2927, %v2952, %v2953
        %v2955 = vor.u32 %v2585, %v2953
        %v2956 = vrot.slane %v2596, 1
        %v2957 = vsel %vm2927, %v2955, %v2956
        %v2958 = vor.u32 %v2593, %v2956
        %v2959 = vrot.slane %v2604, 1
        %v2960 = vsel %vm2927, %v2958, %v2959
        %v2961 = vor.u32 %v2601, %v2959
        %v2962 = vrot.slane %v2612, 1
        %v2963 = vsel %vm2927, %v2961, %v2962
        %v2964 = vor.u32 %v2609, %v2962
        %v2965 = vrot.slane %v2620, 1
        %v2966 = vsel %vm2927, %v2964, %v2965
        %v2967 = vor.u32 %v2617, %v2965
        %vm2968 = vcmp.ne.s16.totalorder %v2933, 0
        %vm2969 = vcmp.ne.s16.totalorder %v2936, 0
        %vm2970 = vcmp.ne.s16.totalorder %v2939, 0
        %vm2971 = vcmp.ne.s16.totalorder %v2942, 0
        %vm2972 = vcmp.ne.s16.totalorder %v2945, 0
        %vm2973 = vcmp.ne.s16.totalorder %v2948, 0
        %vm2974 = vcmp.ne.s16.totalorder %v2951, 0
        %vm2975 = vcmp.ne.s16.totalorder %v2954, 0
        %vm2976 = vcmp.ne.s16.totalorder %v2957, 0
        %vm2977 = vcmp.ne.s16.totalorder %v2960, 0
        %vm2978 = vcmp.ne.s16.totalorder %v2963, 0
        %vm2979 = vcmp.ne.s16.totalorder %v2966, 0
        %vm2980 = vcmp.ne.s16.totalorder %v2967, 0
        %v2981 = vsel %vm2968, %v1816, 0
        %v2982 = vsel %vm2969, %v1817, 0
        %v2983 = vsel %vm2970, %v1818, 0
        %v2984 = vsel %vm2971, %v1819, 0
        %v2985 = vsel %vm2972, %v1820, 0
        %v2986 = vsel %vm2973, %v1821, 0
        %v2987 = vsel %vm2974, %v1822, 0
        %v2988 = vsel %vm2975, %v1823, 0
        %v2989 = vsel %vm2976, %v1824, 0
        %v2990 = vsel %vm2977, %v1825, 0
        %v2991 = vsel %vm2978, %v1826, 0
        %v2992 = vsel %vm2979, %v1827, 0
        %v2993 = vsel %vm2980, %v1832, 0
        %v2994 = vrot.slane %v2788, 7
        %v2995 = vor.u32 %v2994, %v2791
        %v2996 = vrot.slane %v2796, 7
        %v2997 = vor.u32 %v2996, %v2799
        %v2998 = vsel %vm2523, %v2994, %v2997
        %v2999 = vrot.slane %v2805, 7
        %v3000 = vor.u32 %v2999, %v2808
        %v3001 = vsel %vm2523, %v2996, %v3000
        %v3002 = vrot.slane %v2814, 7
        %v3003 = vor.u32 %v3002, %v2817
        %v3004 = vsel %vm2523, %v2999, %v3003
        %v3005 = vrot.slane %v2823, 7
        %v3006 = vor.u32 %v3005, %v2826
        %v3007 = vsel %vm2523, %v3002, %v3006
        %v3008 = vrot.slane %v2832, 7
        %v3009 = vor.u32 %v3008, %v2835
        %v3010 = vsel %vm2523, %v3005, %v3009
        %v3011 = vrot.slane %v2841, 7
        %v3012 = vor.u32 %v3011, %v2844
        %v3013 = vsel %vm2523, %v3008, %v3012
        %v3014 = vrot.slane %v2850, 7
        %v3015 = vor.u32 %v3014, %v2853
        %v3016 = vsel %vm2523, %v3011, %v3015
        %v3017 = vrot.slane %v2859, 7
        %v3018 = vor.u32 %v3017, %v2862
        %v3019 = vsel %vm2523, %v3014, %v3018
        %v3020 = vrot.slane %v2868, 7
        %v3021 = vor.u32 %v3020, %v2871
        %v3022 = vsel %vm2523, %v3017, %v3021
        %v3023 = vrot.slane %v2877, 7
        %v3024 = vor.u32 %v3023, %v2880
        %v3025 = vsel %vm2523, %v3020, %v3024
        %v3026 = vrot.slane %v2886, 7
        %v3027 = vor.u32 %v3026, %v2889
        %v3028 = vsel %vm2523, %v3023, %v3027
        %v3029 = vrot.slane %v2895, 7
        %v3030 = vor.u32 %v3029, %v2898
        %v3031 = vsel %vm2523, %v3026, %v3030
        %vm3032 = vcmp.ne.s16.totalorder %v2995, 0
        %vm3033 = vcmp.ne.s16.totalorder %v2998, 0
        %vm3034 = vcmp.ne.s16.totalorder %v3001, 0
        %vm3035 = vcmp.ne.s16.totalorder %v3004, 0
        %vm3036 = vcmp.ne.s16.totalorder %v3007, 0
        %vm3037 = vcmp.ne.s16.totalorder %v3010, 0
        %vm3038 = vcmp.ne.s16.totalorder %v3013, 0
        %vm3039 = vcmp.ne.s16.totalorder %v3016, 0
        %vm3040 = vcmp.ne.s16.totalorder %v3019, 0
        %vm3041 = vcmp.ne.s16.totalorder %v3022, 0
        %vm3042 = vcmp.ne.s16.totalorder %v3025, 0
        %vm3043 = vcmp.ne.s16.totalorder %v3028, 0
        %vm3044 = vcmp.ne.s16.totalorder %v3031, 0
        %v3045 = vsel %vm3032, %v1816, 0
        %v3046 = vsel %vm3033, %v1817, 0
        %v3047 = vsel %vm3034, %v1818, 0
        %v3048 = vsel %vm3035, %v1819, 0
        %v3049 = vsel %vm3036, %v1820, 0
        %v3050 = vsel %vm3037, %v1821, 0
        %v3051 = vsel %vm3038, %v1822, 0
        %v3052 = vsel %vm3039, %v1823, 0
        %v3053 = vsel %vm3040, %v1824, 0
        %v3054 = vsel %vm3041, %v1825, 0
        %v3055 = vsel %vm3042, %v1826, 0
        %v3056 = vsel %vm3043, %v1827, 0
        %v3057 = vsel %vm3044, %v1832, 0
        %vm3058 = vsmask.f32 6400
        %v3059 = vrot.slane %v2525, 1
        %v3060 = vrot.slane %v2928, 2
        %v3061 = vor.u32 %v3059, %v3060
        %v3062 = vrot.slane %v2529, 1
        %v3063 = vrot.slane %v2532, 2
        %v3064 = vor.u32 %v3062, %v3063
        %v3065 = vsel %vm3058, %v3061, %v3064
        %v3066 = vrot.slane %v2537, 1
        %v3067 = vrot.slane %v2540, 2
        %v3068 = vor.u32 %v3066, %v3067
        %v3069 = vsel %vm3058, %v3064, %v3068
        %v3070 = vrot.slane %v2545, 1
        %v3071 = vrot.slane %v2548, 2
        %v3072 = vor.u32 %v3070, %v3071
        %v3073 = vsel %vm3058, %v3068, %v3072
        %v3074 = vrot.slane %v2553, 1
        %v3075 = vrot.slane %v2556, 2
        %v3076 = vor.u32 %v3074, %v3075
        %v3077 = vsel %vm3058, %v3072, %v3076
        %v3078 = vrot.slane %v2561, 1
        %v3079 = vrot.slane %v2564, 2
        %v3080 = vor.u32 %v3078, %v3079
        %v3081 = vsel %vm3058, %v3076, %v3080
        %v3082 = vrot.slane %v2569, 1
        %v3083 = vrot.slane %v2572, 2
        %v3084 = vor.u32 %v3082, %v3083
        %v3085 = vsel %vm3058, %v3080, %v3084
        %v3086 = vrot.slane %v2577, 1
        %v3087 = vrot.slane %v2580, 2
        %v3088 = vor.u32 %v3086, %v3087
        %v3089 = vsel %vm3058, %v3084, %v3088
        %v3090 = vrot.slane %v2585, 1
        %v3091 = vrot.slane %v2588, 2
        %v3092 = vor.u32 %v3090, %v3091
        %v3093 = vsel %vm3058, %v3088, %v3092
        %v3094 = vrot.slane %v2593, 1
        %v3095 = vrot.slane %v2596, 2
        %v3096 = vor.u32 %v3094, %v3095
        %v3097 = vsel %vm3058, %v3092, %v3096
        %v3098 = vrot.slane %v2601, 1
        %v3099 = vrot.slane %v2604, 2
        %v3100 = vor.u32 %v3098, %v3099
        %v3101 = vsel %vm3058, %v3096, %v3100
        %v3102 = vrot.slane %v2609, 1
        %v3103 = vrot.slane %v2612, 2
        %v3104 = vor.u32 %v3102, %v3103
        %v3105 = vsel %vm3058, %v3100, %v3104
        %v3106 = vrot.slane %v2617, 1
        %v3107 = vrot.slane %v2620, 2
        %v3108 = vor.u32 %v3106, %v3107
        %v3109 = vsel %vm3058, %v3104, %v3108
        %vm3110 = vcmp.ne.s16.totalorder %v3061, 0
        %vm3111 = vcmp.ne.s16.totalorder %v3065, 0
        %vm3112 = vcmp.ne.s16.totalorder %v3069, 0
        %vm3113 = vcmp.ne.s16.totalorder %v3073, 0
        %vm3114 = vcmp.ne.s16.totalorder %v3077, 0
        %vm3115 = vcmp.ne.s16.totalorder %v3081, 0
        %vm3116 = vcmp.ne.s16.totalorder %v3085, 0
        %vm3117 = vcmp.ne.s16.totalorder %v3089, 0
        %vm3118 = vcmp.ne.s16.totalorder %v3093, 0
        %vm3119 = vcmp.ne.s16.totalorder %v3097, 0
        %vm3120 = vcmp.ne.s16.totalorder %v3101, 0
        %vm3121 = vcmp.ne.s16.totalorder %v3105, 0
        %vm3122 = vcmp.ne.s16.totalorder %v3109, 0
        %v3123 = vsel %vm3110, %v1816, 0
        %v3124 = vsel %vm3111, %v1817, 0
        %v3125 = vsel %vm3112, %v1818, 0
        %v3126 = vsel %vm3113, %v1819, 0
        %v3127 = vsel %vm3114, %v1820, 0
        %v3128 = vsel %vm3115, %v1821, 0
        %v3129 = vsel %vm3116, %v1822, 0
        %v3130 = vsel %vm3117, %v1823, 0
        %v3131 = vsel %vm3118, %v1824, 0
        %v3132 = vsel %vm3119, %v1825, 0
        %v3133 = vsel %vm3120, %v1826, 0
        %v3134 = vsel %vm3121, %v1827, 0
        %v3135 = vsel %vm3122, %v1832, 0
        %v3136 = vrot.slane %v2791, 1
        %v3137 = vor.u32 %v2788, %v3136
        %v3138 = vrot.slane %v2799, 1
        %v3139 = vsel %vm2927, %v3137, %v3138
        %v3140 = vor.u32 %v2796, %v3138
        %v3141 = vrot.slane %v2808, 1
        %v3142 = vsel %vm2927, %v3140, %v3141
        %v3143 = vor.u32 %v2805, %v3141
        %v3144 = vrot.slane %v2817, 1
        %v3145 = vsel %vm2927, %v3143, %v3144
        %v3146 = vor.u32 %v2814, %v3144
        %v3147 = vrot.slane %v2826, 1
        %v3148 = vsel %vm2927, %v3146, %v3147
        %v3149 = vor.u32 %v2823, %v3147
        %v3150 = vrot.slane %v2835, 1
        %v3151 = vsel %vm2927, %v3149, %v3150
        %v3152 = vor.u32 %v2832, %v3150
        %v3153 = vrot.slane %v2844, 1
        %v3154 = vsel %vm2927, %v3152, %v3153
        %v3155 = vor.u32 %v2841, %v3153
        %v3156 = vrot.slane %v2853, 1
        %v3157 = vsel %vm2927, %v3155, %v3156
        %v3158 = vor.u32 %v2850, %v3156
        %v3159 = vrot.slane %v2862, 1
        %v3160 = vsel %vm2927, %v3158, %v3159
        %v3161 = vor.u32 %v2859, %v3159
        %v3162 = vrot.slane %v2871, 1
        %v3163 = vsel %vm2927, %v3161, %v3162
        %v3164 = vor.u32 %v2868, %v3162
        %v3165 = vrot.slane %v2880, 1
        %v3166 = vsel %vm2927, %v3164, %v3165
        %v3167 = vor.u32 %v2877, %v3165
        %v3168 = vrot.slane %v2889, 1
        %v3169 = vsel %vm2927, %v3167, %v3168
        %v3170 = vor.u32 %v2886, %v3168
        %v3171 = vrot.slane %v2898, 1
        %v3172 = vsel %vm2927, %v3170, %v3171
        %vm3173 = vcmp.ne.s16.totalorder %v3136, 0
        %vm3174 = vcmp.ne.s16.totalorder %v3139, 0
        %vm3175 = vcmp.ne.s16.totalorder %v3142, 0
        %vm3176 = vcmp.ne.s16.totalorder %v3145, 0
        %vm3177 = vcmp.ne.s16.totalorder %v3148, 0
        %vm3178 = vcmp.ne.s16.totalorder %v3151, 0
        %vm3179 = vcmp.ne.s16.totalorder %v3154, 0
        %vm3180 = vcmp.ne.s16.totalorder %v3157, 0
        %vm3181 = vcmp.ne.s16.totalorder %v3160, 0
        %vm3182 = vcmp.ne.s16.totalorder %v3163, 0
        %vm3183 = vcmp.ne.s16.totalorder %v3166, 0
        %vm3184 = vcmp.ne.s16.totalorder %v3169, 0
        %vm3185 = vcmp.ne.s16.totalorder %v3172, 0
        %v3186 = vsel %vm3173, %v1816, 0
        %v3187 = vsel %vm3174, %v1817, 0
        %v3188 = vsel %vm3175, %v1818, 0
        %v3189 = vsel %vm3176, %v1819, 0
        %v3190 = vsel %vm3177, %v1820, 0
        %v3191 = vsel %vm3178, %v1821, 0
        %v3192 = vsel %vm3179, %v1822, 0
        %v3193 = vsel %vm3180, %v1823, 0
        %v3194 = vsel %vm3181, %v1824, 0
        %v3195 = vsel %vm3182, %v1825, 0
        %v3196 = vsel %vm3183, %v1826, 0
        %v3197 = vsel %vm3184, %v1827, 0
        %v3198 = vsel %vm3185, %v1832, 0
        %v3199 = vshrl.u32 0, 16
        %v3201 = vshll.u32 0, 16
        %v3203 = vrot.slane %v3201, 1
        %v3204 = vor.u32 %v3199, %v3203
        %v3206 = vshll.u32 %v1816, 16
        %v3208 = vrot.slane %v3206, 1
        %v3209 = vsel %vm2927, %v3204, %v3208
        %v3210 = vshrl.u32 %v1816, 16
        %v3212 = vor.u32 %v3210, %v3208
        %v3214 = vshll.u32 %v1817, 16
        %v3216 = vrot.slane %v3214, 1
        %v3217 = vsel %vm2927, %v3212, %v3216
        %v3218 = vshrl.u32 %v1817, 16
        %v3220 = vor.u32 %v3218, %v3216
        %v3222 = vshll.u32 %v1818, 16
        %v3224 = vrot.slane %v3222, 1
        %v3225 = vsel %vm2927, %v3220, %v3224
        %v3226 = vshrl.u32 %v1818, 16
        %v3228 = vor.u32 %v3226, %v3224
        %v3230 = vshll.u32 %v1819, 16
        %v3232 = vrot.slane %v3230, 1
        %v3233 = vsel %vm2927, %v3228, %v3232
        %v3234 = vshrl.u32 %v1819, 16
        %v3236 = vor.u32 %v3234, %v3232
        %v3238 = vshll.u32 %v1820, 16
        %v3240 = vrot.slane %v3238, 1
        %v3241 = vsel %vm2927, %v3236, %v3240
        %v3242 = vshrl.u32 %v1820, 16
        %v3244 = vor.u32 %v3242, %v3240
        %v3246 = vshll.u32 %v1821, 16
        %v3248 = vrot.slane %v3246, 1
        %v3249 = vsel %vm2927, %v3244, %v3248
        %v3250 = vshrl.u32 %v1821, 16
        %v3252 = vor.u32 %v3250, %v3248
        %v3254 = vshll.u32 %v1822, 16
        %v3256 = vrot.slane %v3254, 1
        %v3257 = vsel %vm2927, %v3252, %v3256
        %v3258 = vshrl.u32 %v1822, 16
        %v3260 = vor.u32 %v3258, %v3256
        %v3262 = vshll.u32 %v1823, 16
        %v3264 = vrot.slane %v3262, 1
        %v3265 = vsel %vm2927, %v3260, %v3264
        %v3266 = vshrl.u32 %v1823, 16
        %v3268 = vor.u32 %v3266, %v3264
        %v3270 = vshll.u32 %v1824, 16
        %v3272 = vrot.slane %v3270, 1
        %v3273 = vsel %vm2927, %v3268, %v3272
        %v3274 = vshrl.u32 %v1824, 16
        %v3276 = vor.u32 %v3274, %v3272
        %v3278 = vshll.u32 %v1825, 16
        %v3280 = vrot.slane %v3278, 1
        %v3281 = vsel %vm2927, %v3276, %v3280
        %v3282 = vshrl.u32 %v1825, 16
        %v3284 = vor.u32 %v3282, %v3280
        %v3286 = vshll.u32 %v1826, 16
        %v3288 = vrot.slane %v3286, 1
        %v3289 = vsel %vm2927, %v3284, %v3288
        %v3290 = vshrl.u32 %v1826, 16
        %v3292 = vor.u32 %v3290, %v3288
        %v3294 = vshll.u32 %v1827, 16
        %v3296 = vrot.slane %v3294, 1
        %v3297 = vsel %vm2927, %v3292, %v3296
        %v3298 = vshrl.u32 %v1827, 16
        %v3300 = vor.u32 %v3298, %v3296
        %3301 = vrot.lane.b32.xlu0 %v3209, 8
        %v3302 = vpop.permute.xlu0 %3301
        %3303 = vrot.lane.b32.xlu0 %v3217, 8
        %v3304 = vpop.permute.xlu0 %3303
        %3305 = vrot.lane.b32.xlu0 %v3225, 8
        %v3306 = vpop.permute.xlu0 %3305
        %3307 = vrot.lane.b32.xlu0 %v3233, 8
        %v3308 = vpop.permute.xlu0 %3307
        %3309 = vrot.lane.b32.xlu0 %v3241, 8
        %v3310 = vpop.permute.xlu0 %3309
        %3311 = vrot.lane.b32.xlu0 %v3249, 8
        %v3312 = vpop.permute.xlu0 %3311
        %3313 = vrot.lane.b32.xlu0 %v3257, 8
        %v3314 = vpop.permute.xlu0 %3313
        %3315 = vrot.lane.b32.xlu0 %v3265, 8
        %v3316 = vpop.permute.xlu0 %3315
        %3317 = vrot.lane.b32.xlu0 %v3273, 8
        %v3318 = vpop.permute.xlu0 %3317
        %3319 = vrot.lane.b32.xlu0 %v3281, 8
        %v3320 = vpop.permute.xlu0 %3319
        %3321 = vrot.lane.b32.xlu0 %v3289, 8
        %v3322 = vpop.permute.xlu0 %3321
        %3323 = vrot.lane.b32.xlu0 %v3297, 8
        %v3324 = vpop.permute.xlu0 %3323
        %3325 = vrot.lane.b32.xlu0 %v3300, 8
        %v3326 = vpop.permute.xlu0 %3325
        %vm3340 = vcmask 1046528
        %v3341 = vrot.slane 0, 1
        %v3342 = vrot.slane %v2915, 1
        %v3343 = vsel %vm3340, %v3341, %v3342
        %v3344 = vrot.slane %v2916, 1
        %v3345 = vsel %vm3340, %v3342, %v3344
        %v3346 = vrot.slane %v2917, 1
        %v3347 = vsel %vm3340, %v3344, %v3346
        %v3348 = vrot.slane %v2918, 1
        %v3349 = vsel %vm3340, %v3346, %v3348
        %v3350 = vrot.slane %v2919, 1
        %v3351 = vsel %vm3340, %v3348, %v3350
        %v3352 = vrot.slane %v2920, 1
        %v3353 = vsel %vm3340, %v3350, %v3352
        %v3354 = vrot.slane %v2921, 1
        %v3355 = vsel %vm3340, %v3352, %v3354
        %v3356 = vrot.slane %v2922, 1
        %v3357 = vsel %vm3340, %v3354, %v3356
        %v3358 = vrot.slane %v2923, 1
        %v3359 = vsel %vm3340, %v3356, %v3358
        %v3360 = vrot.slane %v2924, 1
        %v3361 = vsel %vm3340, %v3358, %v3360
        %v3362 = vrot.slane %v2925, 1
        %v3363 = vsel %vm3340, %v3360, %v3362
        %v3364 = vrot.slane %v2926, 1
        %v3365 = vsel %vm3340, %v3362, %v3364
        %3366 = vrot.lane.b32.xlu0 %v3343, 16
        %v3367 = vpop.permute.xlu0 %3366
        %3368 = vrot.lane.b32.xlu0 %v3345, 16
        %v3369 = vpop.permute.xlu0 %3368
        %3370 = vrot.lane.b32.xlu0 %v3347, 16
        %v3371 = vpop.permute.xlu0 %3370
        %3372 = vrot.lane.b32.xlu0 %v3349, 16
        %v3373 = vpop.permute.xlu0 %3372
        %3374 = vrot.lane.b32.xlu0 %v3351, 16
        %v3375 = vpop.permute.xlu0 %3374
        %3376 = vrot.lane.b32.xlu0 %v3353, 16
        %v3377 = vpop.permute.xlu0 %3376
        %3378 = vrot.lane.b32.xlu0 %v3355, 16
        %v3379 = vpop.permute.xlu0 %3378
        %3380 = vrot.lane.b32.xlu0 %v3357, 16
        %v3381 = vpop.permute.xlu0 %3380
        %3382 = vrot.lane.b32.xlu0 %v3359, 16
        %v3383 = vpop.permute.xlu0 %3382
        %3384 = vrot.lane.b32.xlu0 %v3361, 16
        %v3385 = vpop.permute.xlu0 %3384
        %3386 = vrot.lane.b32.xlu0 %v3363, 16
        %v3387 = vpop.permute.xlu0 %3386
        %3388 = vrot.lane.b32.xlu0 %v3365, 16
        %v3389 = vpop.permute.xlu0 %3388
        %3390 = vrot.lane.b32.xlu0 %v3364, 16
        %v3391 = vpop.permute.xlu0 %3390
        %vm3405 = vcmask 1040384
        %v3406 = vrot.slane 0, 7
        %v3407 = vrot.slane %v2981, 7
        %v3408 = vsel %vm3405, %v3406, %v3407
        %v3409 = vrot.slane %v2982, 7
        %v3410 = vsel %vm3405, %v3407, %v3409
        %v3411 = vrot.slane %v2983, 7
        %v3412 = vsel %vm3405, %v3409, %v3411
        %v3413 = vrot.slane %v2984, 7
        %v3414 = vsel %vm3405, %v3411, %v3413
        %v3415 = vrot.slane %v2985, 7
        %v3416 = vsel %vm3405, %v3413, %v3415
        %v3417 = vrot.slane %v2986, 7
        %v3418 = vsel %vm3405, %v3415, %v3417
        %v3419 = vrot.slane %v2987, 7
        %v3420 = vsel %vm3405, %v3417, %v3419
        %v3421 = vrot.slane %v2988, 7
        %v3422 = vsel %vm3405, %v3419, %v3421
        %v3423 = vrot.slane %v2989, 7
        %v3424 = vsel %vm3405, %v3421, %v3423
        %v3425 = vrot.slane %v2990, 7
        %v3426 = vsel %vm3405, %v3423, %v3425
        %v3427 = vrot.slane %v2991, 7
        %v3428 = vsel %vm3405, %v3425, %v3427
        %v3429 = vrot.slane %v2992, 7
        %v3430 = vsel %vm3405, %v3427, %v3429
        %v3431 = vrot.slane %v2993, 7
        %v3432 = vsel %vm3405, %v3429, %v3431
        %3433 = vrot.lane.b32.xlu0 %v3408, 24
        %v3434 = vpop.permute.xlu0 %3433
        %3435 = vrot.lane.b32.xlu0 %v3410, 24
        %v3436 = vpop.permute.xlu0 %3435
        %3437 = vrot.lane.b32.xlu0 %v3412, 24
        %v3438 = vpop.permute.xlu0 %3437
        %3439 = vrot.lane.b32.xlu0 %v3414, 24
        %v3440 = vpop.permute.xlu0 %3439
        %3441 = vrot.lane.b32.xlu0 %v3416, 24
        %v3442 = vpop.permute.xlu0 %3441
        %3443 = vrot.lane.b32.xlu0 %v3418, 24
        %v3444 = vpop.permute.xlu0 %3443
        %3445 = vrot.lane.b32.xlu0 %v3420, 24
        %v3446 = vpop.permute.xlu0 %3445
        %3447 = vrot.lane.b32.xlu0 %v3422, 24
        %v3448 = vpop.permute.xlu0 %3447
        %3449 = vrot.lane.b32.xlu0 %v3424, 24
        %v3450 = vpop.permute.xlu0 %3449
        %3451 = vrot.lane.b32.xlu0 %v3426, 24
        %v3452 = vpop.permute.xlu0 %3451
        %3453 = vrot.lane.b32.xlu0 %v3428, 24
        %v3454 = vpop.permute.xlu0 %3453
        %3455 = vrot.lane.b32.xlu0 %v3430, 24
        %v3456 = vpop.permute.xlu0 %3455
        %3457 = vrot.lane.b32.xlu0 %v3432, 24
        %v3458 = vpop.permute.xlu0 %3457
        %v3459 = vrot.slane %v3210, 7
        %v3460 = vor.u32 %v3459, %v3206
        %v3461 = vrot.slane %v3218, 7
        %v3462 = vor.u32 %v3461, %v3214
        %v3463 = vsel %vm2523, %v3459, %v3462
        %v3464 = vrot.slane %v3226, 7
        %v3465 = vor.u32 %v3464, %v3222
        %v3466 = vsel %vm2523, %v3461, %v3465
        %v3467 = vrot.slane %v3234, 7
        %v3468 = vor.u32 %v3467, %v3230
        %v3469 = vsel %vm2523, %v3464, %v3468
        %v3470 = vrot.slane %v3242, 7
        %v3471 = vor.u32 %v3470, %v3238
        %v3472 = vsel %vm2523, %v3467, %v3471
        %v3473 = vrot.slane %v3250, 7
        %v3474 = vor.u32 %v3473, %v3246
        %v3475 = vsel %vm2523, %v3470, %v3474
        %v3476 = vrot.slane %v3258, 7
        %v3477 = vor.u32 %v3476, %v3254
        %v3478 = vsel %vm2523, %v3473, %v3477
        %v3479 = vrot.slane %v3266, 7
        %v3480 = vor.u32 %v3479, %v3262
        %v3481 = vsel %vm2523, %v3476, %v3480
        %v3482 = vrot.slane %v3274, 7
        %v3483 = vor.u32 %v3482, %v3270
        %v3484 = vsel %vm2523, %v3479, %v3483
        %v3485 = vrot.slane %v3282, 7
        %v3486 = vor.u32 %v3485, %v3278
        %v3487 = vsel %vm2523, %v3482, %v3486
        %v3488 = vrot.slane %v3290, 7
        %v3489 = vor.u32 %v3488, %v3286
        %v3490 = vsel %vm2523, %v3485, %v3489
        %v3491 = vrot.slane %v3298, 7
        %v3492 = vor.u32 %v3491, %v3294
        %v3493 = vsel %vm2523, %v3488, %v3492
        %v3494 = vshrl.u32 %v1832, 16
        %v3496 = vrot.slane %v3494, 7
        %v3497 = vshll.u32 %v1832, 16
        %v3499 = vor.u32 %v3496, %v3497
        %v3500 = vsel %vm2523, %v3491, %v3499
        %3501 = vrot.lane.b32.xlu0 %v3460, 32
        %v3502 = vpop.permute.xlu0 %3501
        %3503 = vrot.lane.b32.xlu0 %v3463, 32
        %v3504 = vpop.permute.xlu0 %3503
        %3505 = vrot.lane.b32.xlu0 %v3466, 32
        %v3506 = vpop.permute.xlu0 %3505
        %3507 = vrot.lane.b32.xlu0 %v3469, 32
        %v3508 = vpop.permute.xlu0 %3507
        %3509 = vrot.lane.b32.xlu0 %v3472, 32
        %v3510 = vpop.permute.xlu0 %3509
        %3511 = vrot.lane.b32.xlu0 %v3475, 32
        %v3512 = vpop.permute.xlu0 %3511
        %3513 = vrot.lane.b32.xlu0 %v3478, 32
        %v3514 = vpop.permute.xlu0 %3513
        %3515 = vrot.lane.b32.xlu0 %v3481, 32
        %v3516 = vpop.permute.xlu0 %3515
        %3517 = vrot.lane.b32.xlu0 %v3484, 32
        %v3518 = vpop.permute.xlu0 %3517
        %3519 = vrot.lane.b32.xlu0 %v3487, 32
        %v3520 = vpop.permute.xlu0 %3519
        %3521 = vrot.lane.b32.xlu0 %v3490, 32
        %v3522 = vpop.permute.xlu0 %3521
        %3523 = vrot.lane.b32.xlu0 %v3493, 32
        %v3524 = vpop.permute.xlu0 %3523
        %3525 = vrot.lane.b32.xlu0 %v3500, 32
        %v3526 = vpop.permute.xlu0 %3525
        %3540 = vrot.lane.b32.xlu0 %v3045, 40
        %v3541 = vpop.permute.xlu0 %3540
        %3542 = vrot.lane.b32.xlu0 %v3046, 40
        %v3543 = vpop.permute.xlu0 %3542
        %3544 = vrot.lane.b32.xlu0 %v3047, 40
        %v3545 = vpop.permute.xlu0 %3544
        %3546 = vrot.lane.b32.xlu0 %v3048, 40
        %v3547 = vpop.permute.xlu0 %3546
        %3548 = vrot.lane.b32.xlu0 %v3049, 40
        %v3549 = vpop.permute.xlu0 %3548
        %3550 = vrot.lane.b32.xlu0 %v3050, 40
        %v3551 = vpop.permute.xlu0 %3550
        %3552 = vrot.lane.b32.xlu0 %v3051, 40
        %v3553 = vpop.permute.xlu0 %3552
        %3554 = vrot.lane.b32.xlu0 %v3052, 40
        %v3555 = vpop.permute.xlu0 %3554
        %3556 = vrot.lane.b32.xlu0 %v3053, 40
        %v3557 = vpop.permute.xlu0 %3556
        %3558 = vrot.lane.b32.xlu0 %v3054, 40
        %v3559 = vpop.permute.xlu0 %3558
        %3560 = vrot.lane.b32.xlu0 %v3055, 40
        %v3561 = vpop.permute.xlu0 %3560
        %3562 = vrot.lane.b32.xlu0 %v3056, 40
        %v3563 = vpop.permute.xlu0 %3562
        %3564 = vrot.lane.b32.xlu0 %v3057, 40
        %v3565 = vpop.permute.xlu0 %3564
        %vm3579 = vcmask 1041408
        %v3580 = vrot.slane %v3123, 6
        %v3581 = vrot.slane %v3124, 6
        %v3582 = vsel %vm3579, %v3580, %v3581
        %v3583 = vrot.slane %v3125, 6
        %v3584 = vsel %vm3579, %v3581, %v3583
        %v3585 = vrot.slane %v3126, 6
        %v3586 = vsel %vm3579, %v3583, %v3585
        %v3587 = vrot.slane %v3127, 6
        %v3588 = vsel %vm3579, %v3585, %v3587
        %v3589 = vrot.slane %v3128, 6
        %v3590 = vsel %vm3579, %v3587, %v3589
        %v3591 = vrot.slane %v3129, 6
        %v3592 = vsel %vm3579, %v3589, %v3591
        %v3593 = vrot.slane %v3130, 6
        %v3594 = vsel %vm3579, %v3591, %v3593
        %v3595 = vrot.slane %v3131, 6
        %v3596 = vsel %vm3579, %v3593, %v3595
        %v3597 = vrot.slane %v3132, 6
        %v3598 = vsel %vm3579, %v3595, %v3597
        %v3599 = vrot.slane %v3133, 6
        %v3600 = vsel %vm3579, %v3597, %v3599
        %v3601 = vrot.slane %v3134, 6
        %v3602 = vsel %vm3579, %v3599, %v3601
        %v3603 = vrot.slane %v3135, 6
        %v3604 = vsel %vm3579, %v3601, %v3603
        %v3605 = vrot.slane 0, 6
        %v3606 = vsel %vm3579, %v3603, %v3605
        %3607 = vrot.lane.b32.xlu0 %v3582, 48
        %v3608 = vpop.permute.xlu0 %3607
        %3609 = vrot.lane.b32.xlu0 %v3584, 48
        %v3610 = vpop.permute.xlu0 %3609
        %3611 = vrot.lane.b32.xlu0 %v3586, 48
        %v3612 = vpop.permute.xlu0 %3611
        %3613 = vrot.lane.b32.xlu0 %v3588, 48
        %v3614 = vpop.permute.xlu0 %3613
        %3615 = vrot.lane.b32.xlu0 %v3590, 48
        %v3616 = vpop.permute.xlu0 %3615
        %3617 = vrot.lane.b32.xlu0 %v3592, 48
        %v3618 = vpop.permute.xlu0 %3617
        %3619 = vrot.lane.b32.xlu0 %v3594, 48
        %v3620 = vpop.permute.xlu0 %3619
        %3621 = vrot.lane.b32.xlu0 %v3596, 48
        %v3622 = vpop.permute.xlu0 %3621
        %3623 = vrot.lane.b32.xlu0 %v3598, 48
        %v3624 = vpop.permute.xlu0 %3623
        %3625 = vrot.lane.b32.xlu0 %v3600, 48
        %v3626 = vpop.permute.xlu0 %3625
        %3627 = vrot.lane.b32.xlu0 %v3602, 48
        %v3628 = vpop.permute.xlu0 %3627
        %3629 = vrot.lane.b32.xlu0 %v3604, 48
        %v3630 = vpop.permute.xlu0 %3629
        %3631 = vrot.lane.b32.xlu0 %v3606, 48
        %v3632 = vpop.permute.xlu0 %3631
        %v3633 = vrot.slane %v3210, 6
        %v3634 = vrot.slane %v3206, 7
        %v3635 = vor.u32 %v3633, %v3634
        %v3636 = vrot.slane %v3218, 6
        %v3637 = vrot.slane %v3214, 7
        %v3638 = vor.u32 %v3636, %v3637
        %v3639 = vsel %vm2786, %v3635, %v3638
        %v3640 = vrot.slane %v3226, 6
        %v3641 = vrot.slane %v3222, 7
        %v3642 = vor.u32 %v3640, %v3641
        %v3643 = vsel %vm2786, %v3638, %v3642
        %v3644 = vrot.slane %v3234, 6
        %v3645 = vrot.slane %v3230, 7
        %v3646 = vor.u32 %v3644, %v3645
        %v3647 = vsel %vm2786, %v3642, %v3646
        %v3648 = vrot.slane %v3242, 6
        %v3649 = vrot.slane %v3238, 7
        %v3650 = vor.u32 %v3648, %v3649
        %v3651 = vsel %vm2786, %v3646, %v3650
        %v3652 = vrot.slane %v3250, 6
        %v3653 = vrot.slane %v3246, 7
        %v3654 = vor.u32 %v3652, %v3653
        %v3655 = vsel %vm2786, %v3650, %v3654
        %v3656 = vrot.slane %v3258, 6
        %v3657 = vrot.slane %v3254, 7
        %v3658 = vor.u32 %v3656, %v3657
        %v3659 = vsel %vm2786, %v3654, %v3658
        %v3660 = vrot.slane %v3266, 6
        %v3661 = vrot.slane %v3262, 7
        %v3662 = vor.u32 %v3660, %v3661
        %v3663 = vsel %vm2786, %v3658, %v3662
        %v3664 = vrot.slane %v3274, 6
        %v3665 = vrot.slane %v3270, 7
        %v3666 = vor.u32 %v3664, %v3665
        %v3667 = vsel %vm2786, %v3662, %v3666
        %v3668 = vrot.slane %v3282, 6
        %v3669 = vrot.slane %v3278, 7
        %v3670 = vor.u32 %v3668, %v3669
        %v3671 = vsel %vm2786, %v3666, %v3670
        %v3672 = vrot.slane %v3290, 6
        %v3673 = vrot.slane %v3286, 7
        %v3674 = vor.u32 %v3672, %v3673
        %v3675 = vsel %vm2786, %v3670, %v3674
        %v3676 = vrot.slane %v3298, 6
        %v3677 = vrot.slane %v3294, 7
        %v3678 = vor.u32 %v3676, %v3677
        %v3679 = vsel %vm2786, %v3674, %v3678
        %v3680 = vrot.slane %v3494, 6
        %v3681 = vrot.slane %v3497, 7
        %v3682 = vor.u32 %v3680, %v3681
        %v3683 = vsel %vm2786, %v3678, %v3682
        %v3684 = vrot.slane %v3199, 6
        %v3685 = vrot.slane %v3201, 7
        %v3686 = vor.u32 %v3684, %v3685
        %v3687 = vsel %vm2786, %v3682, %v3686
        %3688 = vrot.lane.b32.xlu0 %v3639, 56
        %v3689 = vpop.permute.xlu0 %3688
        %3690 = vrot.lane.b32.xlu0 %v3643, 56
        %v3691 = vpop.permute.xlu0 %3690
        %3692 = vrot.lane.b32.xlu0 %v3647, 56
        %v3693 = vpop.permute.xlu0 %3692
        %3694 = vrot.lane.b32.xlu0 %v3651, 56
        %v3695 = vpop.permute.xlu0 %3694
        %3696 = vrot.lane.b32.xlu0 %v3655, 56
        %v3697 = vpop.permute.xlu0 %3696
        %3698 = vrot.lane.b32.xlu0 %v3659, 56
        %v3699 = vpop.permute.xlu0 %3698
        %3700 = vrot.lane.b32.xlu0 %v3663, 56
        %v3701 = vpop.permute.xlu0 %3700
        %3702 = vrot.lane.b32.xlu0 %v3667, 56
        %v3703 = vpop.permute.xlu0 %3702
        %3704 = vrot.lane.b32.xlu0 %v3671, 56
        %v3705 = vpop.permute.xlu0 %3704
        %3706 = vrot.lane.b32.xlu0 %v3675, 56
        %v3707 = vpop.permute.xlu0 %3706
        %3708 = vrot.lane.b32.xlu0 %v3679, 56
        %v3709 = vpop.permute.xlu0 %3708
        %3710 = vrot.lane.b32.xlu0 %v3683, 56
        %v3711 = vpop.permute.xlu0 %3710
        %3712 = vrot.lane.b32.xlu0 %v3687, 56
        %v3713 = vpop.permute.xlu0 %3712
        %v3727 = vrot.slane %v3186, 7
        %v3728 = vrot.slane %v3187, 7
        %v3729 = vsel %vm3405, %v3727, %v3728
        %v3730 = vrot.slane %v3188, 7
        %v3731 = vsel %vm3405, %v3728, %v3730
        %v3732 = vrot.slane %v3189, 7
        %v3733 = vsel %vm3405, %v3730, %v3732
        %v3734 = vrot.slane %v3190, 7
        %v3735 = vsel %vm3405, %v3732, %v3734
        %v3736 = vrot.slane %v3191, 7
        %v3737 = vsel %vm3405, %v3734, %v3736
        %v3738 = vrot.slane %v3192, 7
        %v3739 = vsel %vm3405, %v3736, %v3738
        %v3740 = vrot.slane %v3193, 7
        %v3741 = vsel %vm3405, %v3738, %v3740
        %v3742 = vrot.slane %v3194, 7
        %v3743 = vsel %vm3405, %v3740, %v3742
        %v3744 = vrot.slane %v3195, 7
        %v3745 = vsel %vm3405, %v3742, %v3744
        %v3746 = vrot.slane %v3196, 7
        %v3747 = vsel %vm3405, %v3744, %v3746
        %v3748 = vrot.slane %v3197, 7
        %v3749 = vsel %vm3405, %v3746, %v3748
        %v3750 = vrot.slane %v3198, 7
        %v3751 = vsel %vm3405, %v3748, %v3750
        %v3752 = vsel %vm3405, %v3750, %v3406
        %3753 = vrot.lane.b32.xlu0 %v3729, 64
        %v3754 = vpop.permute.xlu0 %3753
        %3755 = vrot.lane.b32.xlu0 %v3731, 64
        %v3756 = vpop.permute.xlu0 %3755
        %3757 = vrot.lane.b32.xlu0 %v3733, 64
        %v3758 = vpop.permute.xlu0 %3757
        %3759 = vrot.lane.b32.xlu0 %v3735, 64
        %v3760 = vpop.permute.xlu0 %3759
        %3761 = vrot.lane.b32.xlu0 %v3737, 64
        %v3762 = vpop.permute.xlu0 %3761
        %3763 = vrot.lane.b32.xlu0 %v3739, 64
        %v3764 = vpop.permute.xlu0 %3763
        %3765 = vrot.lane.b32.xlu0 %v3741, 64
        %v3766 = vpop.permute.xlu0 %3765
        %3767 = vrot.lane.b32.xlu0 %v3743, 64
        %v3768 = vpop.permute.xlu0 %3767
        %3769 = vrot.lane.b32.xlu0 %v3745, 64
        %v3770 = vpop.permute.xlu0 %3769
        %3771 = vrot.lane.b32.xlu0 %v3747, 64
        %v3772 = vpop.permute.xlu0 %3771
        %3773 = vrot.lane.b32.xlu0 %v3749, 64
        %v3774 = vpop.permute.xlu0 %3773
        %3775 = vrot.lane.b32.xlu0 %v3751, 64
        %v3776 = vpop.permute.xlu0 %3775
        %3777 = vrot.lane.b32.xlu0 %v3752, 64
        %v3778 = vpop.permute.xlu0 %3777
        %v3780 = vsel %vm1789, 0, %v3302
        %v3783 = vsel %vm1789, %v2636, %v3304
        %v3786 = vsel %vm1789, %v2637, %v3306
        %v3789 = vsel %vm1789, %v2638, %v3308
        %v3792 = vsel %vm1789, %v2639, %v3310
        %v3795 = vsel %vm1789, %v2640, %v3312
        %v3798 = vsel %vm1789, %v2641, %v3314
        %v3801 = vsel %vm1789, %v2642, %v3316
        %v3804 = vsel %vm1789, %v2643, %v3318
        %v3807 = vsel %vm1789, %v2644, %v3320
        %v3810 = vsel %vm1789, %v2645, %v3322
        %v3813 = vsel %vm1789, %v2646, %v3324
        %v3816 = vsel %vm1789, %v2647, %v3326
        %vm3817 = vcmask 130048
        %v3819 = vsel %vm3817, %v3780, %v3367
        %v3821 = vsel %vm3817, %v3783, %v3369
        %v3823 = vsel %vm3817, %v3786, %v3371
        %v3825 = vsel %vm3817, %v3789, %v3373
        %v3827 = vsel %vm3817, %v3792, %v3375
        %v3829 = vsel %vm3817, %v3795, %v3377
        %v3831 = vsel %vm3817, %v3798, %v3379
        %v3833 = vsel %vm3817, %v3801, %v3381
        %v3835 = vsel %vm3817, %v3804, %v3383
        %v3837 = vsel %vm3817, %v3807, %v3385
        %v3839 = vsel %vm3817, %v3810, %v3387
        %v3841 = vsel %vm3817, %v3813, %v3389
        %v3843 = vsel %vm3817, %v3816, %v3391
        %vm3844 = vcmask 195584
        %v3846 = vsel %vm3844, %v3819, %v3434
        %v3848 = vsel %vm3844, %v3821, %v3436
        %v3850 = vsel %vm3844, %v3823, %v3438
        %v3852 = vsel %vm3844, %v3825, %v3440
        %v3854 = vsel %vm3844, %v3827, %v3442
        %v3856 = vsel %vm3844, %v3829, %v3444
        %v3858 = vsel %vm3844, %v3831, %v3446
        %v3860 = vsel %vm3844, %v3833, %v3448
        %v3862 = vsel %vm3844, %v3835, %v3450
        %v3864 = vsel %vm3844, %v3837, %v3452
        %v3866 = vsel %vm3844, %v3839, %v3454
        %v3868 = vsel %vm3844, %v3841, %v3456
        %v3870 = vsel %vm3844, %v3843, %v3458
        %vm3871 = vcmask 261120
        %v3873 = vsel %vm3871, %v3846, %v3502
        %v3875 = vsel %vm3871, %v3848, %v3504
        %v3877 = vsel %vm3871, %v3850, %v3506
        %v3879 = vsel %vm3871, %v3852, %v3508
        %v3881 = vsel %vm3871, %v3854, %v3510
        %v3883 = vsel %vm3871, %v3856, %v3512
        %v3885 = vsel %vm3871, %v3858, %v3514
        %v3887 = vsel %vm3871, %v3860, %v3516
        %v3889 = vsel %vm3871, %v3862, %v3518
        %v3891 = vsel %vm3871, %v3864, %v3520
        %v3893 = vsel %vm3871, %v3866, %v3522
        %v3895 = vsel %vm3871, %v3868, %v3524
        %v3897 = vsel %vm3871, %v3870, %v3526
        %vm3898 = vcmask 326656
        %v3900 = vsel %vm3898, %v3873, %v3541
        %v3902 = vsel %vm3898, %v3875, %v3543
        %v3904 = vsel %vm3898, %v3877, %v3545
        %v3906 = vsel %vm3898, %v3879, %v3547
        %v3908 = vsel %vm3898, %v3881, %v3549
        %v3910 = vsel %vm3898, %v3883, %v3551
        %v3912 = vsel %vm3898, %v3885, %v3553
        %v3914 = vsel %vm3898, %v3887, %v3555
        %v3916 = vsel %vm3898, %v3889, %v3557
        %v3918 = vsel %vm3898, %v3891, %v3559
        %v3920 = vsel %vm3898, %v3893, %v3561
        %v3922 = vsel %vm3898, %v3895, %v3563
        %v3924 = vsel %vm3898, %v3897, %v3565
        %vm3925 = vcmask 392192
        %v3927 = vsel %vm3925, %v3900, %v3608
        %v3929 = vsel %vm3925, %v3902, %v3610
        %v3931 = vsel %vm3925, %v3904, %v3612
        %v3933 = vsel %vm3925, %v3906, %v3614
        %v3935 = vsel %vm3925, %v3908, %v3616
        %v3937 = vsel %vm3925, %v3910, %v3618
        %v3939 = vsel %vm3925, %v3912, %v3620
        %v3941 = vsel %vm3925, %v3914, %v3622
        %v3943 = vsel %vm3925, %v3916, %v3624
        %v3945 = vsel %vm3925, %v3918, %v3626
        %v3947 = vsel %vm3925, %v3920, %v3628
        %v3949 = vsel %vm3925, %v3922, %v3630
        %v3951 = vsel %vm3925, %v3924, %v3632
        %vm3952 = vcmask 457728
        %v3954 = vsel %vm3952, %v3927, %v3689
        %v3956 = vsel %vm3952, %v3929, %v3691
        %v3958 = vsel %vm3952, %v3931, %v3693
        %v3960 = vsel %vm3952, %v3933, %v3695
        %v3962 = vsel %vm3952, %v3935, %v3697
        %v3964 = vsel %vm3952, %v3937, %v3699
        %v3966 = vsel %vm3952, %v3939, %v3701
        %v3968 = vsel %vm3952, %v3941, %v3703
        %v3970 = vsel %vm3952, %v3943, %v3705
        %v3972 = vsel %vm3952, %v3945, %v3707
        %v3974 = vsel %vm3952, %v3947, %v3709
        %v3976 = vsel %vm3952, %v3949, %v3711
        %v3978 = vsel %vm3952, %v3951, %v3713
        %vm3979 = vcmask 523264
        %v3981 = vsel %vm3979, %v3954, %v3754
        %v3983 = vsel %vm3979, %v3956, %v3756
        %v3985 = vsel %vm3979, %v3958, %v3758
        %v3987 = vsel %vm3979, %v3960, %v3760
        %v3989 = vsel %vm3979, %v3962, %v3762
        %v3991 = vsel %vm3979, %v3964, %v3764
        %v3993 = vsel %vm3979, %v3966, %v3766
        %v3995 = vsel %vm3979, %v3968, %v3768
        %v3997 = vsel %vm3979, %v3970, %v3770
        %v3999 = vsel %vm3979, %v3972, %v3772
        %v4001 = vsel %vm3979, %v3974, %v3774
        %v4003 = vsel %vm3979, %v3976, %v3776
        %v4005 = vsel %vm3979, %v3978, %v3778
        %v4006 = vld [vmem:[%s3] sm:$0xf]
        %v4007 = vld [vmem:[%s3 + $0x4] sm:$0xf]
        %v4008 = vld [vmem:[%s3 + $0x8] sm:$0xf]
        %v4009 = vld [vmem:[%s3 + $0xc] sm:$0xf]
        %v4010 = vld [vmem:[%s3 + $0x10] sm:$0xf]
        %v4011 = vld [vmem:[%s3 + $0x14] sm:$0xf]
        %v4012 = vld [vmem:[%s3 + $0x18] sm:$0xf]
        %v4013 = vld [vmem:[%s3 + $0x1c] sm:$0xf]
        %v4014 = vld [vmem:[%s3 + $0x20] sm:$0xf]
        %v4015 = vld [vmem:[%s4] sm:$0x1]
        %v4017 = vlaneseq
        %v4018 = vshrl.u32 %v4017, 7
        %v4019 = vsub.s32 0, %v4018
        %v4020 = vrot.slane %v4015, %v4019
        %v4022 = vshrl.u32 %v3981, 16
        %v4024 = vshll.u32 %v3981, 16
        %v4026 = vrot.slane %v4024, 1
        %v4027 = vor.u32 %v4022, %v4026
        %v4028 = vshll.u32 %v3983, 16
        %v4030 = vrot.slane %v4028, 1
        %v4031 = vsel %vm2927, %v4027, %v4030
        %v4032 = vshrl.u32 %v3983, 16
        %v4034 = vor.u32 %v4032, %v4030
        %v4035 = vshll.u32 %v3985, 16
        %v4037 = vrot.slane %v4035, 1
        %v4038 = vsel %vm2927, %v4034, %v4037
        %v4039 = vshrl.u32 %v3985, 16
        %v4041 = vor.u32 %v4039, %v4037
        %v4042 = vshll.u32 %v3987, 16
        %v4044 = vrot.slane %v4042, 1
        %v4045 = vsel %vm2927, %v4041, %v4044
        %v4046 = vshrl.u32 %v3987, 16
        %v4048 = vor.u32 %v4046, %v4044
        %v4049 = vshll.u32 %v3989, 16
        %v4051 = vrot.slane %v4049, 1
        %v4052 = vsel %vm2927, %v4048, %v4051
        %v4053 = vshrl.u32 %v3989, 16
        %v4055 = vor.u32 %v4053, %v4051
        %v4056 = vshll.u32 %v3991, 16
        %v4058 = vrot.slane %v4056, 1
        %v4059 = vsel %vm2927, %v4055, %v4058
        %v4060 = vshrl.u32 %v3991, 16
        %v4062 = vor.u32 %v4060, %v4058
        %v4063 = vshll.u32 %v3993, 16
        %v4065 = vrot.slane %v4063, 1
        %v4066 = vsel %vm2927, %v4062, %v4065
        %v4067 = vshrl.u32 %v3993, 16
        %v4069 = vor.u32 %v4067, %v4065
        %v4070 = vshll.u32 %v3995, 16
        %v4072 = vrot.slane %v4070, 1
        %v4073 = vsel %vm2927, %v4069, %v4072
        %v4074 = vshrl.u32 %v3995, 16
        %v4076 = vor.u32 %v4074, %v4072
        %v4077 = vshll.u32 %v3997, 16
        %v4079 = vrot.slane %v4077, 1
        %v4080 = vsel %vm2927, %v4076, %v4079
        %v4081 = vshrl.u32 %v3997, 16
        %v4083 = vor.u32 %v4081, %v4079
        %v4084 = vshll.u32 %v3999, 16
        %v4086 = vrot.slane %v4084, 1
        %v4087 = vsel %vm2927, %v4083, %v4086
        %v4088 = vshrl.u32 %v3999, 16
        %v4090 = vor.u32 %v4088, %v4086
        %v4091 = vshll.u32 %v4001, 16
        %v4093 = vrot.slane %v4091, 1
        %v4094 = vsel %vm2927, %v4090, %v4093
        %v4095 = vshrl.u32 %v4001, 16
        %v4097 = vor.u32 %v4095, %v4093
        %v4098 = vshll.u32 %v4003, 16
        %v4100 = vrot.slane %v4098, 1
        %v4101 = vsel %vm2927, %v4097, %v4100
        %v4102 = vshrl.u32 %v4003, 16
        %v4104 = vor.u32 %v4102, %v4100
        %v4105 = vshll.u32 %v4005, 16
        %v4107 = vrot.slane %v4105, 1
        %v4108 = vsel %vm2927, %v4104, %v4107
        %v4109 = vshrl.u32 %v4005, 16
        %v4111 = vor.u32 %v4109, %v4107
        %v4121 = vunpack.c.l.b16 %v4006
        %v4122 = vunpack.c.l.b16 %v4007
        %v4123 = vunpack.c.l.b16 %v4008
        %v4124 = vunpack.c.l.b16 %v4009
        %v4125 = vunpack.c.l.b16 %v4010
        %v4126 = vunpack.c.l.b16 %v4011
        %v4127 = vunpack.c.l.b16 %v4012
        %v4128 = vunpack.c.l.b16 %v4013
        %v4129 = vunpack.c.l.b16 %v4014
        %v4130 = vpack.c.b16 %v4122, %v4121
        %v4131 = vpack.c.b16 %v4124, %v4123
        %v4132 = vpack.c.b16 %v4126, %v4125
        %v4133 = vpack.c.b16 %v4128, %v4127
        %v4134 = vpack.c.b16 %v4129, %v4129
        %vm4139 = vcmask 588800
        %v4141 = vsel %vm4139, %v4031, 0
        %v4144 = vsel %vm4139, %v4038, 0
        %v4147 = vsel %vm4139, %v4045, 0
        %v4150 = vsel %vm4139, %v4052, 0
        %v4153 = vsel %vm4139, %v4059, 0
        %v4156 = vsel %vm4139, %v4066, 0
        %v4159 = vsel %vm4139, %v4073, 0
        %v4162 = vsel %vm4139, %v4080, 0
        %v4165 = vsel %vm4139, %v4087, 0
        %v4168 = vsel %vm4139, %v4094, 0
        %v4171 = vsel %vm4139, %v4101, 0
        %v4174 = vsel %vm4139, %v4108, 0
        %v4177 = vsel %vm4139, %v4111, 0
        %v4180 = vsel %vm581, %v4134, 0
        %4182 = vmatprep.subr.bf16.mxu0 0
        %4183 = vmatpush1.bf16.msra.mxu0 %v4130
        %4184 = vmatprep.subr.bf16.mxu0 0
        %4185 = vmatpush1.bf16.msra.mxu0 %v4131
        %4186 = vmatprep.subr.bf16.mxu0 0
        %4187 = vmatpush1.bf16.msra.mxu0 %v4132
        %4188 = vmatprep.subr.bf16.mxu0 0
        %4189 = vmatpush1.bf16.msra.mxu0 %v4133
        %4190 = vmatprep.subr.bf16.mxu0 0
        %4191 = vmatpush1.bf16.msra.mxu0 %v4180
        %4192 = vmatprep.subr.bf16.mxu0 0
        %4193 = vmatpush1.bf16.msra.mxu0 0
        %4194 = vmatprep.subr.bf16.mxu0 0
        %4195 = vmatpush1.bf16.msra.mxu0 0
        %4196 = vmatprep.subr.bf16.mxu0 0
        %4197 = vmatpush1.bf16.msra.mxu0 0
        %4198 = vmatprep.subr.bf16.mxu0 0
        %4199 = vmatpush1.bf16.msra.mxu0 0
        %4200 = vmatprep.subr.bf16.mxu0 0
        %4201 = vmatpush1.bf16.msra.mxu0 0
        %4202 = vmatprep.subr.bf16.mxu0 0
        %4203 = vmatpush1.bf16.msra.mxu0 0
        %4204 = vmatprep.subr.bf16.mxu0 0
        %4205 = vmatpush1.bf16.msra.mxu0 0
        %4206 = vmatprep.subr.bf16.mxu0 0
        %4207 = vmatpush1.bf16.msra.mxu0 0
        %4208 = vmatprep.subr.bf16.mxu0 0
        %4209 = vmatpush1.bf16.msra.mxu0 0
        %4210 = vmatprep.subr.bf16.mxu0 0
        %4211 = vmatpush1.bf16.msra.mxu0 0
        %4212 = vmatprep.subr.bf16.mxu0 0
        %4213 = vmatpush1.bf16.msra.mxu0 0
        %4214 = vmatprep.mubr.bf16.mxu0 0
        %4215 = vmatmul.mubr.bf16.gmra.mrb[0].mxu0 %v4141
        %v4216 = vpop.f32.mrb[0].mxu0
        %v4217 = vadd.f32 %v4020, %v4216
        %v4218 = vpop.f32.mrb[0].mxu0
        %v4219 = vpop.f32.mrb[0].mxu0
        %v4220 = vadd.f32 %v4020, %v4219
        %v4221 = vpop.f32.mrb[0].mxu0
        %4222 = vmatprep.mubr.bf16.mxu0 0
        %4223 = vmatmul.mubr.bf16.gmra.mrb[0].mxu0 %v4144
        %v4224 = vpop.f32.mrb[0].mxu0
        %v4225 = vadd.f32 %v4020, %v4224
        %v4226 = vpop.f32.mrb[0].mxu0
        %v4227 = vpop.f32.mrb[0].mxu0
        %v4228 = vadd.f32 %v4020, %v4227
        %v4229 = vpop.f32.mrb[0].mxu0
        %4230 = vmatprep.mubr.bf16.mxu0 0
        %4231 = vmatmul.mubr.bf16.gmra.mrb[0].mxu0 %v4147
        %v4232 = vpop.f32.mrb[0].mxu0
        %v4233 = vadd.f32 %v4020, %v4232
        %v4234 = vpop.f32.mrb[0].mxu0
        %v4235 = vpop.f32.mrb[0].mxu0
        %v4236 = vadd.f32 %v4020, %v4235
        %v4237 = vpop.f32.mrb[0].mxu0
        %4238 = vmatprep.mubr.bf16.mxu0 0
        %4239 = vmatmul.mubr.bf16.gmra.mrb[0].mxu0 %v4150
        %v4240 = vpop.f32.mrb[0].mxu0
        %v4241 = vadd.f32 %v4020, %v4240
        %v4242 = vpop.f32.mrb[0].mxu0
        %v4243 = vpop.f32.mrb[0].mxu0
        %v4244 = vadd.f32 %v4020, %v4243
        %v4245 = vpop.f32.mrb[0].mxu0
        %4246 = vmatprep.mubr.bf16.mxu0 0
        %4247 = vmatmul.mubr.bf16.gmra.mrb[0].mxu0 %v4153
        %v4248 = vpop.f32.mrb[0].mxu0
        %v4249 = vadd.f32 %v4020, %v4248
        %v4250 = vpop.f32.mrb[0].mxu0
        %v4251 = vpop.f32.mrb[0].mxu0
        %v4252 = vadd.f32 %v4020, %v4251
        %v4253 = vpop.f32.mrb[0].mxu0
        %4254 = vmatprep.mubr.bf16.mxu0 0
        %4255 = vmatmul.mubr.bf16.gmra.mrb[0].mxu0 %v4156
        %v4256 = vpop.f32.mrb[0].mxu0
        %v4257 = vadd.f32 %v4020, %v4256
        %v4258 = vpop.f32.mrb[0].mxu0
        %v4259 = vpop.f32.mrb[0].mxu0
        %v4260 = vadd.f32 %v4020, %v4259
        %v4261 = vpop.f32.mrb[0].mxu0
        %4262 = vmatprep.mubr.bf16.mxu0 0
        %4263 = vmatmul.mubr.bf16.gmra.mrb[0].mxu0 %v4159
        %v4264 = vpop.f32.mrb[0].mxu0
        %v4265 = vadd.f32 %v4020, %v4264
        %v4266 = vpop.f32.mrb[0].mxu0
        %v4267 = vpop.f32.mrb[0].mxu0
        %v4268 = vadd.f32 %v4020, %v4267
        %v4269 = vpop.f32.mrb[0].mxu0
        %4270 = vmatprep.mubr.bf16.mxu0 0
        %4271 = vmatmul.mubr.bf16.gmra.mrb[0].mxu0 %v4162
        %v4272 = vpop.f32.mrb[0].mxu0
        %v4273 = vadd.f32 %v4020, %v4272
        %v4274 = vpop.f32.mrb[0].mxu0
        %v4275 = vpop.f32.mrb[0].mxu0
        %v4276 = vadd.f32 %v4020, %v4275
        %v4277 = vpop.f32.mrb[0].mxu0
        %4278 = vmatprep.mubr.bf16.mxu0 0
        %4279 = vmatmul.mubr.bf16.gmra.mrb[0].mxu0 %v4165
        %v4280 = vpop.f32.mrb[0].mxu0
        %v4281 = vadd.f32 %v4020, %v4280
        %v4282 = vpop.f32.mrb[0].mxu0
        %v4283 = vpop.f32.mrb[0].mxu0
        %v4284 = vadd.f32 %v4020, %v4283
        %v4285 = vpop.f32.mrb[0].mxu0
        %4286 = vmatprep.mubr.bf16.mxu0 0
        %4287 = vmatmul.mubr.bf16.gmra.mrb[0].mxu0 %v4168
        %v4288 = vpop.f32.mrb[0].mxu0
        %v4289 = vadd.f32 %v4020, %v4288
        %v4290 = vpop.f32.mrb[0].mxu0
        %v4291 = vpop.f32.mrb[0].mxu0
        %v4292 = vadd.f32 %v4020, %v4291
        %v4293 = vpop.f32.mrb[0].mxu0
        %4294 = vmatprep.mubr.bf16.mxu0 0
        %4295 = vmatmul.mubr.bf16.gmra.mrb[0].mxu0 %v4171
        %v4296 = vpop.f32.mrb[0].mxu0
        %v4297 = vadd.f32 %v4020, %v4296
        %v4298 = vpop.f32.mrb[0].mxu0
        %v4299 = vpop.f32.mrb[0].mxu0
        %v4300 = vadd.f32 %v4020, %v4299
        %v4301 = vpop.f32.mrb[0].mxu0
        %4302 = vmatprep.mubr.bf16.mxu0 0
        %4303 = vmatmul.mubr.bf16.gmra.mrb[0].mxu0 %v4174
        %v4304 = vpop.f32.mrb[0].mxu0
        %v4305 = vadd.f32 %v4020, %v4304
        %v4306 = vpop.f32.mrb[0].mxu0
        %v4307 = vpop.f32.mrb[0].mxu0
        %v4308 = vadd.f32 %v4020, %v4307
        %v4309 = vpop.f32.mrb[0].mxu0
        %4310 = vmatprep.mubr.bf16.mxu0 0
        %4311 = vmatmul.mubr.bf16.gmra.mrb[0].mxu0 %v4177
        %v4312 = vpop.f32.mrb[0].mxu0
        %v4313 = vadd.f32 %v4020, %v4312
        %v4314 = vpop.f32.mrb[0].mxu0
        %v4315 = vpop.f32.mrb[0].mxu0
        %v4316 = vpop.f32.mrb[0].mxu0
        %4317 = vdwg.mxu0
        %v4318 = vmax.f32 %v4217, 0.0
        %v4319 = vmax.f32 %v4220, 0.0
        %v4320 = vmax.f32 %v4225, 0.0
        %v4321 = vmax.f32 %v4228, 0.0
        %v4322 = vmax.f32 %v4233, 0.0
        %v4323 = vmax.f32 %v4236, 0.0
        %v4324 = vmax.f32 %v4241, 0.0
        %v4325 = vmax.f32 %v4244, 0.0
        %v4326 = vmax.f32 %v4249, 0.0
        %v4327 = vmax.f32 %v4252, 0.0
        %v4328 = vmax.f32 %v4257, 0.0
        %v4329 = vmax.f32 %v4260, 0.0
        %v4330 = vmax.f32 %v4265, 0.0
        %v4331 = vmax.f32 %v4268, 0.0
        %v4332 = vmax.f32 %v4273, 0.0
        %v4333 = vmax.f32 %v4276, 0.0
        %v4334 = vmax.f32 %v4281, 0.0
        %v4335 = vmax.f32 %v4284, 0.0
        %v4336 = vmax.f32 %v4289, 0.0
        %v4337 = vmax.f32 %v4292, 0.0
        %v4338 = vmax.f32 %v4297, 0.0
        %v4339 = vmax.f32 %v4300, 0.0
        %v4340 = vmax.f32 %v4305, 0.0
        %v4341 = vmax.f32 %v4308, 0.0
        %v4342 = vmax.f32 %v4313, 0.0
        %v4343 = vld [vmem:[%s5] sm:$0xff]
        %v4344 = vld [vmem:[%s5 + $0x8] sm:$0xff]
        %v4345 = vld [vmem:[%s5 + $0x10] sm:$0xff]
        %v4346 = vld [vmem:[%s5 + $0x18] sm:$0xff]
        %v4347 = vld [vmem:[%s5 + $0x20] sm:$0xff]
        %v4348 = vld [vmem:[%s5 + $0x28] sm:$0xff]
        %v4349 = vld [vmem:[%s5 + $0x30] sm:$0xff]
        %v4350 = vld [vmem:[%s5 + $0x38] sm:$0xff]
        %v4351 = vld [vmem:[%s5 + $0x40] sm:$0xff]
        %v4352 = vld [vmem:[%s5 + $0x48] sm:$0xff]
        %v4353 = vld [vmem:[%s5 + $0x50] sm:$0xff]
        %v4354 = vld [vmem:[%s5 + $0x58] sm:$0xff]
        %v4355 = vld [vmem:[%s5 + $0x60] sm:$0x1]
        %v4356 = vld [vmem:[%s5 + $0x68] sm:$0x1]
        %vm4357 = vcmask 556032
        %v4359 = vsel %vm4357, %v4344, 0
        %v4362 = vsel %vm4357, %v4346, 0
        %v4365 = vsel %vm4357, %v4348, 0
        %v4368 = vsel %vm4357, %v4350, 0
        %v4371 = vsel %vm4357, %v4352, 0
        %v4374 = vsel %vm4357, %v4354, 0
        %v4377 = vsel %vm4357, %v4356, 0
        %v4380 = vsel %vm581, %v4342, 0
        %4382 = vmatprep.subr.mxu0 0.0
        %4383 = vmatpush1.msra.mxu0 %v4318
        %4384 = vmatprep.subr.mxu0 0.0
        %4385 = vmatpush1.msra.mxu0 %v4319
        %4386 = vmatprep.subr.mxu0 0.0
        %4387 = vmatpush1.msra.mxu0 %v4320
        %4388 = vmatprep.subr.mxu0 0.0
        %4389 = vmatpush1.msra.mxu0 %v4321
        %4390 = vmatprep.subr.mxu0 0.0
        %4391 = vmatpush1.msra.mxu0 %v4322
        %4392 = vmatprep.subr.mxu0 0.0
        %4393 = vmatpush1.msra.mxu0 %v4323
        %4394 = vmatprep.subr.mxu0 0.0
        %4395 = vmatpush1.msra.mxu0 %v4324
        %4396 = vmatprep.subr.mxu0 0.0
        %4397 = vmatpush1.msra.mxu0 %v4325
        %4398 = vmatprep.subr.mxu0 0.0
        %4399 = vmatpush1.msra.mxu0 %v4326
        %4400 = vmatprep.subr.mxu0 0.0
        %4401 = vmatpush1.msra.mxu0 %v4327
        %4402 = vmatprep.subr.mxu0 0.0
        %4403 = vmatpush1.msra.mxu0 %v4328
        %4404 = vmatprep.subr.mxu0 0.0
        %4405 = vmatpush1.msra.mxu0 %v4329
        %4406 = vmatprep.subr.mxu0 0.0
        %4407 = vmatpush1.msra.mxu0 %v4330
        %4408 = vmatprep.subr.mxu0 0.0
        %4409 = vmatpush1.msra.mxu0 %v4331
        %4410 = vmatprep.subr.mxu0 0.0
        %4411 = vmatpush1.msra.mxu0 %v4332
        %4412 = vmatprep.subr.mxu0 0.0
        %4413 = vmatpush1.msra.mxu0 %v4333
        %4414 = vmatprep.subr.mxu0 0.0
        %4415 = vmatpush1.msra.mxu0 %v4334
        %4416 = vmatprep.subr.mxu0 0.0
        %4417 = vmatpush1.msra.mxu0 %v4335
        %4418 = vmatprep.subr.mxu0 0.0
        %4419 = vmatpush1.msra.mxu0 %v4336
        %4420 = vmatprep.subr.mxu0 0.0
        %4421 = vmatpush1.msra.mxu0 %v4337
        %4422 = vmatprep.subr.mxu0 0.0
        %4423 = vmatpush1.msra.mxu0 %v4338
        %4424 = vmatprep.subr.mxu0 0.0
        %4425 = vmatpush1.msra.mxu0 %v4339
        %4426 = vmatprep.subr.mxu0 0.0
        %4427 = vmatpush1.msra.mxu0 %v4340
        %4428 = vmatprep.subr.mxu0 0.0
        %4429 = vmatpush1.msra.mxu0 %v4341
        %4430 = vmatprep.subr.mxu0 0.0
        %4431 = vmatpush1.msra.mxu0 %v4380
        %4432 = vmatprep.subr.mxu0 0.0
        %4433 = vmatpush1.msra.mxu0 0.0
        %4434 = vmatprep.subr.mxu0 0.0
        %4435 = vmatpush1.msra.mxu0 0.0
        %4436 = vmatprep.subr.mxu0 0.0
        %4437 = vmatpush1.msra.mxu0 0.0
        %4438 = vmatprep.subr.mxu0 0.0
        %4439 = vmatpush1.msra.mxu0 0.0
        %4440 = vmatprep.subr.mxu0 0.0
        %4441 = vmatpush1.msra.mxu0 0.0
        %4442 = vmatprep.subr.mxu0 0.0
        %4443 = vmatpush1.msra.mxu0 0.0
        %4444 = vmatprep.subr.mxu0 0.0
        %4445 = vmatpush1.msra.mxu0 0.0
        %4446 = vmatprep.mubr.f32.mxu0 %v4359
        %4447 = vmatmul.mubr.f32.gmra.mrb[0].mxu0 %v4343
        %v4448 = vpop.f32.mrb[0].mxu0
        %v4449 = vadd.f32 0.0, %v4448
        %v4450 = vpop.f32.mrb[0].mxu0
        %4451 = vmatprep.mubr.f32.mxu0 %v4362
        %4452 = vmatmul.mubr.f32.gmra.mrb[0].mxu0 %v4345
        %v4453 = vpop.f32.mrb[0].mxu0
        %v4454 = vadd.f32 0.0, %v4453
        %v4455 = vpop.f32.mrb[0].mxu0
        %4456 = vmatprep.mubr.f32.mxu0 %v4365
        %4457 = vmatmul.mubr.f32.gmra.mrb[0].mxu0 %v4347
        %v4458 = vpop.f32.mrb[0].mxu0
        %v4459 = vadd.f32 0.0, %v4458
        %v4460 = vpop.f32.mrb[0].mxu0
        %4461 = vmatprep.mubr.f32.mxu0 %v4368
        %4462 = vmatmul.mubr.f32.gmra.mrb[0].mxu0 %v4349
        %v4463 = vpop.f32.mrb[0].mxu0
        %v4464 = vadd.f32 0.0, %v4463
        %v4465 = vpop.f32.mrb[0].mxu0
        %4466 = vmatprep.mubr.f32.mxu0 %v4371
        %4467 = vmatmul.mubr.f32.gmra.mrb[0].mxu0 %v4351
        %v4468 = vpop.f32.mrb[0].mxu0
        %v4469 = vadd.f32 0.0, %v4468
        %v4470 = vpop.f32.mrb[0].mxu0
        %4471 = vmatprep.mubr.f32.mxu0 %v4374
        %4472 = vmatmul.mubr.f32.gmra.mrb[0].mxu0 %v4353
        %v4473 = vpop.f32.mrb[0].mxu0
        %v4474 = vadd.f32 0.0, %v4473
        %v4475 = vpop.f32.mrb[0].mxu0
        %4476 = vmatprep.mubr.f32.mxu0 %v4377
        %4477 = vmatmul.mubr.f32.gmra.mrb[0].mxu0 %v4355
        %v4478 = vpop.f32.mrb[0].mxu0
        %v4479 = vadd.f32 0.0, %v4478
        %v4480 = vpop.f32.mrb[0].mxu0
        %4481 = vdwg.mxu0
        %4482 = vst.msk [vmem:[%s435] sm:$0xff] %vm3817, %v4449
        %4483 = vst.msk [vmem:[%s435 + $0x8] sm:$0xff] %vm3817, %v4454
        %4484 = vst.msk [vmem:[%s435 + $0x10] sm:$0xff] %vm3817, %v4459
        %4485 = vst.msk [vmem:[%s435 + $0x18] sm:$0xff] %vm3817, %v4464
        %4486 = vst.msk [vmem:[%s435 + $0x20] sm:$0xff] %vm3817, %v4469
        %4487 = vst.msk [vmem:[%s435 + $0x28] sm:$0xff] %vm3817, %v4474
        %vm4488 = vcmask 122880
        %4489 = vst.msk [vmem:[%s435 + $0x30] sm:$0x1] %vm4488, %v4479
        %v4491 = vrot.slane %v4449, 1
        %4492 = vrot.lane.b32.xlu0 %v4491, 16
        %v4493 = vpop.permute.xlu0 %4492
        %v4495 = vrot.slane %v4449, 2
        %4496 = vrot.lane.b32.xlu0 %v4495, 32
        %v4497 = vpop.permute.xlu0 %4496
        %v4499 = vrot.slane %v4449, 3
        %4500 = vrot.lane.b32.xlu0 %v4499, 48
        %v4501 = vpop.permute.xlu0 %4500
        %v4503 = vrot.slane %v4449, 4
        %4504 = vrot.lane.b32.xlu0 %v4503, 64
        %v4505 = vpop.permute.xlu0 %4504
        %v4507 = vrot.slane %v4449, 5
        %4508 = vrot.lane.b32.xlu0 %v4507, 80
        %v4509 = vpop.permute.xlu0 %4508
        %v4511 = vrot.slane %v4449, 6
        %4512 = vrot.lane.b32.xlu0 %v4511, 96
        %v4513 = vpop.permute.xlu0 %4512
        %v4515 = vrot.slane %v4449, 7
        %4516 = vrot.lane.b32.xlu0 %v4515, 112
        %v4517 = vpop.permute.xlu0 %4516
        %v4520 = vrot.slane %v4454, 1
        %4521 = vrot.lane.b32.xlu0 %v4520, 16
        %v4522 = vpop.permute.xlu0 %4521
        %v4524 = vrot.slane %v4454, 2
        %4525 = vrot.lane.b32.xlu0 %v4524, 32
        %v4526 = vpop.permute.xlu0 %4525
        %v4528 = vrot.slane %v4454, 3
        %4529 = vrot.lane.b32.xlu0 %v4528, 48
        %v4530 = vpop.permute.xlu0 %4529
        %v4532 = vrot.slane %v4454, 4
        %4533 = vrot.lane.b32.xlu0 %v4532, 64
        %v4534 = vpop.permute.xlu0 %4533
        %v4536 = vrot.slane %v4454, 5
        %4537 = vrot.lane.b32.xlu0 %v4536, 80
        %v4538 = vpop.permute.xlu0 %4537
        %v4540 = vrot.slane %v4454, 6
        %4541 = vrot.lane.b32.xlu0 %v4540, 96
        %v4542 = vpop.permute.xlu0 %4541
        %v4544 = vrot.slane %v4454, 7
        %4545 = vrot.lane.b32.xlu0 %v4544, 112
        %v4546 = vpop.permute.xlu0 %4545
        %v4548 = vsel %vm3817, %v4449, %v4493
        %v4549 = vsel %vm3871, %v4548, %v4497
        %v4550 = vsel %vm3925, %v4549, %v4501
        %v4551 = vsel %vm3979, %v4550, %v4505
        %vm4552 = vcmask 654336
        %v4553 = vsel %vm4552, %v4551, %v4509
        %vm4554 = vcmask 785408
        %v4555 = vsel %vm4554, %v4553, %v4513
        %vm4556 = vcmask 916480
        %v4557 = vsel %vm4556, %v4555, %v4517
        %v4558 = vsel %vm3817, %v4454, %v4522
        %v4559 = vsel %vm3871, %v4558, %v4526
        %v4560 = vsel %vm3925, %v4559, %v4530
        %v4561 = vsel %vm3979, %v4560, %v4534
        %v4562 = vsel %vm4552, %v4561, %v4538
        %v4563 = vsel %vm4554, %v4562, %v4542
        %v4564 = vsel %vm4556, %v4563, %v4546
        %v4566 = vrot.slane %v4459, 1
        %4567 = vrot.lane.b32.xlu0 %v4566, 16
        %v4568 = vpop.permute.xlu0 %4567
        %v4570 = vrot.slane %v4459, 2
        %4571 = vrot.lane.b32.xlu0 %v4570, 32
        %v4572 = vpop.permute.xlu0 %4571
        %v4574 = vrot.slane %v4459, 3
        %4575 = vrot.lane.b32.xlu0 %v4574, 48
        %v4576 = vpop.permute.xlu0 %4575
        %v4578 = vrot.slane %v4459, 4
        %4579 = vrot.lane.b32.xlu0 %v4578, 64
        %v4580 = vpop.permute.xlu0 %4579
        %v4582 = vrot.slane %v4459, 5
        %4583 = vrot.lane.b32.xlu0 %v4582, 80
        %v4584 = vpop.permute.xlu0 %4583
        %v4586 = vrot.slane %v4459, 6
        %4587 = vrot.lane.b32.xlu0 %v4586, 96
        %v4588 = vpop.permute.xlu0 %4587
        %v4590 = vrot.slane %v4459, 7
        %4591 = vrot.lane.b32.xlu0 %v4590, 112
        %v4592 = vpop.permute.xlu0 %4591
        %v4595 = vrot.slane %v4464, 1
        %4596 = vrot.lane.b32.xlu0 %v4595, 16
        %v4597 = vpop.permute.xlu0 %4596
        %v4599 = vrot.slane %v4464, 2
        %4600 = vrot.lane.b32.xlu0 %v4599, 32
        %v4601 = vpop.permute.xlu0 %4600
        %v4603 = vrot.slane %v4464, 3
        %4604 = vrot.lane.b32.xlu0 %v4603, 48
        %v4605 = vpop.permute.xlu0 %4604
        %v4607 = vrot.slane %v4464, 4
        %4608 = vrot.lane.b32.xlu0 %v4607, 64
        %v4609 = vpop.permute.xlu0 %4608
        %v4611 = vrot.slane %v4464, 5
        %4612 = vrot.lane.b32.xlu0 %v4611, 80
        %v4613 = vpop.permute.xlu0 %4612
        %v4615 = vrot.slane %v4464, 6
        %4616 = vrot.lane.b32.xlu0 %v4615, 96
        %v4617 = vpop.permute.xlu0 %4616
        %v4619 = vrot.slane %v4464, 7
        %4620 = vrot.lane.b32.xlu0 %v4619, 112
        %v4621 = vpop.permute.xlu0 %4620
        %v4623 = vsel %vm3817, %v4459, %v4568
        %v4624 = vsel %vm3871, %v4623, %v4572
        %v4625 = vsel %vm3925, %v4624, %v4576
        %v4626 = vsel %vm3979, %v4625, %v4580
        %v4627 = vsel %vm4552, %v4626, %v4584
        %v4628 = vsel %vm4554, %v4627, %v4588
        %v4629 = vsel %vm4556, %v4628, %v4592
        %v4630 = vsel %vm3817, %v4464, %v4597
        %v4631 = vsel %vm3871, %v4630, %v4601
        %v4632 = vsel %vm3925, %v4631, %v4605
        %v4633 = vsel %vm3979, %v4632, %v4609
        %v4634 = vsel %vm4552, %v4633, %v4613
        %v4635 = vsel %vm4554, %v4634, %v4617
        %v4636 = vsel %vm4556, %v4635, %v4621
        %v4638 = vrot.slane %v4469, 1
        %4639 = vrot.lane.b32.xlu0 %v4638, 16
        %v4640 = vpop.permute.xlu0 %4639
        %v4642 = vrot.slane %v4469, 2
        %4643 = vrot.lane.b32.xlu0 %v4642, 32
        %v4644 = vpop.permute.xlu0 %4643
        %v4646 = vrot.slane %v4469, 3
        %4647 = vrot.lane.b32.xlu0 %v4646, 48
        %v4648 = vpop.permute.xlu0 %4647
        %v4650 = vrot.slane %v4469, 4
        %4651 = vrot.lane.b32.xlu0 %v4650, 64
        %v4652 = vpop.permute.xlu0 %4651
        %v4654 = vrot.slane %v4469, 5
        %4655 = vrot.lane.b32.xlu0 %v4654, 80
        %v4656 = vpop.permute.xlu0 %4655
        %v4658 = vrot.slane %v4469, 6
        %4659 = vrot.lane.b32.xlu0 %v4658, 96
        %v4660 = vpop.permute.xlu0 %4659
        %v4662 = vrot.slane %v4469, 7
        %4663 = vrot.lane.b32.xlu0 %v4662, 112
        %v4664 = vpop.permute.xlu0 %4663
        %v4667 = vrot.slane %v4474, 1
        %4668 = vrot.lane.b32.xlu0 %v4667, 16
        %v4669 = vpop.permute.xlu0 %4668
        %v4671 = vrot.slane %v4474, 2
        %4672 = vrot.lane.b32.xlu0 %v4671, 32
        %v4673 = vpop.permute.xlu0 %4672
        %v4675 = vrot.slane %v4474, 3
        %4676 = vrot.lane.b32.xlu0 %v4675, 48
        %v4677 = vpop.permute.xlu0 %4676
        %v4679 = vrot.slane %v4474, 4
        %4680 = vrot.lane.b32.xlu0 %v4679, 64
        %v4681 = vpop.permute.xlu0 %4680
        %v4683 = vrot.slane %v4474, 5
        %4684 = vrot.lane.b32.xlu0 %v4683, 80
        %v4685 = vpop.permute.xlu0 %4684
        %v4687 = vrot.slane %v4474, 6
        %4688 = vrot.lane.b32.xlu0 %v4687, 96
        %v4689 = vpop.permute.xlu0 %4688
        %v4691 = vrot.slane %v4474, 7
        %4692 = vrot.lane.b32.xlu0 %v4691, 112
        %v4693 = vpop.permute.xlu0 %4692
        %v4695 = vsel %vm3817, %v4469, %v4640
        %v4696 = vsel %vm3871, %v4695, %v4644
        %v4697 = vsel %vm3925, %v4696, %v4648
        %v4698 = vsel %vm3979, %v4697, %v4652
        %v4699 = vsel %vm4552, %v4698, %v4656
        %v4700 = vsel %vm4554, %v4699, %v4660
        %v4701 = vsel %vm4556, %v4700, %v4664
        %v4702 = vsel %vm3817, %v4474, %v4669
        %v4703 = vsel %vm3871, %v4702, %v4673
        %v4704 = vsel %vm3925, %v4703, %v4677
        %v4705 = vsel %vm3979, %v4704, %v4681
        %v4706 = vsel %vm4552, %v4705, %v4685
        %v4707 = vsel %vm4554, %v4706, %v4689
        %v4708 = vsel %vm4556, %v4707, %v4693
        %v4709 = vpack.c.bf16 %v4557, %v4557
        %v4710 = vpack.c.bf16 %v4564, %v4564
        %v4711 = vpack.c.bf16 %v4629, %v4629
        %v4712 = vpack.c.bf16 %v4636, %v4636
        %v4713 = vpack.c.bf16 %v4701, %v4701
        %v4714 = vpack.c.bf16 %v4708, %v4708
        %v4715 = vpack.c.bf16 %v4479, %v4479
        %v4716 = vld [vmem:[%s6] sm:$0xf]
        %v4717 = vld [vmem:[%s6 + $0x4] sm:$0xf]
        %v4718 = vld [vmem:[%s6 + $0x8] sm:$0xf]
        %v4719 = vld [vmem:[%s6 + $0xc] sm:$0xf]
        %v4720 = vld [vmem:[%s6 + $0x10] sm:$0xf]
        %v4721 = vld [vmem:[%s6 + $0x14] sm:$0xf]
        %v4722 = vld [vmem:[%s6 + $0x18] sm:$0xf]
        %v4723 = vld [vmem:[%s6 + $0x1c] sm:$0xf]
        %v4724 = vld [vmem:[%s6 + $0x20] sm:$0xf]
        %v4725 = vld [vmem:[%s6 + $0x24] sm:$0xf]
        %v4726 = vld [vmem:[%s6 + $0x28] sm:$0xf]
        %v4727 = vld [vmem:[%s6 + $0x2c] sm:$0xf]
        %v4728 = vld [vmem:[%s6 + $0x30] sm:$0xf]
        %v4729 = vld [vmem:[%s6 + $0x34] sm:$0xf]
        %v4730 = vld [vmem:[%s6 + $0x38] sm:$0xf]
        %v4731 = vld [vmem:[%s6 + $0x3c] sm:$0xf]
        %v4732 = vld [vmem:[%s6 + $0x40] sm:$0xf]
        %v4733 = vld [vmem:[%s6 + $0x44] sm:$0xf]
        %v4734 = vld [vmem:[%s6 + $0x48] sm:$0xf]
        %v4735 = vld [vmem:[%s6 + $0x4c] sm:$0xf]
        %v4736 = vld [vmem:[%s6 + $0x50] sm:$0xf]
        %v4737 = vld [vmem:[%s6 + $0x54] sm:$0xf]
        %v4738 = vld [vmem:[%s6 + $0x58] sm:$0xf]
        %v4739 = vld [vmem:[%s6 + $0x5c] sm:$0xf]
        %v4740 = vld [vmem:[%s6 + $0x60] sm:$0xf]
        %v4741 = vld [vmem:[%s6 + $0x64] sm:$0xf]
        %v4742 = vld [vmem:[%s6 + $0x68] sm:$0xf]
        %v4743 = vld [vmem:[%s6 + $0x6c] sm:$0xf]
        %v4744 = vld [vmem:[%s6 + $0x70] sm:$0xf]
        %v4745 = vld [vmem:[%s6 + $0x74] sm:$0xf]
        %v4746 = vld [vmem:[%s6 + $0x78] sm:$0xf]
        %v4747 = vld [vmem:[%s6 + $0x7c] sm:$0xf]
        %v4748 = vld [vmem:[%s6 + $0x80] sm:$0xf]
        %v4749 = vld [vmem:[%s6 + $0x84] sm:$0xf]
        %v4750 = vld [vmem:[%s6 + $0x88] sm:$0xf]
        %v4751 = vld [vmem:[%s6 + $0x8c] sm:$0xf]
        %v4752 = vld [vmem:[%s6 + $0x90] sm:$0xf]
        %v4753 = vld [vmem:[%s6 + $0x94] sm:$0xf]
        %v4754 = vld [vmem:[%s6 + $0x98] sm:$0xf]
        %v4755 = vld [vmem:[%s6 + $0x9c] sm:$0xf]
        %v4756 = vld [vmem:[%s6 + $0xa0] sm:$0xf]
        %v4757 = vld [vmem:[%s6 + $0xa4] sm:$0xf]
        %v4758 = vld [vmem:[%s6 + $0xa8] sm:$0xf]
        %v4759 = vld [vmem:[%s6 + $0xac] sm:$0xf]
        %v4760 = vld [vmem:[%s6 + $0xb0] sm:$0xf]
        %v4761 = vld [vmem:[%s6 + $0xb4] sm:$0xf]
        %v4762 = vld [vmem:[%s6 + $0xb8] sm:$0xf]
        %v4763 = vld [vmem:[%s6 + $0xbc] sm:$0xf]
        %v4764 = vld [vmem:[%s6 + $0xc0] sm:$0xf]
        %v4765 = vld [vmem:[%s6 + $0xc4] sm:$0xf]
        %v4766 = vld [vmem:[%s6 + $0xc8] sm:$0xf]
        %v4767 = vld [vmem:[%s6 + $0xcc] sm:$0xf]
        %v4768 = vld [vmem:[%s6 + $0xd0] sm:$0xf]
        %v4769 = vld [vmem:[%s6 + $0xd4] sm:$0xf]
        %v4770 = vld [vmem:[%s6 + $0xd8] sm:$0xf]
        %v4771 = vld [vmem:[%s6 + $0xdc] sm:$0xf]
        %v4772 = vld [vmem:[%s6 + $0xe0] sm:$0xf]
        %v4773 = vld [vmem:[%s6 + $0xe4] sm:$0xf]
        %v4774 = vld [vmem:[%s6 + $0xe8] sm:$0xf]
        %v4775 = vld [vmem:[%s6 + $0xec] sm:$0xf]
        %v4776 = vld [vmem:[%s6 + $0xf0] sm:$0xf]
        %v4777 = vld [vmem:[%s6 + $0xf4] sm:$0xf]
        %v4778 = vld [vmem:[%s6 + $0xf8] sm:$0xf]
        %v4779 = vld [vmem:[%s6 + $0xfc] sm:$0xf]
        %v4780 = vld [vmem:[%s6 + $0x100] sm:$0xf]
        %v4781 = vld [vmem:[%s6 + $0x104] sm:$0xf]
        %v4782 = vld [vmem:[%s6 + $0x108] sm:$0xf]
        %v4783 = vld [vmem:[%s6 + $0x10c] sm:$0xf]
        %v4784 = vld [vmem:[%s6 + $0x110] sm:$0xf]
        %v4785 = vld [vmem:[%s6 + $0x114] sm:$0xf]
        %v4786 = vld [vmem:[%s6 + $0x118] sm:$0xf]
        %v4787 = vld [vmem:[%s6 + $0x11c] sm:$0xf]
        %v4788 = vld [vmem:[%s6 + $0x120] sm:$0xf]
        %v4789 = vld [vmem:[%s6 + $0x124] sm:$0xf]
        %v4790 = vld [vmem:[%s6 + $0x128] sm:$0xf]
        %v4791 = vld [vmem:[%s6 + $0x12c] sm:$0xf]
        %v4792 = vld [vmem:[%s6 + $0x130] sm:$0xf]
        %v4793 = vld [vmem:[%s6 + $0x134] sm:$0xf]
        %v4794 = vld [vmem:[%s6 + $0x138] sm:$0xf]
        %v4795 = vld [vmem:[%s6 + $0x13c] sm:$0xf]
        %v4796 = vld [vmem:[%s6 + $0x140] sm:$0xf]
        %v4797 = vld [vmem:[%s6 + $0x144] sm:$0xf]
        %v4798 = vld [vmem:[%s6 + $0x148] sm:$0xf]
        %v4799 = vld [vmem:[%s6 + $0x14c] sm:$0xf]
        %v4800 = vld [vmem:[%s6 + $0x150] sm:$0xf]
        %v4801 = vld [vmem:[%s6 + $0x154] sm:$0xf]
        %v4802 = vld [vmem:[%s6 + $0x158] sm:$0xf]
        %v4803 = vld [vmem:[%s6 + $0x15c] sm:$0xf]
        %v4804 = vld [vmem:[%s6 + $0x160] sm:$0xf]
        %v4805 = vld [vmem:[%s6 + $0x164] sm:$0xf]
        %v4806 = vld [vmem:[%s6 + $0x168] sm:$0xf]
        %v4807 = vld [vmem:[%s6 + $0x16c] sm:$0xf]
        %v4808 = vld [vmem:[%s6 + $0x170] sm:$0xf]
        %v4809 = vld [vmem:[%s6 + $0x174] sm:$0xf]
        %v4810 = vld [vmem:[%s6 + $0x178] sm:$0xf]
        %v4811 = vld [vmem:[%s6 + $0x17c] sm:$0xf]
        %v4812 = vld [vmem:[%s6 + $0x180] sm:$0xf]
        %v4813 = vld [vmem:[%s6 + $0x184] sm:$0xf]
        %v4814 = vld [vmem:[%s7] sm:$0x1]
        %v4913 = vunpack.c.l.b16 %v4716
        %v4914 = vunpack.c.l.b16 %v4717
        %v4915 = vunpack.c.l.b16 %v4718
        %v4916 = vunpack.c.l.b16 %v4719
        %v4917 = vunpack.c.l.b16 %v4720
        %v4918 = vunpack.c.l.b16 %v4721
        %v4919 = vunpack.c.l.b16 %v4722
        %v4920 = vunpack.c.l.b16 %v4723
        %v4921 = vunpack.c.l.b16 %v4724
        %v4922 = vunpack.c.l.b16 %v4725
        %v4923 = vunpack.c.l.b16 %v4726
        %v4924 = vunpack.c.l.b16 %v4727
        %v4925 = vunpack.c.l.b16 %v4728
        %v4926 = vunpack.c.l.b16 %v4729
        %v4927 = vunpack.c.l.b16 %v4730
        %v4928 = vunpack.c.l.b16 %v4731
        %v4929 = vunpack.c.l.b16 %v4732
        %v4930 = vunpack.c.l.b16 %v4733
        %v4931 = vunpack.c.l.b16 %v4734
        %v4932 = vunpack.c.l.b16 %v4735
        %v4933 = vunpack.c.l.b16 %v4736
        %v4934 = vunpack.c.l.b16 %v4737
        %v4935 = vunpack.c.l.b16 %v4738
        %v4936 = vunpack.c.l.b16 %v4739
        %v4937 = vunpack.c.l.b16 %v4740
        %v4938 = vunpack.c.l.b16 %v4741
        %v4939 = vunpack.c.l.b16 %v4742
        %v4940 = vunpack.c.l.b16 %v4743
        %v4941 = vunpack.c.l.b16 %v4744
        %v4942 = vunpack.c.l.b16 %v4745
        %v4943 = vunpack.c.l.b16 %v4746
        %v4944 = vunpack.c.l.b16 %v4747
        %v4945 = vunpack.c.l.b16 %v4748
        %v4946 = vunpack.c.l.b16 %v4749
        %v4947 = vunpack.c.l.b16 %v4750
        %v4948 = vunpack.c.l.b16 %v4751
        %v4949 = vunpack.c.l.b16 %v4752
        %v4950 = vunpack.c.l.b16 %v4753
        %v4951 = vunpack.c.l.b16 %v4754
        %v4952 = vunpack.c.l.b16 %v4755
        %v4953 = vunpack.c.l.b16 %v4756
        %v4954 = vunpack.c.l.b16 %v4757
        %v4955 = vunpack.c.l.b16 %v4758
        %v4956 = vunpack.c.l.b16 %v4759
        %v4957 = vunpack.c.l.b16 %v4760
        %v4958 = vunpack.c.l.b16 %v4761
        %v4959 = vunpack.c.l.b16 %v4762
        %v4960 = vunpack.c.l.b16 %v4763
        %v4961 = vunpack.c.l.b16 %v4764
        %v4962 = vunpack.c.l.b16 %v4765
        %v4963 = vunpack.c.l.b16 %v4766
        %v4964 = vunpack.c.l.b16 %v4767
        %v4965 = vunpack.c.l.b16 %v4768
        %v4966 = vunpack.c.l.b16 %v4769
        %v4967 = vunpack.c.l.b16 %v4770
        %v4968 = vunpack.c.l.b16 %v4771
        %v4969 = vunpack.c.l.b16 %v4772
        %v4970 = vunpack.c.l.b16 %v4773
        %v4971 = vunpack.c.l.b16 %v4774
        %v4972 = vunpack.c.l.b16 %v4775
        %v4973 = vunpack.c.l.b16 %v4776
        %v4974 = vunpack.c.l.b16 %v4777
        %v4975 = vunpack.c.l.b16 %v4778
        %v4976 = vunpack.c.l.b16 %v4779
        %v4977 = vunpack.c.l.b16 %v4780
        %v4978 = vunpack.c.l.b16 %v4781
        %v4979 = vunpack.c.l.b16 %v4782
        %v4980 = vunpack.c.l.b16 %v4783
        %v4981 = vunpack.c.l.b16 %v4784
        %v4982 = vunpack.c.l.b16 %v4785
        %v4983 = vunpack.c.l.b16 %v4786
        %v4984 = vunpack.c.l.b16 %v4787
        %v4985 = vunpack.c.l.b16 %v4788
        %v4986 = vunpack.c.l.b16 %v4789
        %v4987 = vunpack.c.l.b16 %v4790
        %v4988 = vunpack.c.l.b16 %v4791
        %v4989 = vunpack.c.l.b16 %v4792
        %v4990 = vunpack.c.l.b16 %v4793
        %v4991 = vunpack.c.l.b16 %v4794
        %v4992 = vunpack.c.l.b16 %v4795
        %v4993 = vunpack.c.l.b16 %v4796
        %v4994 = vunpack.c.l.b16 %v4797
        %v4995 = vunpack.c.l.b16 %v4798
        %v4996 = vunpack.c.l.b16 %v4799
        %v4997 = vunpack.c.l.b16 %v4800
        %v4998 = vunpack.c.l.b16 %v4801
        %v4999 = vunpack.c.l.b16 %v4802
        %v5000 = vunpack.c.l.b16 %v4803
        %v5001 = vunpack.c.l.b16 %v4804
        %v5002 = vunpack.c.l.b16 %v4805
        %v5003 = vunpack.c.l.b16 %v4806
        %v5004 = vunpack.c.l.b16 %v4807
        %v5005 = vunpack.c.l.b16 %v4808
        %v5006 = vunpack.c.l.b16 %v4809
        %v5007 = vunpack.c.l.b16 %v4810
        %v5008 = vunpack.c.l.b16 %v4811
        %v5009 = vunpack.c.l.b16 %v4812
        %v5010 = vunpack.c.l.b16 %v4813
        %v5011 = vpack.c.b16 %v4914, %v4913
        %v5012 = vpack.c.b16 %v4916, %v4915
        %v5013 = vpack.c.b16 %v4918, %v4917
        %v5014 = vpack.c.b16 %v4920, %v4919
        %v5015 = vpack.c.b16 %v4922, %v4921
        %v5016 = vpack.c.b16 %v4924, %v4923
        %v5017 = vpack.c.b16 %v4926, %v4925
        %v5018 = vpack.c.b16 %v4928, %v4927
        %v5019 = vpack.c.b16 %v4930, %v4929
        %v5020 = vpack.c.b16 %v4932, %v4931
        %v5021 = vpack.c.b16 %v4934, %v4933
        %v5022 = vpack.c.b16 %v4936, %v4935
        %v5023 = vpack.c.b16 %v4938, %v4937
        %v5024 = vpack.c.b16 %v4940, %v4939
        %v5025 = vpack.c.b16 %v4942, %v4941
        %v5026 = vpack.c.b16 %v4944, %v4943
        %v5027 = vpack.c.b16 %v4946, %v4945
        %v5028 = vpack.c.b16 %v4948, %v4947
        %v5029 = vpack.c.b16 %v4950, %v4949
        %v5030 = vpack.c.b16 %v4952, %v4951
        %v5031 = vpack.c.b16 %v4954, %v4953
        %v5032 = vpack.c.b16 %v4956, %v4955
        %v5033 = vpack.c.b16 %v4958, %v4957
        %v5034 = vpack.c.b16 %v4960, %v4959
        %v5035 = vpack.c.b16 %v4962, %v4961
        %v5036 = vpack.c.b16 %v4964, %v4963
        %v5037 = vpack.c.b16 %v4966, %v4965
        %v5038 = vpack.c.b16 %v4968, %v4967
        %v5039 = vpack.c.b16 %v4970, %v4969
        %v5040 = vpack.c.b16 %v4972, %v4971
        %v5041 = vpack.c.b16 %v4974, %v4973
        %v5042 = vpack.c.b16 %v4976, %v4975
        %v5043 = vpack.c.b16 %v4978, %v4977
        %v5044 = vpack.c.b16 %v4980, %v4979
        %v5045 = vpack.c.b16 %v4982, %v4981
        %v5046 = vpack.c.b16 %v4984, %v4983
        %v5047 = vpack.c.b16 %v4986, %v4985
        %v5048 = vpack.c.b16 %v4988, %v4987
        %v5049 = vpack.c.b16 %v4990, %v4989
        %v5050 = vpack.c.b16 %v4992, %v4991
        %v5051 = vpack.c.b16 %v4994, %v4993
        %v5052 = vpack.c.b16 %v4996, %v4995
        %v5053 = vpack.c.b16 %v4998, %v4997
        %v5054 = vpack.c.b16 %v5000, %v4999
        %v5055 = vpack.c.b16 %v5002, %v5001
        %v5056 = vpack.c.b16 %v5004, %v5003
        %v5057 = vpack.c.b16 %v5006, %v5005
        %v5058 = vpack.c.b16 %v5008, %v5007
        %v5059 = vpack.c.b16 %v5010, %v5009
        %v5110 = vsel %vm3817, %v4715, 0
        %5112 = vmatprep.subr.bf16.mxu0 0
        %5113 = vmatpush1.bf16.msra.mxu0 %v5011
        %5114 = vmatprep.subr.bf16.mxu0 0
        %5115 = vmatpush1.bf16.msra.mxu0 %v5012
        %5116 = vmatprep.subr.bf16.mxu0 0
        %5117 = vmatpush1.bf16.msra.mxu0 %v5013
        %5118 = vmatprep.subr.bf16.mxu0 0
        %5119 = vmatpush1.bf16.msra.mxu0 %v5014
        %5120 = vmatprep.subr.bf16.mxu0 0
        %5121 = vmatpush1.bf16.msra.mxu0 %v5015
        %5122 = vmatprep.subr.bf16.mxu0 0
        %5123 = vmatpush1.bf16.msra.mxu0 %v5016
        %5124 = vmatprep.subr.bf16.mxu0 0
        %5125 = vmatpush1.bf16.msra.mxu0 %v5017
        %5126 = vmatprep.subr.bf16.mxu0 0
        %5127 = vmatpush1.bf16.msra.mxu0 %v5018
        %5128 = vmatprep.subr.bf16.mxu0 0
        %5129 = vmatpush1.bf16.msra.mxu0 %v5019
        %5130 = vmatprep.subr.bf16.mxu0 0
        %5131 = vmatpush1.bf16.msra.mxu0 %v5020
        %5132 = vmatprep.subr.bf16.mxu0 0
        %5133 = vmatpush1.bf16.msra.mxu0 %v5021
        %5134 = vmatprep.subr.bf16.mxu0 0
        %5135 = vmatpush1.bf16.msra.mxu0 %v5022
        %5136 = vmatprep.subr.bf16.mxu0 0
        %5137 = vmatpush1.bf16.msra.mxu0 %v5023
        %5138 = vmatprep.subr.bf16.mxu0 0
        %5139 = vmatpush1.bf16.msra.mxu0 %v5024
        %5140 = vmatprep.subr.bf16.mxu0 0
        %5141 = vmatpush1.bf16.msra.mxu0 %v5025
        %5142 = vmatprep.subr.bf16.mxu0 0
        %5143 = vmatpush1.bf16.msra.mxu0 %v5026
        %5144 = vmatprep.mubr.bf16.mxu0 %v4710
        %5145 = vmatmul.mubr.bf16.gmra.mrb[0].mxu0 %v4709
        %v5146 = vpop.f32.mrb[0].mxu0
        %v5147 = vadd.f32 %v4814, %v5146
        %v5148 = vpop.f32.mrb[0].mxu0
        %v5149 = vpop.f32.mrb[0].mxu0
        %v5150 = vpop.f32.mrb[0].mxu0
        %5151 = vdwg.mxu0
        %5152 = vmatprep.subr.bf16.mxu0 0
        %5153 = vmatpush1.bf16.msra.mxu0 %v5027
        %5154 = vmatprep.subr.bf16.mxu0 0
        %5155 = vmatpush1.bf16.msra.mxu0 %v5028
        %5156 = vmatprep.subr.bf16.mxu0 0
        %5157 = vmatpush1.bf16.msra.mxu0 %v5029
        %5158 = vmatprep.subr.bf16.mxu0 0
        %5159 = vmatpush1.bf16.msra.mxu0 %v5030
        %5160 = vmatprep.subr.bf16.mxu0 0
        %5161 = vmatpush1.bf16.msra.mxu0 %v5031
        %5162 = vmatprep.subr.bf16.mxu0 0
        %5163 = vmatpush1.bf16.msra.mxu0 %v5032
        %5164 = vmatprep.subr.bf16.mxu0 0
        %5165 = vmatpush1.bf16.msra.mxu0 %v5033
        %5166 = vmatprep.subr.bf16.mxu0 0
        %5167 = vmatpush1.bf16.msra.mxu0 %v5034
        %5168 = vmatprep.subr.bf16.mxu0 0
        %5169 = vmatpush1.bf16.msra.mxu0 %v5035
        %5170 = vmatprep.subr.bf16.mxu0 0
        %5171 = vmatpush1.bf16.msra.mxu0 %v5036
        %5172 = vmatprep.subr.bf16.mxu0 0
        %5173 = vmatpush1.bf16.msra.mxu0 %v5037
        %5174 = vmatprep.subr.bf16.mxu0 0
        %5175 = vmatpush1.bf16.msra.mxu0 %v5038
        %5176 = vmatprep.subr.bf16.mxu0 0
        %5177 = vmatpush1.bf16.msra.mxu0 %v5039
        %5178 = vmatprep.subr.bf16.mxu0 0
        %5179 = vmatpush1.bf16.msra.mxu0 %v5040
        %5180 = vmatprep.subr.bf16.mxu0 0
        %5181 = vmatpush1.bf16.msra.mxu0 %v5041
        %5182 = vmatprep.subr.bf16.mxu0 0
        %5183 = vmatpush1.bf16.msra.mxu0 %v5042
        %5184 = vmatprep.mubr.bf16.mxu0 %v4712
        %5185 = vmatmul.mubr.bf16.gmra.mrb[0].mxu0 %v4711
        %v5186 = vpop.f32.mrb[0].mxu0
        %v5187 = vadd.f32 %v5147, %v5186
        %v5188 = vpop.f32.mrb[0].mxu0
        %v5189 = vpop.f32.mrb[0].mxu0
        %v5190 = vpop.f32.mrb[0].mxu0
        %5191 = vdwg.mxu0
        %5192 = vmatprep.subr.bf16.mxu0 0
        %5193 = vmatpush1.bf16.msra.mxu0 %v5043
        %5194 = vmatprep.subr.bf16.mxu0 0
        %5195 = vmatpush1.bf16.msra.mxu0 %v5044
        %5196 = vmatprep.subr.bf16.mxu0 0
        %5197 = vmatpush1.bf16.msra.mxu0 %v5045
        %5198 = vmatprep.subr.bf16.mxu0 0
        %5199 = vmatpush1.bf16.msra.mxu0 %v5046
        %5200 = vmatprep.subr.bf16.mxu0 0
        %5201 = vmatpush1.bf16.msra.mxu0 %v5047
        %5202 = vmatprep.subr.bf16.mxu0 0
        %5203 = vmatpush1.bf16.msra.mxu0 %v5048
        %5204 = vmatprep.subr.bf16.mxu0 0
        %5205 = vmatpush1.bf16.msra.mxu0 %v5049
        %5206 = vmatprep.subr.bf16.mxu0 0
        %5207 = vmatpush1.bf16.msra.mxu0 %v5050
        %5208 = vmatprep.subr.bf16.mxu0 0
        %5209 = vmatpush1.bf16.msra.mxu0 %v5051
        %5210 = vmatprep.subr.bf16.mxu0 0
        %5211 = vmatpush1.bf16.msra.mxu0 %v5052
        %5212 = vmatprep.subr.bf16.mxu0 0
        %5213 = vmatpush1.bf16.msra.mxu0 %v5053
        %5214 = vmatprep.subr.bf16.mxu0 0
        %5215 = vmatpush1.bf16.msra.mxu0 %v5054
        %5216 = vmatprep.subr.bf16.mxu0 0
        %5217 = vmatpush1.bf16.msra.mxu0 %v5055
        %5218 = vmatprep.subr.bf16.mxu0 0
        %5219 = vmatpush1.bf16.msra.mxu0 %v5056
        %5220 = vmatprep.subr.bf16.mxu0 0
        %5221 = vmatpush1.bf16.msra.mxu0 %v5057
        %5222 = vmatprep.subr.bf16.mxu0 0
        %5223 = vmatpush1.bf16.msra.mxu0 %v5058
        %5224 = vmatprep.mubr.bf16.mxu0 %v4714
        %5225 = vmatmul.mubr.bf16.gmra.mrb[0].mxu0 %v4713
        %v5226 = vpop.f32.mrb[0].mxu0
        %v5227 = vadd.f32 %v5187, %v5226
        %v5228 = vpop.f32.mrb[0].mxu0
        %v5229 = vpop.f32.mrb[0].mxu0
        %v5230 = vpop.f32.mrb[0].mxu0
        %5231 = vdwg.mxu0
        %5232 = vmatprep.subr.bf16.mxu0 0
        %5233 = vmatpush1.bf16.msra.mxu0 %v5059
        %5234 = vmatprep.subr.bf16.mxu0 0
        %5235 = vmatpush1.bf16.msra.mxu0 0
        %5236 = vmatprep.subr.bf16.mxu0 0
        %5237 = vmatpush1.bf16.msra.mxu0 0
        %5238 = vmatprep.subr.bf16.mxu0 0
        %5239 = vmatpush1.bf16.msra.mxu0 0
        %5240 = vmatprep.subr.bf16.mxu0 0
        %5241 = vmatpush1.bf16.msra.mxu0 0
        %5242 = vmatprep.subr.bf16.mxu0 0
        %5243 = vmatpush1.bf16.msra.mxu0 0
        %5244 = vmatprep.subr.bf16.mxu0 0
        %5245 = vmatpush1.bf16.msra.mxu0 0
        %5246 = vmatprep.subr.bf16.mxu0 0
        %5247 = vmatpush1.bf16.msra.mxu0 0
        %5248 = vmatprep.subr.bf16.mxu0 0
        %5249 = vmatpush1.bf16.msra.mxu0 0
        %5250 = vmatprep.subr.bf16.mxu0 0
        %5251 = vmatpush1.bf16.msra.mxu0 0
        %5252 = vmatprep.subr.bf16.mxu0 0
        %5253 = vmatpush1.bf16.msra.mxu0 0
        %5254 = vmatprep.subr.bf16.mxu0 0
        %5255 = vmatpush1.bf16.msra.mxu0 0
        %5256 = vmatprep.subr.bf16.mxu0 0
        %5257 = vmatpush1.bf16.msra.mxu0 0
        %5258 = vmatprep.subr.bf16.mxu0 0
        %5259 = vmatpush1.bf16.msra.mxu0 0
        %5260 = vmatprep.subr.bf16.mxu0 0
        %5261 = vmatpush1.bf16.msra.mxu0 0
        %5262 = vmatprep.subr.bf16.mxu0 0
        %5263 = vmatpush1.bf16.msra.mxu0 0
        %5264 = vmatprep.mubr.bf16.mxu0 0
        %5265 = vmatmul.mubr.bf16.gmra.mrb[0].mxu0 %v5110
        %v5266 = vpop.f32.mrb[0].mxu0
        %v5267 = vadd.f32 %v5227, %v5266
        %v5268 = vpop.f32.mrb[0].mxu0
        %v5269 = vpop.f32.mrb[0].mxu0
        %v5270 = vpop.f32.mrb[0].mxu0
        %5271 = vdwg.mxu0
        %v5272 = vmax.f32 %v5267, 0.0
        %v5273 = vpack.c.bf16 %v5272, %v5272
        %v5274 = vld [vmem:[%s8] sm:$0xf]
        %v5275 = vld [vmem:[%s8 + $0x4] sm:$0xf]
        %v5276 = vld [vmem:[%s8 + $0x8] sm:$0xf]
        %v5277 = vld [vmem:[%s8 + $0xc] sm:$0xf]
        %v5278 = vld [vmem:[%s8 + $0x10] sm:$0xf]
        %v5279 = vld [vmem:[%s8 + $0x14] sm:$0xf]
        %v5280 = vld [vmem:[%s8 + $0x18] sm:$0xf]
        %v5281 = vld [vmem:[%s8 + $0x1c] sm:$0xf]
        %v5282 = vld [vmem:[%s8 + $0x20] sm:$0xf]
        %v5283 = vld [vmem:[%s8 + $0x24] sm:$0xf]
        %v5284 = vld [vmem:[%s8 + $0x28] sm:$0xf]
        %v5285 = vld [vmem:[%s8 + $0x2c] sm:$0xf]
        %v5286 = vld [vmem:[%s8 + $0x30] sm:$0xf]
        %v5287 = vld [vmem:[%s8 + $0x34] sm:$0xf]
        %v5288 = vld [vmem:[%s8 + $0x38] sm:$0xf]
        %v5289 = vld [vmem:[%s8 + $0x3c] sm:$0xf]
        %v5290 = vld [vmem:[%s9] sm:$0x1]
        %v5307 = vunpack.c.l.b16 %v5274
        %v5308 = vunpack.c.l.b16 %v5275
        %v5309 = vunpack.c.l.b16 %v5276
        %v5310 = vunpack.c.l.b16 %v5277
        %v5311 = vunpack.c.l.b16 %v5278
        %v5312 = vunpack.c.l.b16 %v5279
        %v5313 = vunpack.c.l.b16 %v5280
        %v5314 = vunpack.c.l.b16 %v5281
        %v5315 = vunpack.c.l.b16 %v5282
        %v5316 = vunpack.c.l.b16 %v5283
        %v5317 = vunpack.c.l.b16 %v5284
        %v5318 = vunpack.c.l.b16 %v5285
        %v5319 = vunpack.c.l.b16 %v5286
        %v5320 = vunpack.c.l.b16 %v5287
        %v5321 = vunpack.c.l.b16 %v5288
        %v5322 = vunpack.c.l.b16 %v5289
        %v5323 = vpack.c.b16 %v5308, %v5307
        %v5324 = vpack.c.b16 %v5310, %v5309
        %v5325 = vpack.c.b16 %v5312, %v5311
        %v5326 = vpack.c.b16 %v5314, %v5313
        %v5327 = vpack.c.b16 %v5316, %v5315
        %v5328 = vpack.c.b16 %v5318, %v5317
        %v5329 = vpack.c.b16 %v5320, %v5319
        %v5330 = vpack.c.b16 %v5322, %v5321
        %5339 = vmatprep.subr.bf16.mxu0 0
        %5340 = vmatpush1.bf16.msra.mxu0 %v5323
        %5341 = vmatprep.subr.bf16.mxu0 0
        %5342 = vmatpush1.bf16.msra.mxu0 %v5324
        %5343 = vmatprep.subr.bf16.mxu0 0
        %5344 = vmatpush1.bf16.msra.mxu0 %v5325
        %5345 = vmatprep.subr.bf16.mxu0 0
        %5346 = vmatpush1.bf16.msra.mxu0 %v5326
        %5347 = vmatprep.subr.bf16.mxu0 0
        %5348 = vmatpush1.bf16.msra.mxu0 %v5327
        %5349 = vmatprep.subr.bf16.mxu0 0
        %5350 = vmatpush1.bf16.msra.mxu0 %v5328
        %5351 = vmatprep.subr.bf16.mxu0 0
        %5352 = vmatpush1.bf16.msra.mxu0 %v5329
        %5353 = vmatprep.subr.bf16.mxu0 0
        %5354 = vmatpush1.bf16.msra.mxu0 %v5330
        %5355 = vmatprep.subr.bf16.mxu0 0
        %5356 = vmatpush1.bf16.msra.mxu0 0
        %5357 = vmatprep.subr.bf16.mxu0 0
        %5358 = vmatpush1.bf16.msra.mxu0 0
        %5359 = vmatprep.subr.bf16.mxu0 0
        %5360 = vmatpush1.bf16.msra.mxu0 0
        %5361 = vmatprep.subr.bf16.mxu0 0
        %5362 = vmatpush1.bf16.msra.mxu0 0
        %5363 = vmatprep.subr.bf16.mxu0 0
        %5364 = vmatpush1.bf16.msra.mxu0 0
        %5365 = vmatprep.subr.bf16.mxu0 0
        %5366 = vmatpush1.bf16.msra.mxu0 0
        %5367 = vmatprep.subr.bf16.mxu0 0
        %5368 = vmatpush1.bf16.msra.mxu0 0
        %5369 = vmatprep.subr.bf16.mxu0 0
        %5370 = vmatpush1.bf16.msra.mxu0 0
        %5371 = vmatprep.mubr.bf16.mxu0 0
        %5372 = vmatmul.mubr.bf16.gmra.mrb[0].mxu0 %v5273
        %v5373 = vpop.f32.mrb[0].mxu0
        %v5374 = vadd.f32 %v5290, %v5373
        %v5375 = vpop.f32.mrb[0].mxu0
        %v5376 = vpop.f32.mrb[0].mxu0
        %v5377 = vpop.f32.mrb[0].mxu0
        %5378 = vdwg.mxu0
        %5379 = vst [vmem:[%s420] sm:$0x1] %v5374
        %p5380 = scmp.lt.s32.totalorder %s27, 1
        %s5381 = scalar_select %p5380, %s27, 1
        %s5382 = smul.addr %s5381, 25
        %s5383 = smul.addr %s5382, 8
        %s5384 = scalar_lea.vmem %s10, %s5383
        %p5385 = scmp.lt.s32.totalorder %s27, 1
        %s5386 = scalar_select %p5385, %s27, 1
        %s5387 = smul.addr %s5386, 7
        %s5388 = smul.addr %s5387, 8
        %s5389 = scalar_lea.vmem %s11, %s5388
        %s5390 = sand.u32 %s302, 1
        %s5391 = scalar_lea.sflag [#allocation3], %s5390
        %s5392 = sand.u32 %s302, 1
        %s5393 = scalar_lea.vmem [#allocation2], %s5392
        // Predicated region
        $region61: #{tpu_custom_call.1} parent=59 // pred_check
          %p5394 = pneg %p260
        $region62: #{tpu_custom_call.1} parent=59 // pred_check_branch
          %5396 = sbr.rel (%p5394) target = $region64
        $region63: #{tpu_custom_call.1} parent=59 // pred_region
          _
        $region64: #{tpu_custom_call.1} parent=59 // pred_fallthru
          _
        // Predicated region
        $region65: #{tpu_custom_call.1} parent=59 // pred_check
          %p5397 = pneg %p286
        $region66: #{tpu_custom_call.1} parent=59 // pred_check_branch
          %5399 = sbr.rel (%p5397) target = $region68
        $region67: #{tpu_custom_call.1} parent=59 // pred_region
          _
        $region68: #{tpu_custom_call.1} parent=59 // pred_fallthru
          _
        // Predicated region
        $region69: #{tpu_custom_call.1} parent=59 // pred_check
          %p5400 = pneg %p312
        $region70: #{tpu_custom_call.1} parent=59 // pred_check_branch
          %5402 = sbr.rel (%p5400) target = $region72
        $region71: #{tpu_custom_call.1} parent=59 // pred_region
          %s5404 = ssub.s32 16, 16
          %5405 = vsyncadd %s5391, %s5404
          %s5406 = smul.addr %s27, 16
          %s5407 = scalar_lea.hbm %s12, %s5406
          %s5409 = sshll.u32 %s5393, 4
          %s5410 = int_to_ptr.vmem [resolvable:$true] %s5409
          %5412 = dma.vmem_to_hbm [thread:$0]  %s5410, 16, %s5407, %s5391
        $region72: #{tpu_custom_call.1} parent=59 // pred_fallthru
          _
      $region60: #{tpu_custom_call.1} parent=5 // pred_fallthru
        _
      %p5413 = scmp.le.s32.totalorder 2, %s22
      // Predicated region
      $region73: #{tpu_custom_call.1} parent=5 // pred_check
        %p5414 = pneg %p5413
      $region74: #{tpu_custom_call.1} parent=5 // pred_check_branch
        %5416 = sbr.rel (%p5414) target = $region76
      $region75: #{tpu_custom_call.1} parent=5 // pred_region
        %s5417 = ssub.s32 %s22, 2
        // Predicated region
        $region77: #{tpu_custom_call.1} parent=75 // pred_check
          %p5418 = pneg %p266
        $region78: #{tpu_custom_call.1} parent=75 // pred_check_branch
          %5420 = sbr.rel (%p5418) target = $region80
        $region79: #{tpu_custom_call.1} parent=75 // pred_region
          %p5421 = scmp.lt.s32.totalorder %s28, 1
          %s5422 = scalar_select %p5421, %s28, 1
          %s5423 = smul.addr %s5422, 25
          %s5424 = smul.addr %s5423, 8
          %s5425 = scalar_lea.vmem %s10, %s5424
        $region80: #{tpu_custom_call.1} parent=75 // pred_fallthru
          _
        // Predicated region
        $region81: #{tpu_custom_call.1} parent=75 // pred_check
          %p5426 = pneg %p292
        $region82: #{tpu_custom_call.1} parent=75 // pred_check_branch
          %5428 = sbr.rel (%p5426) target = $region84
        $region83: #{tpu_custom_call.1} parent=75 // pred_region
          %p5429 = scmp.lt.s32.totalorder %s28, 1
          %s5430 = scalar_select %p5429, %s28, 1
          %s5431 = smul.addr %s5430, 7
          %s5432 = smul.addr %s5431, 8
          %s5433 = scalar_lea.vmem %s11, %s5432
        $region84: #{tpu_custom_call.1} parent=75 // pred_fallthru
          _
        // Predicated region
        $region85: #{tpu_custom_call.1} parent=75 // pred_check
          %p5434 = pneg %p318
        $region86: #{tpu_custom_call.1} parent=75 // pred_check_branch
          %5436 = sbr.rel (%p5434) target = $region88
        $region87: #{tpu_custom_call.1} parent=75 // pred_region
          %s5437 = sand.u32 %s303, 1
          %s5438 = scalar_lea.sflag [#allocation3], %s5437
          %s5439 = sand.u32 %s303, 1
          %s5440 = scalar_lea.vmem [#allocation2], %s5439
          %5441 = dma.done %s5438, 16
        $region88: #{tpu_custom_call.1} parent=75 // pred_fallthru
          _
      $region76: #{tpu_custom_call.1} parent=5 // pred_fallthru
        _
    $region6: #{tpu_custom_call.1} parent=1 // loop_footer
      %s26 = sadd.s32 1, %s22
    $region7: #{tpu_custom_call.1} parent=1 // loop_footer_branch
      %21 = sbr.rel target = $region3
    $region8: #{tpu_custom_call.1} parent=1 // loop_exit
      _
    %5442 = vsyncpa [#allocation3], 1
    %s5443 = scalar_lea.sflag [#allocation3], 1
    %5444 = vsyncpa %s5443, 1

</llo_original>
